<compile_context>
chip_gen: v7x
topology: tpu7x:2x2x1
jax: 0.10.0
libtpu: 0.0.40
codegen_flags: <defaults>
</compile_context>

<pallas_src>
import math
from functools import partial

import jax
import jax.numpy as jnp
from jax.experimental import pallas as pl
from jax.experimental.pallas import tpu as pltpu

# ------------------------- model config (small, matches module semantics) -------------------------
NUM_LAYERS = 2
VOCAB_SIZE = 64
DIM_MODEL = 32
DIM_HEAD = 8
NUM_HEADS = 4
DIM_FF = 64
MAX_DISTANCE = 16
BATCH = 2
SEQ = 8
LN_EPS = 1e-5

VPAD = 128          # lane-dense logits slab width (output last dim = one full vreg lane row)
NEG_BIG = 1e30      # finite additive mask bias (avoids -inf -> NaN for fully-masked rows)


def _layernorm(x, gamma, beta):
    # var = E[x^2] - mu^2: two independent reductions over the same x (XLU reductions can overlap),
    # one fewer full-tensor VPU pass than mean-then-centered-square.
    mu = jnp.mean(x, axis=-1, keepdims=True)
    ex2 = jnp.mean(x * x, axis=-1, keepdims=True)
    var = ex2 - mu * mu
    return (x - mu) * jax.lax.rsqrt(var + LN_EPS) * gamma + beta


# ------------------------- fused whole-model kernel -------------------------
def gpt_kernel(emb_ref, mask_ref, wmat_ref, wproj_ref, vec_ref, fin_ref, out_ref, *,
               num_layers, batch, seq, num_heads, dim_head, dim_model, dim_ff):
    BS = batch * seq
    HDh = num_heads * dim_head
    QKV = 3 * HDh

    hidden = emb_ref[...]                 # (BS, D) stays VMEM/vreg-resident for the whole forward
    mask01 = mask_ref[...]                # (BS, BS) 1.0 = attend (block-diagonal causal mask)
    bias = (mask01 - 1.0) * NEG_BIG       # additive bias: 0 / -1e30, computed once for all layers

    for li in range(num_layers):          # statically unrolled; all layer weights already in VMEM
        wm = wmat_ref[li]                 # (D, 192) = [wqkv(96) | pad(32) | w1(64)]
        wqkv = wm[:, 0:QKV]               # (D, 96)   (1/sqrt(Dh) folded into the q columns)
        w1 = wm[:, 128:128 + dim_ff]      # (D, F)    lane-tile-aligned slice
        wp = wproj_ref[li]                # (F + HDh, D) = [w2 ; wo]
        w2 = wp[0:dim_ff, :]              # (F, D)
        wo = wp[dim_ff:dim_ff + HDh, :]   # (HDh, D)

        vec = vec_ref[li]                 # (3, 128) packed per-layer vectors
        ln1_g = vec[0:1, 0:dim_model]
        ln1_b = vec[0:1, dim_model:2 * dim_model]
        ln2_g = vec[0:1, 2 * dim_model:3 * dim_model]
        ln2_b = vec[0:1, 3 * dim_model:4 * dim_model]
        bo = vec[1:2, 0:dim_model]
        bf2 = vec[1:2, dim_model:2 * dim_model]
        bf1 = vec[1:2, 2 * dim_model:2 * dim_model + dim_ff]
        bqkv = vec[2:3, 0:QKV]

        # ---------------- attention block ----------------
        xn = _layernorm(hidden, ln1_g, ln1_b)                                     # (BS, D)
        qkv = jnp.dot(xn, wqkv, preferred_element_type=jnp.float32) + bqkv        # (BS, 96)
        q = jnp.transpose(qkv[:, 0:HDh].reshape(BS, num_heads, dim_head), (1, 0, 2))        # (H,BS,Dh)
        k = jnp.transpose(qkv[:, HDh:2 * HDh].reshape(BS, num_heads, dim_head), (1, 0, 2))  # (H,BS,Dh)
        v = jnp.transpose(qkv[:, 2 * HDh:3 * HDh].reshape(BS, num_heads, dim_head), (1, 0, 2))

        # block-diagonal masked scores over the flattened (B*S) axis; cross-batch & masked entries
        # underflow to exactly 0 after exp thanks to the -1e30 additive bias.
        s = jnp.einsum('hqd,hkd->hqk', q, k, preferred_element_type=jnp.float32) + bias      # (H,BS,BS)
        smax = jnp.max(s, axis=-1, keepdims=True)
        p = jnp.exp(s - smax)
        p = p * (1.0 / jnp.sum(p, axis=-1, keepdims=True))
        p = p * mask01                                     # post-softmax zeroing, matches reference

        ctx = jnp.einsum('hqk,hkd->hqd', p, v, preferred_element_type=jnp.float32)           # (H,BS,Dh)
        ctx2 = jnp.transpose(ctx, (1, 0, 2)).reshape(BS, HDh)                                 # (BS, HDh)
        hidden = hidden + jnp.dot(ctx2, wo, preferred_element_type=jnp.float32) + bo

        # ---------------- feed-forward block ----------------
        xn2 = _layernorm(hidden, ln2_g, ln2_b)
        h1 = jnp.maximum(jnp.dot(xn2, w1, preferred_element_type=jnp.float32) + bf1, 0.0)
        hidden = hidden + jnp.dot(h1, w2, preferred_element_type=jnp.float32) + bf2

    # ---------------- final LN + tied-embedding logits ----------------
    fin = fin_ref[...]                    # (2 + D, 128) = [lnf_g ; lnf_b ; wlog]
    lnf_g = fin[0:1, 0:dim_model]
    lnf_b = fin[1:2, 0:dim_model]
    wlog = fin[2:2 + dim_model, :]        # (D, 128) — 1/sqrt(D) pre-folded, lane-padded
    xnf = _layernorm(hidden, lnf_g, lnf_b)
    out_ref[...] = jnp.dot(xnf, wlog, preferred_element_type=jnp.float32)        # lane-dense store


# ------------------------- one-time parameter preparation (plain JAX, done at init) -------------------------
def build_pallas_params(params):
    D, H, Dh, V, F = DIM_MODEL, NUM_HEADS, DIM_HEAD, VOCAB_SIZE, DIM_FF
    HDh = H * Dh
    scale = 1.0 / math.sqrt(Dh)

    wmat_list, wproj_list, vec_list = [], [], []
    for lp in params["layers"]:
        # fused, un-replicated QKV weight with the 1/sqrt(Dh) scale folded into the q part
        wqkv = jnp.concatenate([lp["wq"] * scale, lp["wk"], lp["wv"]], axis=1)       # (D, 96)
        bqkv = jnp.concatenate([lp["bq"] * scale, lp["bk"], lp["bv"]], axis=1)       # (1, 96)
        wmat = jnp.concatenate([jnp.pad(wqkv, ((0, 0), (0, 128 - 3 * HDh))),
                                lp["w1"]], axis=1)                                    # (D, 192)
        wproj = jnp.concatenate([lp["w2"], lp["wo"]], axis=0)                         # (F+HDh, D)

        row0 = jnp.concatenate([lp["ln1_g"], lp["ln1_b"], lp["ln2_g"], lp["ln2_b"]], axis=1)  # (1,128)
        row1 = jnp.concatenate([lp["bo"], lp["bf2"], lp["bf1"]], axis=1)                       # (1,128)
        row2 = jnp.pad(bqkv, ((0, 0), (0, 128 - 3 * HDh)))                                     # (1,128)

        wmat_list.append(wmat)
        wproj_list.append(wproj)
        vec_list.append(jnp.concatenate([row0, row1, row2], axis=0))                           # (3,128)

    # tied-embedding logits weight: transpose + 1/sqrt(D) scale folded once, lane-padded to 128,
    # packed with the final-LN params into one slab.
    wlog = params["word_emb"].T * (1.0 / math.sqrt(D))                      # (D, V)
    wlog = jnp.pad(wlog, ((0, 0), (0, VPAD - V)))                           # (D, 128)
    fin = jnp.concatenate([jnp.pad(params["lnf_g"], ((0, 0), (0, VPAD - D))),
                           jnp.pad(params["lnf_b"], ((0, 0), (0, VPAD - D))),
                           wlog], axis=0)                                   # (2 + D, 128)

    return {
        "wmat": jnp.stack(wmat_list, axis=0),    # (NL, D, 192)
        "wproj": jnp.stack(wproj_list, axis=0),  # (NL, F+HDh, D)
        "vec": jnp.stack(vec_list, axis=0),      # (NL, 3, 128)
        "fin": fin,                              # (2+D, 128)
        "word_emb": params["word_emb"], "pos_emb": params["pos_emb"],
    }


# ------------------------- full GPT forward (single pallas_call) -------------------------
@jax.jit
def gpt_forward_pallas(pp, tokens, pos, mask):
    B, S = tokens.shape
    D, H = DIM_MODEL, NUM_HEADS
    BS = B * S

    # per-batch causal/padding mask, expanded to a block-diagonal (BS, BS) 0/1 mask so the kernel
    # can treat the flattened batch*seq axis as one sequence.
    mask_2d = (mask[:, None, :] & mask[:, :, None]) & (pos[:, None, :] >= pos[:, :, None])   # (B,S,S)
    same_b = jnp.arange(B)[:, None] == jnp.arange(B)[None, :]                                # (B,B)
    mask01 = (same_b[:, None, :, None] & mask_2d[:, :, None, :]).reshape(BS, BS).astype(jnp.float32)

    # embedding gathers (plain-JAX glue)
    emb = (pp["pos_emb"][pos] + pp["word_emb"][tokens]).reshape(BS, D).astype(jnp.float32)

    kernel = partial(gpt_kernel, num_layers=NUM_LAYERS, batch=B, seq=S,
                     num_heads=H, dim_head=DIM_HEAD, dim_model=D, dim_ff=DIM_FF)

    vmem_spec = lambda: pl.BlockSpec(memory_space=pltpu.MemorySpace.VMEM)

    # No grid: the whole (tiny) model runs in one kernel invocation with 6 packed VMEM-resident
    # operands; the only HBM writeback is the lane-dense (BS, 128) logits slab.
    logits_pad = pl.pallas_call(
        kernel,
        out_shape=jax.ShapeDtypeStruct((BS, VPAD), jnp.float32),
        in_specs=[vmem_spec() for _ in range(6)],
        out_specs=vmem_spec(),
    )(emb, mask01, pp["wmat"], pp["wproj"], pp["vec"], pp["fin"])

    return logits_pad[:, :VOCAB_SIZE].reshape(B, S, VOCAB_SIZE)


# ------------------------- plain-JAX reference (faithful to the PyTorch module) -------------------------
def gpt_forward_ref(params, tokens, pos, mask):
    def _ln(x, g, b):
        mu = jnp.mean(x, axis=-1, keepdims=True)
        var = jnp.mean((x - mu) ** 2, axis=-1, keepdims=True)
        return (x - mu) * jax.lax.rsqrt(var + LN_EPS) * g + b

    mask_2d = (mask[:, None, :] & mask[:, :, None]) & (pos[:, None, :] >= pos[:, :, None])
    hidden = params["pos_emb"][pos] + params["word_emb"][tokens]
    for lp in params["layers"]:
        x = _ln(hidden, lp["ln1_g"][0], lp["ln1_b"][0])
        q = x @ lp["wq"] + lp["bq"][0]
        k = x @ lp["wk"] + lp["bk"][0]
        v = x @ lp["wv"] + lp["bv"][0]
        B, S, _ = x.shape
        q = q.reshape(B, S, NUM_HEADS, DIM_HEAD).transpose(0, 2, 1, 3)
        k = k.reshape(B, S, NUM_HEADS, DIM_HEAD).transpose(0, 2, 1, 3)
        v = v.reshape(B, S, NUM_HEADS, DIM_HEAD).transpose(0, 2, 1, 3)
        s = jnp.einsum("bhqd,bhkd->bhqk", q, k) / math.sqrt(DIM_HEAD)
        m = mask_2d[:, None, :, :]
        s = jnp.where(m, s, -jnp.inf)
        p = jax.nn.softmax(s, axis=-1)
        p = jnp.where(m, p, 0.0)
        o = jnp.einsum("bhqk,bhkd->bhqd", p, v).transpose(0, 2, 1, 3).reshape(B, S, NUM_HEADS * DIM_HEAD)
        hidden = hidden + o @ lp["wo"] + lp["bo"][0]
        x = _ln(hidden, lp["ln2_g"][0], lp["ln2_b"][0])
        ff = jnp.maximum(x @ lp["w1"] + lp["bf1"][0], 0.0) @ lp["w2"] + lp["bf2"][0]
        hidden = hidden + ff
    out = _ln(hidden, params["lnf_g"][0], params["lnf_b"][0])
    return (out @ params["word_emb"].T) / math.sqrt(DIM_MODEL)


# ------------------------- deterministic parameter init -------------------------
def init_params(key):
    D, HDh, F = DIM_MODEL, NUM_HEADS * DIM_HEAD, DIM_FF
    keys = jax.random.split(key, 2 + NUM_LAYERS)
    params = {
        "word_emb": 0.02 * jax.random.normal(keys[0], (VOCAB_SIZE, D), jnp.float32),
        "pos_emb": 0.02 * jax.random.normal(keys[1], (MAX_DISTANCE, D), jnp.float32),
        "lnf_g": jnp.ones((1, D), jnp.float32),
        "lnf_b": jnp.zeros((1, D), jnp.float32),
        "layers": [],
    }
    for li in range(NUM_LAYERS):
        lk = jax.random.split(keys[2 + li], 8)
        lp = {
            "ln1_g": jnp.ones((1, D), jnp.float32),
            "ln1_b": jnp.zeros((1, D), jnp.float32),
            # linear weights stored pre-transposed as [in, out]
            "wq": 0.02 * jax.random.normal(lk[0], (D, HDh), jnp.float32),
            "bq": 0.01 * jax.random.normal(lk[1], (1, HDh), jnp.float32),
            "wk": 0.02 * jax.random.normal(lk[2], (D, HDh), jnp.float32),
            "bk": jnp.zeros((1, HDh), jnp.float32),
            "wv": 0.02 * jax.random.normal(lk[3], (D, HDh), jnp.float32),
            "bv": jnp.zeros((1, HDh), jnp.float32),
            "wo": 0.02 * jax.random.normal(lk[4], (HDh, D), jnp.float32),
            "bo": jnp.zeros((1, D), jnp.float32),
            "ln2_g": jnp.ones((1, D), jnp.float32),
            "ln2_b": jnp.zeros((1, D), jnp.float32),
            "w1": 0.02 * jax.random.normal(lk[5], (D, F), jnp.float32),
            "bf1": 0.01 * jax.random.normal(lk[6], (1, F), jnp.float32),
            "w2": 0.02 * jax.random.normal(lk[7], (F, D), jnp.float32),
            "bf2": jnp.zeros((1, D), jnp.float32),
        }
        params["layers"].append(lp)
    return params


if __name__ == "__main__":
    key = jax.random.PRNGKey(0)
    pkey, tkey = jax.random.split(key)
    params = init_params(pkey)
    pp = build_pallas_params(params)   # one-time repack (fused QKV, packed slabs, folded scales)

    tokens = jax.random.randint(tkey, (BATCH, SEQ), 0, VOCAB_SIZE, dtype=jnp.int32)
    pos = jnp.broadcast_to(jnp.arange(SEQ, dtype=jnp.int32), (BATCH, SEQ))
    mask = jnp.ones((BATCH, SEQ), dtype=jnp.bool_)

    logits = gpt_forward_pallas(pp, tokens, pos, mask)
    logits = jax.block_until_ready(logits)

    ref = gpt_forward_ref(params, tokens, pos, mask)
    assert logits.shape == (BATCH, SEQ, VOCAB_SIZE)
    assert jnp.allclose(logits, ref, rtol=1e-4, atol=1e-4), (
        "mismatch: max abs err %e" % float(jnp.max(jnp.abs(logits - ref)))
    )

    print("KERNEL_OK")
</pallas_src>

<mosaic_0001>
module attributes {stable_mosaic.version = 11 : i64} {
  func.func @gpt_kernel(%arg0: memref<16x32xf32, #tpu.memory_space<vmem>>, %arg1: memref<16x16xf32, #tpu.memory_space<vmem>>, %arg2: memref<2x32x192xf32, #tpu.memory_space<vmem>>, %arg3: memref<2x96x32xf32, #tpu.memory_space<vmem>>, %arg4: memref<2x3x128xf32, #tpu.memory_space<vmem>>, %arg5: memref<34x128xf32, #tpu.memory_space<vmem>>, %arg6: memref<16x128xf32, #tpu.memory_space<vmem>>) attributes {dimension_semantics = [], scalar_prefetch = 0 : i64, scratch_operands = 0 : i64, tpu.core_type = #tpu.core_type<tc>} {
    %c0 = arith.constant 0 : index
    %c0_0 = arith.constant 0 : index
    %0 = vector.load %arg0[%c0, %c0_0] : memref<16x32xf32, #tpu.memory_space<vmem>>, vector<16x32xf32>
    %c0_1 = arith.constant 0 : index
    %c0_2 = arith.constant 0 : index
    %1 = vector.load %arg1[%c0_1, %c0_2] : memref<16x16xf32, #tpu.memory_space<vmem>>, vector<16x16xf32>
    %cst = arith.constant 1.000000e+00 : f32
    %2 = vector.broadcast %cst : f32 to vector<16x16xf32>
    %3 = arith.subf %1, %2 : vector<16x16xf32>
    %cst_3 = arith.constant 1.000000e+30 : f32
    %4 = vector.broadcast %cst_3 : f32 to vector<16x16xf32>
    %5 = arith.mulf %3, %4 : vector<16x16xf32>
    %c0_4 = arith.constant 0 : index
    %c0_5 = arith.constant 0 : index
    %c0_6 = arith.constant 0 : index
    %6 = vector.load %arg2[%c0_4, %c0_5, %c0_6] : memref<2x32x192xf32, #tpu.memory_space<vmem>>, vector<1x32x192xf32>
    %7 = vector.shape_cast %6 : vector<1x32x192xf32> to vector<32x192xf32>
    %8 = vector.extract_strided_slice %7 {offsets = [0, 0], sizes = [32, 96], strides = [1, 1]} : vector<32x192xf32> to vector<32x96xf32>
    %9 = vector.extract_strided_slice %7 {offsets = [0, 128], sizes = [32, 64], strides = [1, 1]} : vector<32x192xf32> to vector<32x64xf32>
    %c0_7 = arith.constant 0 : index
    %c0_8 = arith.constant 0 : index
    %c0_9 = arith.constant 0 : index
    %10 = vector.load %arg3[%c0_7, %c0_8, %c0_9] : memref<2x96x32xf32, #tpu.memory_space<vmem>>, vector<1x96x32xf32>
    %11 = vector.shape_cast %10 : vector<1x96x32xf32> to vector<96x32xf32>
    %12 = vector.extract_strided_slice %11 {offsets = [0, 0], sizes = [64, 32], strides = [1, 1]} : vector<96x32xf32> to vector<64x32xf32>
    %13 = vector.extract_strided_slice %11 {offsets = [64, 0], sizes = [32, 32], strides = [1, 1]} : vector<96x32xf32> to vector<32x32xf32>
    %c0_10 = arith.constant 0 : index
    %c0_11 = arith.constant 0 : index
    %c0_12 = arith.constant 0 : index
    %14 = vector.load %arg4[%c0_10, %c0_11, %c0_12] : memref<2x3x128xf32, #tpu.memory_space<vmem>>, vector<1x3x128xf32>
    %15 = vector.shape_cast %14 : vector<1x3x128xf32> to vector<3x128xf32>
    %16 = vector.extract_strided_slice %15 {offsets = [0, 0], sizes = [1, 32], strides = [1, 1]} : vector<3x128xf32> to vector<1x32xf32>
    %17 = vector.extract_strided_slice %15 {offsets = [0, 32], sizes = [1, 32], strides = [1, 1]} : vector<3x128xf32> to vector<1x32xf32>
    %18 = vector.extract_strided_slice %15 {offsets = [0, 64], sizes = [1, 32], strides = [1, 1]} : vector<3x128xf32> to vector<1x32xf32>
    %19 = vector.extract_strided_slice %15 {offsets = [0, 96], sizes = [1, 32], strides = [1, 1]} : vector<3x128xf32> to vector<1x32xf32>
    %20 = vector.extract_strided_slice %15 {offsets = [1, 0], sizes = [1, 32], strides = [1, 1]} : vector<3x128xf32> to vector<1x32xf32>
    %21 = vector.extract_strided_slice %15 {offsets = [1, 32], sizes = [1, 32], strides = [1, 1]} : vector<3x128xf32> to vector<1x32xf32>
    %22 = vector.extract_strided_slice %15 {offsets = [1, 64], sizes = [1, 64], strides = [1, 1]} : vector<3x128xf32> to vector<1x64xf32>
    %23 = vector.extract_strided_slice %15 {offsets = [2, 0], sizes = [1, 96], strides = [1, 1]} : vector<3x128xf32> to vector<1x96xf32>
    %cst_13 = arith.constant dense<0.000000e+00> : vector<16xf32>
    %24 = vector.multi_reduction <add>, %0, %cst_13 [1] : vector<16x32xf32> to vector<16xf32>
    %25 = vector.shape_cast %24 : vector<16xf32> to vector<16x1xf32>
    %cst_14 = arith.constant 3.200000e+01 : f32
    %26 = vector.broadcast %cst_14 : f32 to vector<16x1xf32>
    %27 = arith.divf %25, %26 : vector<16x1xf32>
    %28 = arith.mulf %0, %0 : vector<16x32xf32>
    %cst_15 = arith.constant dense<0.000000e+00> : vector<16xf32>
    %29 = vector.multi_reduction <add>, %28, %cst_15 [1] : vector<16x32xf32> to vector<16xf32>
    %30 = vector.shape_cast %29 : vector<16xf32> to vector<16x1xf32>
    %cst_16 = arith.constant 3.200000e+01 : f32
    %31 = vector.broadcast %cst_16 : f32 to vector<16x1xf32>
    %32 = arith.divf %30, %31 : vector<16x1xf32>
    %33 = arith.mulf %27, %27 : vector<16x1xf32>
    %34 = arith.subf %32, %33 : vector<16x1xf32>
    %35 = vector.broadcast %27 : vector<16x1xf32> to vector<16x32xf32>
    %36 = arith.subf %0, %35 : vector<16x32xf32>
    %cst_17 = arith.constant 9.99999974E-6 : f32
    %37 = vector.broadcast %cst_17 : f32 to vector<16x1xf32>
    %38 = arith.addf %34, %37 : vector<16x1xf32>
    %39 = math.rsqrt %38 : vector<16x1xf32>
    %40 = vector.broadcast %39 : vector<16x1xf32> to vector<16x32xf32>
    %41 = arith.mulf %36, %40 : vector<16x32xf32>
    %42 = vector.broadcast %16 : vector<1x32xf32> to vector<16x32xf32>
    %43 = arith.mulf %41, %42 : vector<16x32xf32>
    %44 = vector.broadcast %17 : vector<1x32xf32> to vector<16x32xf32>
    %45 = arith.addf %43, %44 : vector<16x32xf32>
    %cst_18 = arith.constant dense<0.000000e+00> : vector<16x96xf32>
    %46 = tpu.matmul %45, %8, %cst_18 {dimension_numbers = #tpu.dot_dimension_numbers<[1], [0], [0], [1], [0, 0, 1, 1], [], []>} : vector<16x32xf32>, vector<32x96xf32>, vector<16x96xf32> -> vector<16x96xf32>
    %47 = vector.broadcast %23 : vector<1x96xf32> to vector<16x96xf32>
    %48 = arith.addf %46, %47 : vector<16x96xf32>
    %49 = vector.extract_strided_slice %48 {offsets = [0, 0], sizes = [16, 32], strides = [1, 1]} : vector<16x96xf32> to vector<16x32xf32>
    %50 = vector.shape_cast %49 : vector<16x32xf32> to vector<16x4x8xf32>
    %51 = tpu.transpose %50, [1, 0, 2] : vector<16x4x8xf32> -> vector<4x16x8xf32>
    %52 = vector.extract_strided_slice %48 {offsets = [0, 32], sizes = [16, 32], strides = [1, 1]} : vector<16x96xf32> to vector<16x32xf32>
    %53 = vector.shape_cast %52 : vector<16x32xf32> to vector<16x4x8xf32>
    %54 = tpu.transpose %53, [1, 0, 2] : vector<16x4x8xf32> -> vector<4x16x8xf32>
    %55 = vector.extract_strided_slice %48 {offsets = [0, 64], sizes = [16, 32], strides = [1, 1]} : vector<16x96xf32> to vector<16x32xf32>
    %56 = vector.shape_cast %55 : vector<16x32xf32> to vector<16x4x8xf32>
    %57 = tpu.transpose %56, [1, 0, 2] : vector<16x4x8xf32> -> vector<4x16x8xf32>
    "tpu.trace_start"() <{level = 10 : i32, message = "hqd,hkd->hqk"}> : () -> ()
    %cst_19 = arith.constant dense<0.000000e+00> : vector<4x16x16xf32>
    %58 = tpu.matmul %51, %54, %cst_19 {dimension_numbers = #tpu.dot_dimension_numbers<[2], [2], [1], [1], [0, 0, 0, 1, 1, 1], [0], [0]>} : vector<4x16x8xf32>, vector<4x16x8xf32>, vector<4x16x16xf32> -> vector<4x16x16xf32>
    "tpu.trace_stop"() : () -> ()
    %59 = vector.shape_cast %5 : vector<16x16xf32> to vector<1x16x16xf32>
    %60 = vector.broadcast %59 : vector<1x16x16xf32> to vector<4x16x16xf32>
    %61 = arith.addf %58, %60 : vector<4x16x16xf32>
    %cst_20 = arith.constant dense<0xFF800000> : vector<4x16xf32>
    %62 = vector.multi_reduction <maximumf>, %61, %cst_20 [2] : vector<4x16x16xf32> to vector<4x16xf32>
    %63 = vector.shape_cast %62 : vector<4x16xf32> to vector<4x16x1xf32>
    %64 = vector.broadcast %63 : vector<4x16x1xf32> to vector<4x16x16xf32>
    %65 = arith.subf %61, %64 : vector<4x16x16xf32>
    %66 = math.exp %65 : vector<4x16x16xf32>
    %cst_21 = arith.constant dense<0.000000e+00> : vector<4x16xf32>
    %67 = vector.multi_reduction <add>, %66, %cst_21 [2] : vector<4x16x16xf32> to vector<4x16xf32>
    %68 = vector.shape_cast %67 : vector<4x16xf32> to vector<4x16x1xf32>
    %cst_22 = arith.constant 1.000000e+00 : f32
    %69 = vector.broadcast %cst_22 : f32 to vector<4x16x1xf32>
    %70 = arith.divf %69, %68 : vector<4x16x1xf32>
    %71 = vector.broadcast %70 : vector<4x16x1xf32> to vector<4x16x16xf32>
    %72 = arith.mulf %66, %71 : vector<4x16x16xf32>
    %73 = vector.shape_cast %1 : vector<16x16xf32> to vector<1x16x16xf32>
    %74 = vector.broadcast %73 : vector<1x16x16xf32> to vector<4x16x16xf32>
    %75 = arith.mulf %72, %74 : vector<4x16x16xf32>
    "tpu.trace_start"() <{level = 10 : i32, message = "hqk,hkd->hqd"}> : () -> ()
    %cst_23 = arith.constant dense<0.000000e+00> : vector<4x16x8xf32>
    %76 = tpu.matmul %75, %57, %cst_23 {dimension_numbers = #tpu.dot_dimension_numbers<[2], [1], [1], [2], [0, 0, 0, 1, 1, 2], [0], [0]>} : vector<4x16x16xf32>, vector<4x16x8xf32>, vector<4x16x8xf32> -> vector<4x16x8xf32>
    "tpu.trace_stop"() : () -> ()
    %77 = tpu.transpose %76, [1, 0, 2] : vector<4x16x8xf32> -> vector<16x4x8xf32>
    %78 = vector.shape_cast %77 : vector<16x4x8xf32> to vector<16x32xf32>
    %cst_24 = arith.constant dense<0.000000e+00> : vector<16x32xf32>
    %79 = tpu.matmul %78, %13, %cst_24 {dimension_numbers = #tpu.dot_dimension_numbers<[1], [0], [0], [1], [0, 0, 1, 1], [], []>} : vector<16x32xf32>, vector<32x32xf32>, vector<16x32xf32> -> vector<16x32xf32>
    %80 = arith.addf %0, %79 : vector<16x32xf32>
    %81 = vector.broadcast %20 : vector<1x32xf32> to vector<16x32xf32>
    %82 = arith.addf %80, %81 : vector<16x32xf32>
    %cst_25 = arith.constant dense<0.000000e+00> : vector<16xf32>
    %83 = vector.multi_reduction <add>, %82, %cst_25 [1] : vector<16x32xf32> to vector<16xf32>
    %84 = vector.shape_cast %83 : vector<16xf32> to vector<16x1xf32>
    %cst_26 = arith.constant 3.200000e+01 : f32
    %85 = vector.broadcast %cst_26 : f32 to vector<16x1xf32>
    %86 = arith.divf %84, %85 : vector<16x1xf32>
    %87 = arith.mulf %82, %82 : vector<16x32xf32>
    %cst_27 = arith.constant dense<0.000000e+00> : vector<16xf32>
    %88 = vector.multi_reduction <add>, %87, %cst_27 [1] : vector<16x32xf32> to vector<16xf32>
    %89 = vector.shape_cast %88 : vector<16xf32> to vector<16x1xf32>
    %cst_28 = arith.constant 3.200000e+01 : f32
    %90 = vector.broadcast %cst_28 : f32 to vector<16x1xf32>
    %91 = arith.divf %89, %90 : vector<16x1xf32>
    %92 = arith.mulf %86, %86 : vector<16x1xf32>
    %93 = arith.subf %91, %92 : vector<16x1xf32>
    %94 = vector.broadcast %86 : vector<16x1xf32> to vector<16x32xf32>
    %95 = arith.subf %82, %94 : vector<16x32xf32>
    %cst_29 = arith.constant 9.99999974E-6 : f32
    %96 = vector.broadcast %cst_29 : f32 to vector<16x1xf32>
    %97 = arith.addf %93, %96 : vector<16x1xf32>
    %98 = math.rsqrt %97 : vector<16x1xf32>
    %99 = vector.broadcast %98 : vector<16x1xf32> to vector<16x32xf32>
    %100 = arith.mulf %95, %99 : vector<16x32xf32>
    %101 = vector.broadcast %18 : vector<1x32xf32> to vector<16x32xf32>
    %102 = arith.mulf %100, %101 : vector<16x32xf32>
    %103 = vector.broadcast %19 : vector<1x32xf32> to vector<16x32xf32>
    %104 = arith.addf %102, %103 : vector<16x32xf32>
    %cst_30 = arith.constant dense<0.000000e+00> : vector<16x64xf32>
    %105 = tpu.matmul %104, %9, %cst_30 {dimension_numbers = #tpu.dot_dimension_numbers<[1], [0], [0], [1], [0, 0, 1, 1], [], []>} : vector<16x32xf32>, vector<32x64xf32>, vector<16x64xf32> -> vector<16x64xf32>
    %106 = vector.broadcast %22 : vector<1x64xf32> to vector<16x64xf32>
    %107 = arith.addf %105, %106 : vector<16x64xf32>
    %cst_31 = arith.constant 0.000000e+00 : f32
    %108 = vector.broadcast %cst_31 : f32 to vector<16x64xf32>
    %109 = arith.maximumf %107, %108 : vector<16x64xf32>
    %cst_32 = arith.constant dense<0.000000e+00> : vector<16x32xf32>
    %110 = tpu.matmul %109, %12, %cst_32 {dimension_numbers = #tpu.dot_dimension_numbers<[1], [0], [0], [1], [0, 0, 1, 1], [], []>} : vector<16x64xf32>, vector<64x32xf32>, vector<16x32xf32> -> vector<16x32xf32>
    %111 = arith.addf %82, %110 : vector<16x32xf32>
    %112 = vector.broadcast %21 : vector<1x32xf32> to vector<16x32xf32>
    %113 = arith.addf %111, %112 : vector<16x32xf32>
    %c1 = arith.constant 1 : index
    %c0_33 = arith.constant 0 : index
    %c0_34 = arith.constant 0 : index
    %114 = vector.load %arg2[%c1, %c0_33, %c0_34] : memref<2x32x192xf32, #tpu.memory_space<vmem>>, vector<1x32x192xf32>
    %115 = vector.shape_cast %114 : vector<1x32x192xf32> to vector<32x192xf32>
    %116 = vector.extract_strided_slice %115 {offsets = [0, 0], sizes = [32, 96], strides = [1, 1]} : vector<32x192xf32> to vector<32x96xf32>
    %117 = vector.extract_strided_slice %115 {offsets = [0, 128], sizes = [32, 64], strides = [1, 1]} : vector<32x192xf32> to vector<32x64xf32>
    %c1_35 = arith.constant 1 : index
    %c0_36 = arith.constant 0 : index
    %c0_37 = arith.constant 0 : index
    %118 = vector.load %arg3[%c1_35, %c0_36, %c0_37] : memref<2x96x32xf32, #tpu.memory_space<vmem>>, vector<1x96x32xf32>
    %119 = vector.shape_cast %118 : vector<1x96x32xf32> to vector<96x32xf32>
    %120 = vector.extract_strided_slice %119 {offsets = [0, 0], sizes = [64, 32], strides = [1, 1]} : vector<96x32xf32> to vector<64x32xf32>
    %121 = vector.extract_strided_slice %119 {offsets = [64, 0], sizes = [32, 32], strides = [1, 1]} : vector<96x32xf32> to vector<32x32xf32>
    %c1_38 = arith.constant 1 : index
    %c0_39 = arith.constant 0 : index
    %c0_40 = arith.constant 0 : index
    %122 = vector.load %arg4[%c1_38, %c0_39, %c0_40] : memref<2x3x128xf32, #tpu.memory_space<vmem>>, vector<1x3x128xf32>
    %123 = vector.shape_cast %122 : vector<1x3x128xf32> to vector<3x128xf32>
    %124 = vector.extract_strided_slice %123 {offsets = [0, 0], sizes = [1, 32], strides = [1, 1]} : vector<3x128xf32> to vector<1x32xf32>
    %125 = vector.extract_strided_slice %123 {offsets = [0, 32], sizes = [1, 32], strides = [1, 1]} : vector<3x128xf32> to vector<1x32xf32>
    %126 = vector.extract_strided_slice %123 {offsets = [0, 64], sizes = [1, 32], strides = [1, 1]} : vector<3x128xf32> to vector<1x32xf32>
    %127 = vector.extract_strided_slice %123 {offsets = [0, 96], sizes = [1, 32], strides = [1, 1]} : vector<3x128xf32> to vector<1x32xf32>
    %128 = vector.extract_strided_slice %123 {offsets = [1, 0], sizes = [1, 32], strides = [1, 1]} : vector<3x128xf32> to vector<1x32xf32>
    %129 = vector.extract_strided_slice %123 {offsets = [1, 32], sizes = [1, 32], strides = [1, 1]} : vector<3x128xf32> to vector<1x32xf32>
    %130 = vector.extract_strided_slice %123 {offsets = [1, 64], sizes = [1, 64], strides = [1, 1]} : vector<3x128xf32> to vector<1x64xf32>
    %131 = vector.extract_strided_slice %123 {offsets = [2, 0], sizes = [1, 96], strides = [1, 1]} : vector<3x128xf32> to vector<1x96xf32>
    %cst_41 = arith.constant dense<0.000000e+00> : vector<16xf32>
    %132 = vector.multi_reduction <add>, %113, %cst_41 [1] : vector<16x32xf32> to vector<16xf32>
    %133 = vector.shape_cast %132 : vector<16xf32> to vector<16x1xf32>
    %cst_42 = arith.constant 3.200000e+01 : f32
    %134 = vector.broadcast %cst_42 : f32 to vector<16x1xf32>
    %135 = arith.divf %133, %134 : vector<16x1xf32>
    %136 = arith.mulf %113, %113 : vector<16x32xf32>
    %cst_43 = arith.constant dense<0.000000e+00> : vector<16xf32>
    %137 = vector.multi_reduction <add>, %136, %cst_43 [1] : vector<16x32xf32> to vector<16xf32>
    %138 = vector.shape_cast %137 : vector<16xf32> to vector<16x1xf32>
    %cst_44 = arith.constant 3.200000e+01 : f32
    %139 = vector.broadcast %cst_44 : f32 to vector<16x1xf32>
    %140 = arith.divf %138, %139 : vector<16x1xf32>
    %141 = arith.mulf %135, %135 : vector<16x1xf32>
    %142 = arith.subf %140, %141 : vector<16x1xf32>
    %143 = vector.broadcast %135 : vector<16x1xf32> to vector<16x32xf32>
    %144 = arith.subf %113, %143 : vector<16x32xf32>
    %cst_45 = arith.constant 9.99999974E-6 : f32
    %145 = vector.broadcast %cst_45 : f32 to vector<16x1xf32>
    %146 = arith.addf %142, %145 : vector<16x1xf32>
    %147 = math.rsqrt %146 : vector<16x1xf32>
    %148 = vector.broadcast %147 : vector<16x1xf32> to vector<16x32xf32>
    %149 = arith.mulf %144, %148 : vector<16x32xf32>
    %150 = vector.broadcast %124 : vector<1x32xf32> to vector<16x32xf32>
    %151 = arith.mulf %149, %150 : vector<16x32xf32>
    %152 = vector.broadcast %125 : vector<1x32xf32> to vector<16x32xf32>
    %153 = arith.addf %151, %152 : vector<16x32xf32>
    %cst_46 = arith.constant dense<0.000000e+00> : vector<16x96xf32>
    %154 = tpu.matmul %153, %116, %cst_46 {dimension_numbers = #tpu.dot_dimension_numbers<[1], [0], [0], [1], [0, 0, 1, 1], [], []>} : vector<16x32xf32>, vector<32x96xf32>, vector<16x96xf32> -> vector<16x96xf32>
    %155 = vector.broadcast %131 : vector<1x96xf32> to vector<16x96xf32>
    %156 = arith.addf %154, %155 : vector<16x96xf32>
    %157 = vector.extract_strided_slice %156 {offsets = [0, 0], sizes = [16, 32], strides = [1, 1]} : vector<16x96xf32> to vector<16x32xf32>
    %158 = vector.shape_cast %157 : vector<16x32xf32> to vector<16x4x8xf32>
    %159 = tpu.transpose %158, [1, 0, 2] : vector<16x4x8xf32> -> vector<4x16x8xf32>
    %160 = vector.extract_strided_slice %156 {offsets = [0, 32], sizes = [16, 32], strides = [1, 1]} : vector<16x96xf32> to vector<16x32xf32>
    %161 = vector.shape_cast %160 : vector<16x32xf32> to vector<16x4x8xf32>
    %162 = tpu.transpose %161, [1, 0, 2] : vector<16x4x8xf32> -> vector<4x16x8xf32>
    %163 = vector.extract_strided_slice %156 {offsets = [0, 64], sizes = [16, 32], strides = [1, 1]} : vector<16x96xf32> to vector<16x32xf32>
    %164 = vector.shape_cast %163 : vector<16x32xf32> to vector<16x4x8xf32>
    %165 = tpu.transpose %164, [1, 0, 2] : vector<16x4x8xf32> -> vector<4x16x8xf32>
    "tpu.trace_start"() <{level = 10 : i32, message = "hqd,hkd->hqk"}> : () -> ()
    %cst_47 = arith.constant dense<0.000000e+00> : vector<4x16x16xf32>
    %166 = tpu.matmul %159, %162, %cst_47 {dimension_numbers = #tpu.dot_dimension_numbers<[2], [2], [1], [1], [0, 0, 0, 1, 1, 1], [0], [0]>} : vector<4x16x8xf32>, vector<4x16x8xf32>, vector<4x16x16xf32> -> vector<4x16x16xf32>
    "tpu.trace_stop"() : () -> ()
    %167 = vector.shape_cast %5 : vector<16x16xf32> to vector<1x16x16xf32>
    %168 = vector.broadcast %167 : vector<1x16x16xf32> to vector<4x16x16xf32>
    %169 = arith.addf %166, %168 : vector<4x16x16xf32>
    %cst_48 = arith.constant dense<0xFF800000> : vector<4x16xf32>
    %170 = vector.multi_reduction <maximumf>, %169, %cst_48 [2] : vector<4x16x16xf32> to vector<4x16xf32>
    %171 = vector.shape_cast %170 : vector<4x16xf32> to vector<4x16x1xf32>
    %172 = vector.broadcast %171 : vector<4x16x1xf32> to vector<4x16x16xf32>
    %173 = arith.subf %169, %172 : vector<4x16x16xf32>
    %174 = math.exp %173 : vector<4x16x16xf32>
    %cst_49 = arith.constant dense<0.000000e+00> : vector<4x16xf32>
    %175 = vector.multi_reduction <add>, %174, %cst_49 [2] : vector<4x16x16xf32> to vector<4x16xf32>
    %176 = vector.shape_cast %175 : vector<4x16xf32> to vector<4x16x1xf32>
    %cst_50 = arith.constant 1.000000e+00 : f32
    %177 = vector.broadcast %cst_50 : f32 to vector<4x16x1xf32>
    %178 = arith.divf %177, %176 : vector<4x16x1xf32>
    %179 = vector.broadcast %178 : vector<4x16x1xf32> to vector<4x16x16xf32>
    %180 = arith.mulf %174, %179 : vector<4x16x16xf32>
    %181 = vector.shape_cast %1 : vector<16x16xf32> to vector<1x16x16xf32>
    %182 = vector.broadcast %181 : vector<1x16x16xf32> to vector<4x16x16xf32>
    %183 = arith.mulf %180, %182 : vector<4x16x16xf32>
    "tpu.trace_start"() <{level = 10 : i32, message = "hqk,hkd->hqd"}> : () -> ()
    %cst_51 = arith.constant dense<0.000000e+00> : vector<4x16x8xf32>
    %184 = tpu.matmul %183, %165, %cst_51 {dimension_numbers = #tpu.dot_dimension_numbers<[2], [1], [1], [2], [0, 0, 0, 1, 1, 2], [0], [0]>} : vector<4x16x16xf32>, vector<4x16x8xf32>, vector<4x16x8xf32> -> vector<4x16x8xf32>
    "tpu.trace_stop"() : () -> ()
    %185 = tpu.transpose %184, [1, 0, 2] : vector<4x16x8xf32> -> vector<16x4x8xf32>
    %186 = vector.shape_cast %185 : vector<16x4x8xf32> to vector<16x32xf32>
    %cst_52 = arith.constant dense<0.000000e+00> : vector<16x32xf32>
    %187 = tpu.matmul %186, %121, %cst_52 {dimension_numbers = #tpu.dot_dimension_numbers<[1], [0], [0], [1], [0, 0, 1, 1], [], []>} : vector<16x32xf32>, vector<32x32xf32>, vector<16x32xf32> -> vector<16x32xf32>
    %188 = arith.addf %113, %187 : vector<16x32xf32>
    %189 = vector.broadcast %128 : vector<1x32xf32> to vector<16x32xf32>
    %190 = arith.addf %188, %189 : vector<16x32xf32>
    %cst_53 = arith.constant dense<0.000000e+00> : vector<16xf32>
    %191 = vector.multi_reduction <add>, %190, %cst_53 [1] : vector<16x32xf32> to vector<16xf32>
    %192 = vector.shape_cast %191 : vector<16xf32> to vector<16x1xf32>
    %cst_54 = arith.constant 3.200000e+01 : f32
    %193 = vector.broadcast %cst_54 : f32 to vector<16x1xf32>
    %194 = arith.divf %192, %193 : vector<16x1xf32>
    %195 = arith.mulf %190, %190 : vector<16x32xf32>
    %cst_55 = arith.constant dense<0.000000e+00> : vector<16xf32>
    %196 = vector.multi_reduction <add>, %195, %cst_55 [1] : vector<16x32xf32> to vector<16xf32>
    %197 = vector.shape_cast %196 : vector<16xf32> to vector<16x1xf32>
    %cst_56 = arith.constant 3.200000e+01 : f32
    %198 = vector.broadcast %cst_56 : f32 to vector<16x1xf32>
    %199 = arith.divf %197, %198 : vector<16x1xf32>
    %200 = arith.mulf %194, %194 : vector<16x1xf32>
    %201 = arith.subf %199, %200 : vector<16x1xf32>
    %202 = vector.broadcast %194 : vector<16x1xf32> to vector<16x32xf32>
    %203 = arith.subf %190, %202 : vector<16x32xf32>
    %cst_57 = arith.constant 9.99999974E-6 : f32
    %204 = vector.broadcast %cst_57 : f32 to vector<16x1xf32>
    %205 = arith.addf %201, %204 : vector<16x1xf32>
    %206 = math.rsqrt %205 : vector<16x1xf32>
    %207 = vector.broadcast %206 : vector<16x1xf32> to vector<16x32xf32>
    %208 = arith.mulf %203, %207 : vector<16x32xf32>
    %209 = vector.broadcast %126 : vector<1x32xf32> to vector<16x32xf32>
    %210 = arith.mulf %208, %209 : vector<16x32xf32>
    %211 = vector.broadcast %127 : vector<1x32xf32> to vector<16x32xf32>
    %212 = arith.addf %210, %211 : vector<16x32xf32>
    %cst_58 = arith.constant dense<0.000000e+00> : vector<16x64xf32>
    %213 = tpu.matmul %212, %117, %cst_58 {dimension_numbers = #tpu.dot_dimension_numbers<[1], [0], [0], [1], [0, 0, 1, 1], [], []>} : vector<16x32xf32>, vector<32x64xf32>, vector<16x64xf32> -> vector<16x64xf32>
    %214 = vector.broadcast %130 : vector<1x64xf32> to vector<16x64xf32>
    %215 = arith.addf %213, %214 : vector<16x64xf32>
    %cst_59 = arith.constant 0.000000e+00 : f32
    %216 = vector.broadcast %cst_59 : f32 to vector<16x64xf32>
    %217 = arith.maximumf %215, %216 : vector<16x64xf32>
    %cst_60 = arith.constant dense<0.000000e+00> : vector<16x32xf32>
    %218 = tpu.matmul %217, %120, %cst_60 {dimension_numbers = #tpu.dot_dimension_numbers<[1], [0], [0], [1], [0, 0, 1, 1], [], []>} : vector<16x64xf32>, vector<64x32xf32>, vector<16x32xf32> -> vector<16x32xf32>
    %219 = arith.addf %190, %218 : vector<16x32xf32>
    %220 = vector.broadcast %129 : vector<1x32xf32> to vector<16x32xf32>
    %221 = arith.addf %219, %220 : vector<16x32xf32>
    %c0_61 = arith.constant 0 : index
    %c0_62 = arith.constant 0 : index
    %222 = vector.load %arg5[%c0_61, %c0_62] : memref<34x128xf32, #tpu.memory_space<vmem>>, vector<34x128xf32>
    %223 = vector.extract_strided_slice %222 {offsets = [0, 0], sizes = [1, 32], strides = [1, 1]} : vector<34x128xf32> to vector<1x32xf32>
    %224 = vector.extract_strided_slice %222 {offsets = [1, 0], sizes = [1, 32], strides = [1, 1]} : vector<34x128xf32> to vector<1x32xf32>
    %225 = vector.extract_strided_slice %222 {offsets = [2, 0], sizes = [32, 128], strides = [1, 1]} : vector<34x128xf32> to vector<32x128xf32>
    %cst_63 = arith.constant dense<0.000000e+00> : vector<16xf32>
    %226 = vector.multi_reduction <add>, %221, %cst_63 [1] : vector<16x32xf32> to vector<16xf32>
    %227 = vector.shape_cast %226 : vector<16xf32> to vector<16x1xf32>
    %cst_64 = arith.constant 3.200000e+01 : f32
    %228 = vector.broadcast %cst_64 : f32 to vector<16x1xf32>
    %229 = arith.divf %227, %228 : vector<16x1xf32>
    %230 = arith.mulf %221, %221 : vector<16x32xf32>
    %cst_65 = arith.constant dense<0.000000e+00> : vector<16xf32>
    %231 = vector.multi_reduction <add>, %230, %cst_65 [1] : vector<16x32xf32> to vector<16xf32>
    %232 = vector.shape_cast %231 : vector<16xf32> to vector<16x1xf32>
    %cst_66 = arith.constant 3.200000e+01 : f32
    %233 = vector.broadcast %cst_66 : f32 to vector<16x1xf32>
    %234 = arith.divf %232, %233 : vector<16x1xf32>
    %235 = arith.mulf %229, %229 : vector<16x1xf32>
    %236 = arith.subf %234, %235 : vector<16x1xf32>
    %237 = vector.broadcast %229 : vector<16x1xf32> to vector<16x32xf32>
    %238 = arith.subf %221, %237 : vector<16x32xf32>
    %cst_67 = arith.constant 9.99999974E-6 : f32
    %239 = vector.broadcast %cst_67 : f32 to vector<16x1xf32>
    %240 = arith.addf %236, %239 : vector<16x1xf32>
    %241 = math.rsqrt %240 : vector<16x1xf32>
    %242 = vector.broadcast %241 : vector<16x1xf32> to vector<16x32xf32>
    %243 = arith.mulf %238, %242 : vector<16x32xf32>
    %244 = vector.broadcast %223 : vector<1x32xf32> to vector<16x32xf32>
    %245 = arith.mulf %243, %244 : vector<16x32xf32>
    %246 = vector.broadcast %224 : vector<1x32xf32> to vector<16x32xf32>
    %247 = arith.addf %245, %246 : vector<16x32xf32>
    %cst_68 = arith.constant dense<0.000000e+00> : vector<16x128xf32>
    %248 = tpu.matmul %247, %225, %cst_68 {dimension_numbers = #tpu.dot_dimension_numbers<[1], [0], [0], [1], [0, 0, 1, 1], [], []>} : vector<16x32xf32>, vector<32x128xf32>, vector<16x128xf32> -> vector<16x128xf32>
    %c0_69 = arith.constant 0 : index
    %c0_70 = arith.constant 0 : index
    %249 = vector.load %arg6[%c0_69, %c0_70] : memref<16x128xf32, #tpu.memory_space<vmem>>, vector<16x128xf32>
    tpu.vector_store %arg6[%c0_69, %c0_70], %248 {strides = array<i32>} : memref<16x128xf32, #tpu.memory_space<vmem>>, vector<16x128xf32>,
    return
  }
}

</mosaic_0001>

<llo_original>
// kernel: gpt_forward_pallas.1
$region0: #{gpt_forward_pallas.1}
  #allocation0 [shape = 'u32[]', space=smem, size = 0x4, offset = 0x4, fixed_abs, tag = 'smem constant byte address 0x4 - core index']
  #allocation1 [shape = 'u32[144,128]{1,0:T(1,128)}', space=vmem, size = 0x12000, scoped, tag = 'internal scratch']
  %s0 = inlined_call_operand.vmem [shape: f32[16,32], index: 0, kind: input, shape index: {}]
  %s1 = inlined_call_operand.vmem [shape: f32[16,16], index: 1, kind: input, shape index: {}]
  %s2 = inlined_call_operand.vmem [shape: f32[2,32,192], index: 2, kind: input, shape index: {}]
  %s3 = inlined_call_operand.vmem [shape: f32[2,96,32], index: 3, kind: input, shape index: {}]
  %s4 = inlined_call_operand.vmem [shape: f32[2,3,128], index: 4, kind: input, shape index: {}]
  %s5 = inlined_call_operand.vmem [shape: f32[34,128], index: 5, kind: input, shape index: {}]
  %s6 = inlined_call_operand.vmem [shape: f32[16,128], index: 6, kind: output, shape index: {}]
  %s7 = sld [smem:[#allocation0]]
  $region34: #{gpt_forward_pallas.1} parent=0
    _
  %s9 = ssub.s32 1, %s7
  %s10 = scalar_select 0, %s9, %s7
  // Predicated region
  $region2: #{gpt_forward_pallas.1} parent=0 // pred_check
    _
  $region3: #{gpt_forward_pallas.1} parent=0 // pred_check_branch
    %12 = sbr.rel (0) target = $region5
  $region4: #{gpt_forward_pallas.1} parent=0 // pred_region
    _
  $region5: #{gpt_forward_pallas.1} parent=0 // pred_fallthru
    _
  // Predicated region
  $region6: #{gpt_forward_pallas.1} parent=0 // pred_check
    _
  $region7: #{gpt_forward_pallas.1} parent=0 // pred_check_branch
    %14 = sbr.rel (0) target = $region9
  $region8: #{gpt_forward_pallas.1} parent=0 // pred_region
    _
  $region9: #{gpt_forward_pallas.1} parent=0 // pred_fallthru
    _
  // Predicated region
  $region10: #{gpt_forward_pallas.1} parent=0 // pred_check
    _
  $region11: #{gpt_forward_pallas.1} parent=0 // pred_check_branch
    %16 = sbr.rel (0) target = $region13
  $region12: #{gpt_forward_pallas.1} parent=0 // pred_region
    _
  $region13: #{gpt_forward_pallas.1} parent=0 // pred_fallthru
    _
  // Predicated region
  $region14: #{gpt_forward_pallas.1} parent=0 // pred_check
    _
  $region15: #{gpt_forward_pallas.1} parent=0 // pred_check_branch
    %18 = sbr.rel (0) target = $region17
  $region16: #{gpt_forward_pallas.1} parent=0 // pred_region
    _
  $region17: #{gpt_forward_pallas.1} parent=0 // pred_fallthru
    _
  // Predicated region
  $region18: #{gpt_forward_pallas.1} parent=0 // pred_check
    _
  $region19: #{gpt_forward_pallas.1} parent=0 // pred_check_branch
    %20 = sbr.rel (0) target = $region21
  $region20: #{gpt_forward_pallas.1} parent=0 // pred_region
    _
  $region21: #{gpt_forward_pallas.1} parent=0 // pred_fallthru
    _
  // Predicated region
  $region22: #{gpt_forward_pallas.1} parent=0 // pred_check
    _
  $region23: #{gpt_forward_pallas.1} parent=0 // pred_check_branch
    %22 = sbr.rel (0) target = $region25
  $region24: #{gpt_forward_pallas.1} parent=0 // pred_region
    _
  $region25: #{gpt_forward_pallas.1} parent=0 // pred_fallthru
    _
  %v23 = vld [vmem:[%s0] sm:$0xff]
  %v24 = vld [vmem:[%s0 + $0x8] sm:$0xff]
  %v25 = vld [vmem:[%s1] sm:$0xff]
  %v26 = vld [vmem:[%s1 + $0x8] sm:$0xff]
  %v27 = vsub.f32 %v25, 1.0
  %v28 = vsub.f32 %v26, 1.0
  %v29 = vmul.f32 %v27, 1e+30
  %v30 = vmul.f32 %v28, 1e+30
  %v31 = vld [vmem:[%s2] sm:$0xff]
  %v32 = vld [vmem:[%s2 + $0x8] sm:$0xff]
  %v33 = vld [vmem:[%s2 + $0x10] sm:$0xff]
  %v34 = vld [vmem:[%s2 + $0x18] sm:$0xff]
  %v35 = vld [vmem:[%s2 + $0x20] sm:$0xff]
  %v36 = vld [vmem:[%s2 + $0x28] sm:$0xff]
  %v37 = vld [vmem:[%s2 + $0x30] sm:$0xff]
  %v38 = vld [vmem:[%s2 + $0x38] sm:$0xff]
  %v39 = vld [vmem:[%s3] sm:$0xff]
  %v40 = vld [vmem:[%s3 + $0x8] sm:$0xff]
  %v41 = vld [vmem:[%s3 + $0x10] sm:$0xff]
  %v42 = vld [vmem:[%s3 + $0x18] sm:$0xff]
  %v43 = vld [vmem:[%s3 + $0x20] sm:$0xff]
  %v44 = vld [vmem:[%s3 + $0x28] sm:$0xff]
  %v45 = vld [vmem:[%s3 + $0x30] sm:$0xff]
  %v46 = vld [vmem:[%s3 + $0x38] sm:$0xff]
  %v47 = vld [vmem:[%s3 + $0x40] sm:$0xff]
  %v48 = vld [vmem:[%s3 + $0x48] sm:$0xff]
  %v49 = vld [vmem:[%s3 + $0x50] sm:$0xff]
  %v50 = vld [vmem:[%s3 + $0x58] sm:$0xff]
  %v51 = vld [vmem:[%s4] sm:$0x7]
  %vm52 = vcmask 261120
  %v53 = vsel %vm52, %v23, 0.0
  %54 = vadd.xlane.f32.xlu0 %v53
  %v55 = vpop.xlane.xlu0 %54
  %v56 = vsel %vm52, %v24, 0.0
  %57 = vadd.xlane.f32.xlu0 %v56
  %v58 = vpop.xlane.xlu0 %57
  %v59 = vrcp.pop 32.0
  %v60 = vmul.f32 %v55, %v59
  %v61 = vmul.f32 %v58, %v59
  %v62 = vmul.f32 %v23, %v23
  %v63 = vmul.f32 %v24, %v24
  %v64 = vsel %vm52, %v62, 0.0
  %65 = vadd.xlane.f32.xlu0 %v64
  %v66 = vpop.xlane.xlu0 %65
  %v67 = vsel %vm52, %v63, 0.0
  %68 = vadd.xlane.f32.xlu0 %v67
  %v69 = vpop.xlane.xlu0 %68
  %v70 = vmul.f32 %v66, %v59
  %v71 = vmul.f32 %v69, %v59
  %v72 = vmul.f32 %v60, %v60
  %v73 = vmul.f32 %v61, %v61
  %v74 = vsub.f32 %v70, %v72
  %v75 = vsub.f32 %v71, %v73
  %v76 = vsub.f32 %v23, %v60
  %v77 = vsub.f32 %v24, %v61
  %v78 = vadd.f32 %v74, 1e-05
  %v79 = vadd.f32 %v75, 1e-05
  %v80 = vrsqrt.pop %v78
  %v81 = vrsqrt.pop %v79
  %v82 = vmul.f32 %v76, %v80
  %v83 = vmul.f32 %v77, %v81
  %v84 = vlaneseq
  %v85 = vshrl.u32 %v84, 7
  %v86 = vsub.s32 0, %v85
  %v87 = vrot.slane %v51, %v86
  %v88 = vmul.f32 %v82, %v87
  %v89 = vmul.f32 %v83, %v87
  %91 = vrot.lane.b32.xlu0 %v87, 96
  %v92 = vpop.permute.xlu0 %91
  %v94 = vadd.f32 %v88, %v92
  %v95 = vadd.f32 %v89, %v92
  %v96 = vlaneseq
  %v97 = vshrl.u32 %v96, 7
  %v98 = vsub.s32 2, %v97
  %v99 = vrot.slane %v51, %v98
  %v101 = vsel %vm52, %v94, 0
  %v104 = vsel %vm52, %v95, 0
  %106 = vmatprep.subr.mxu0 0.0
  %107 = vmatpush1.msra.mxu0 %v31
  %108 = vmatprep.subr.mxu0 0.0
  %109 = vmatpush1.msra.mxu0 %v33
  %110 = vmatprep.subr.mxu0 0.0
  %111 = vmatpush1.msra.mxu0 %v35
  %112 = vmatprep.subr.mxu0 0.0
  %113 = vmatpush1.msra.mxu0 %v37
  %114 = vmatprep.subr.mxu0 0.0
  %115 = vmatpush1.msra.mxu0 0.0
  %116 = vmatprep.subr.mxu0 0.0
  %117 = vmatpush1.msra.mxu0 0.0
  %118 = vmatprep.subr.mxu0 0.0
  %119 = vmatpush1.msra.mxu0 0.0
  %120 = vmatprep.subr.mxu0 0.0
  %121 = vmatpush1.msra.mxu0 0.0
  %122 = vmatprep.subr.mxu0 0.0
  %123 = vmatpush1.msra.mxu0 0.0
  %124 = vmatprep.subr.mxu0 0.0
  %125 = vmatpush1.msra.mxu0 0.0
  %126 = vmatprep.subr.mxu0 0.0
  %127 = vmatpush1.msra.mxu0 0.0
  %128 = vmatprep.subr.mxu0 0.0
  %129 = vmatpush1.msra.mxu0 0.0
  %130 = vmatprep.subr.mxu0 0.0
  %131 = vmatpush1.msra.mxu0 0.0
  %132 = vmatprep.subr.mxu0 0.0
  %133 = vmatpush1.msra.mxu0 0.0
  %134 = vmatprep.subr.mxu0 0.0
  %135 = vmatpush1.msra.mxu0 0.0
  %136 = vmatprep.subr.mxu0 0.0
  %137 = vmatpush1.msra.mxu0 0.0
  %138 = vmatprep.subr.mxu0 0.0
  %139 = vmatpush1.msra.mxu0 0.0
  %140 = vmatprep.subr.mxu0 0.0
  %141 = vmatpush1.msra.mxu0 0.0
  %142 = vmatprep.subr.mxu0 0.0
  %143 = vmatpush1.msra.mxu0 0.0
  %144 = vmatprep.subr.mxu0 0.0
  %145 = vmatpush1.msra.mxu0 0.0
  %146 = vmatprep.subr.mxu0 0.0
  %147 = vmatpush1.msra.mxu0 0.0
  %148 = vmatprep.subr.mxu0 0.0
  %149 = vmatpush1.msra.mxu0 0.0
  %150 = vmatprep.subr.mxu0 0.0
  %151 = vmatpush1.msra.mxu0 0.0
  %152 = vmatprep.subr.mxu0 0.0
  %153 = vmatpush1.msra.mxu0 0.0
  %154 = vmatprep.subr.mxu0 0.0
  %155 = vmatpush1.msra.mxu0 0.0
  %156 = vmatprep.subr.mxu0 0.0
  %157 = vmatpush1.msra.mxu0 0.0
  %158 = vmatprep.subr.mxu0 0.0
  %159 = vmatpush1.msra.mxu0 0.0
  %160 = vmatprep.subr.mxu0 0.0
  %161 = vmatpush1.msra.mxu0 0.0
  %162 = vmatprep.subr.mxu0 0.0
  %163 = vmatpush1.msra.mxu0 0.0
  %164 = vmatprep.subr.mxu0 0.0
  %165 = vmatpush1.msra.mxu0 0.0
  %166 = vmatprep.subr.mxu0 0.0
  %167 = vmatpush1.msra.mxu0 0.0
  %168 = vmatprep.subr.mxu0 0.0
  %169 = vmatpush1.msra.mxu0 0.0
  %170 = vmatprep.mubr.f32.mxu0 0.0
  %171 = vmatmul.mubr.f32.gmra.mrb[0].mxu0 %v101
  %v172 = vpop.f32.mrb[0].mxu0
  %v173 = vadd.f32 %v99, %v172
  %v174 = vpop.f32.mrb[0].mxu0
  %175 = vmatprep.mubr.f32.mxu0 0.0
  %176 = vmatmul.mubr.f32.gmra.mrb[0].mxu0 %v104
  %v177 = vpop.f32.mrb[0].mxu0
  %v178 = vadd.f32 %v99, %v177
  %v179 = vpop.f32.mrb[0].mxu0
  %180 = vdwg.mxu0
  %183 = vrot.lane.b32.xlu0 %v173, 120
  %v184 = vpop.permute.xlu0 %183
  %185 = vrot.lane.b32.xlu0 %v178, 120
  %v186 = vpop.permute.xlu0 %185
  %189 = vrot.lane.b32.xlu0 %v173, 112
  %v190 = vpop.permute.xlu0 %189
  %191 = vrot.lane.b32.xlu0 %v178, 112
  %v192 = vpop.permute.xlu0 %191
  %195 = vrot.lane.b32.xlu0 %v173, 104
  %v196 = vpop.permute.xlu0 %195
  %197 = vrot.lane.b32.xlu0 %v178, 104
  %v198 = vpop.permute.xlu0 %197
  %v201 = vcombine.low %v173, %v190
  %v202 = vcombine.high %v173, %v190
  %v204 = vunpack.c.l.s4 1983009808
  %v205 = vunpack.c.0.s8 %v204
  %v206 = vlaneseq
  %v207 = vshrl.u32 %v206, 7
  %v208 = vsub.s32 %v205, %v207
  %v209 = vrot.slane %v201, %v208
  %v211 = vunpack.c.l.s4 1983009808
  %v212 = vunpack.c.0.s8 %v211
  %v213 = vlaneseq
  %v214 = vshrl.u32 %v213, 7
  %v215 = vsub.s32 %v212, %v214
  %v216 = vrot.slane %v202, %v215
  %v217 = vcombine.low %v184, %v196
  %v218 = vcombine.high %v184, %v196
  %v220 = vunpack.c.l.s4 1983009808
  %v221 = vunpack.c.0.s8 %v220
  %v222 = vlaneseq
  %v223 = vshrl.u32 %v222, 7
  %v224 = vsub.s32 %v221, %v223
  %v225 = vrot.slane %v217, %v224
  %v227 = vunpack.c.l.s4 1983009808
  %v228 = vunpack.c.0.s8 %v227
  %v229 = vlaneseq
  %v230 = vshrl.u32 %v229, 7
  %v231 = vsub.s32 %v228, %v230
  %v232 = vrot.slane %v218, %v231
  %v233 = vcombine.low %v209, %v225
  %v234 = vcombine.high %v209, %v225
  %v236 = vunpack.c.l.s4 1934713408
  %v237 = vunpack.c.0.s8 %v236
  %v238 = vlaneseq
  %v239 = vshrl.u32 %v238, 7
  %v240 = vsub.s32 %v237, %v239
  %v241 = vrot.slane %v233, %v240
  %v243 = vunpack.c.l.s4 1934713408
  %v244 = vunpack.c.0.s8 %v243
  %v245 = vlaneseq
  %v246 = vshrl.u32 %v245, 7
  %v247 = vsub.s32 %v244, %v246
  %v248 = vrot.slane %v234, %v247
  %v249 = vcombine.low %v216, %v232
  %v250 = vcombine.high %v216, %v232
  %v252 = vunpack.c.l.s4 1934713408
  %v253 = vunpack.c.0.s8 %v252
  %v254 = vlaneseq
  %v255 = vshrl.u32 %v254, 7
  %v256 = vsub.s32 %v253, %v255
  %v257 = vrot.slane %v249, %v256
  %v259 = vunpack.c.l.s4 1934713408
  %v260 = vunpack.c.0.s8 %v259
  %v261 = vlaneseq
  %v262 = vshrl.u32 %v261, 7
  %v263 = vsub.s32 %v260, %v262
  %v264 = vrot.slane %v250, %v263
  %v265 = vcombine.high %v241, 0.0
  %v266 = vcombine.high %v248, 0.0
  %v267 = vcombine.high %v257, 0.0
  %v268 = vcombine.high %v264, 0.0
  %v269 = vcombine.low %v178, %v192
  %v270 = vcombine.high %v178, %v192
  %v272 = vunpack.c.l.s4 1983009808
  %v273 = vunpack.c.0.s8 %v272
  %v274 = vlaneseq
  %v275 = vshrl.u32 %v274, 7
  %v276 = vsub.s32 %v273, %v275
  %v277 = vrot.slane %v269, %v276
  %v279 = vunpack.c.l.s4 1983009808
  %v280 = vunpack.c.0.s8 %v279
  %v281 = vlaneseq
  %v282 = vshrl.u32 %v281, 7
  %v283 = vsub.s32 %v280, %v282
  %v284 = vrot.slane %v270, %v283
  %v285 = vcombine.low %v186, %v198
  %v286 = vcombine.high %v186, %v198
  %v288 = vunpack.c.l.s4 1983009808
  %v289 = vunpack.c.0.s8 %v288
  %v290 = vlaneseq
  %v291 = vshrl.u32 %v290, 7
  %v292 = vsub.s32 %v289, %v291
  %v293 = vrot.slane %v285, %v292
  %v295 = vunpack.c.l.s4 1983009808
  %v296 = vunpack.c.0.s8 %v295
  %v297 = vlaneseq
  %v298 = vshrl.u32 %v297, 7
  %v299 = vsub.s32 %v296, %v298
  %v300 = vrot.slane %v286, %v299
  %v301 = vcombine.low %v277, %v293
  %v302 = vcombine.high %v277, %v293
  %v304 = vunpack.c.l.s4 1934713408
  %v305 = vunpack.c.0.s8 %v304
  %v306 = vlaneseq
  %v307 = vshrl.u32 %v306, 7
  %v308 = vsub.s32 %v305, %v307
  %v309 = vrot.slane %v301, %v308
  %v311 = vunpack.c.l.s4 1934713408
  %v312 = vunpack.c.0.s8 %v311
  %v313 = vlaneseq
  %v314 = vshrl.u32 %v313, 7
  %v315 = vsub.s32 %v312, %v314
  %v316 = vrot.slane %v302, %v315
  %v317 = vcombine.low %v284, %v300
  %v318 = vcombine.high %v284, %v300
  %v320 = vunpack.c.l.s4 1934713408
  %v321 = vunpack.c.0.s8 %v320
  %v322 = vlaneseq
  %v323 = vshrl.u32 %v322, 7
  %v324 = vsub.s32 %v321, %v323
  %v325 = vrot.slane %v317, %v324
  %v327 = vunpack.c.l.s4 1934713408
  %v328 = vunpack.c.0.s8 %v327
  %v329 = vlaneseq
  %v330 = vshrl.u32 %v329, 7
  %v331 = vsub.s32 %v328, %v330
  %v332 = vrot.slane %v318, %v331
  %v333 = vcombine.high %v309, 0.0
  %v334 = vcombine.high %v316, 0.0
  %v335 = vcombine.high %v325, 0.0
  %v336 = vcombine.high %v332, 0.0
  %v337 = vcombine.low %v241, %v248
  %v339 = vunpack.c.l.s4 1983009808
  %v340 = vunpack.c.0.s8 %v339
  %v341 = vlaneseq
  %v342 = vshrl.u32 %v341, 7
  %v343 = vsub.s32 %v340, %v342
  %v344 = vrot.slane %v337, %v343
  %v345 = vcombine.low %v265, %v266
  %v347 = vunpack.c.l.s4 1983009808
  %v348 = vunpack.c.0.s8 %v347
  %v349 = vlaneseq
  %v350 = vshrl.u32 %v349, 7
  %v351 = vsub.s32 %v348, %v350
  %v352 = vrot.slane %v345, %v351
  %v353 = vcombine.low %v257, %v264
  %v355 = vunpack.c.l.s4 1983009808
  %v356 = vunpack.c.0.s8 %v355
  %v357 = vlaneseq
  %v358 = vshrl.u32 %v357, 7
  %v359 = vsub.s32 %v356, %v358
  %v360 = vrot.slane %v353, %v359
  %v361 = vcombine.low %v267, %v268
  %v363 = vunpack.c.l.s4 1983009808
  %v364 = vunpack.c.0.s8 %v363
  %v365 = vlaneseq
  %v366 = vshrl.u32 %v365, 7
  %v367 = vsub.s32 %v364, %v366
  %v368 = vrot.slane %v361, %v367
  %v369 = vcombine.low %v344, %v352
  %v370 = vcombine.high %v344, %v352
  %v372 = vunpack.c.l.s4 1934713408
  %v373 = vunpack.c.0.s8 %v372
  %v374 = vlaneseq
  %v375 = vshrl.u32 %v374, 7
  %v376 = vsub.s32 %v373, %v375
  %v377 = vrot.slane %v369, %v376
  %v379 = vunpack.c.l.s4 1934713408
  %v380 = vunpack.c.0.s8 %v379
  %v381 = vlaneseq
  %v382 = vshrl.u32 %v381, 7
  %v383 = vsub.s32 %v380, %v382
  %v384 = vrot.slane %v370, %v383
  %v385 = vcombine.low %v360, %v368
  %v386 = vcombine.high %v360, %v368
  %v388 = vunpack.c.l.s4 1934713408
  %v389 = vunpack.c.0.s8 %v388
  %v390 = vlaneseq
  %v391 = vshrl.u32 %v390, 7
  %v392 = vsub.s32 %v389, %v391
  %v393 = vrot.slane %v385, %v392
  %v395 = vunpack.c.l.s4 1934713408
  %v396 = vunpack.c.0.s8 %v395
  %v397 = vlaneseq
  %v398 = vshrl.u32 %v397, 7
  %v399 = vsub.s32 %v396, %v398
  %v400 = vrot.slane %v386, %v399
  %v401 = vcombine.low %v377, %v393
  %v402 = vcombine.high %v377, %v393
  %v403 = vcombine.low %v384, %v400
  %v404 = vcombine.high %v384, %v400
  %v405 = vcombine.low %v309, %v316
  %v407 = vunpack.c.l.s4 1983009808
  %v408 = vunpack.c.0.s8 %v407
  %v409 = vlaneseq
  %v410 = vshrl.u32 %v409, 7
  %v411 = vsub.s32 %v408, %v410
  %v412 = vrot.slane %v405, %v411
  %v413 = vcombine.low %v333, %v334
  %v415 = vunpack.c.l.s4 1983009808
  %v416 = vunpack.c.0.s8 %v415
  %v417 = vlaneseq
  %v418 = vshrl.u32 %v417, 7
  %v419 = vsub.s32 %v416, %v418
  %v420 = vrot.slane %v413, %v419
  %v421 = vcombine.low %v325, %v332
  %v423 = vunpack.c.l.s4 1983009808
  %v424 = vunpack.c.0.s8 %v423
  %v425 = vlaneseq
  %v426 = vshrl.u32 %v425, 7
  %v427 = vsub.s32 %v424, %v426
  %v428 = vrot.slane %v421, %v427
  %v429 = vcombine.low %v335, %v336
  %v431 = vunpack.c.l.s4 1983009808
  %v432 = vunpack.c.0.s8 %v431
  %v433 = vlaneseq
  %v434 = vshrl.u32 %v433, 7
  %v435 = vsub.s32 %v432, %v434
  %v436 = vrot.slane %v429, %v435
  %v437 = vcombine.low %v412, %v420
  %v438 = vcombine.high %v412, %v420
  %v440 = vunpack.c.l.s4 1934713408
  %v441 = vunpack.c.0.s8 %v440
  %v442 = vlaneseq
  %v443 = vshrl.u32 %v442, 7
  %v444 = vsub.s32 %v441, %v443
  %v445 = vrot.slane %v437, %v444
  %v447 = vunpack.c.l.s4 1934713408
  %v448 = vunpack.c.0.s8 %v447
  %v449 = vlaneseq
  %v450 = vshrl.u32 %v449, 7
  %v451 = vsub.s32 %v448, %v450
  %v452 = vrot.slane %v438, %v451
  %v453 = vcombine.low %v428, %v436
  %v454 = vcombine.high %v428, %v436
  %v456 = vunpack.c.l.s4 1934713408
  %v457 = vunpack.c.0.s8 %v456
  %v458 = vlaneseq
  %v459 = vshrl.u32 %v458, 7
  %v460 = vsub.s32 %v457, %v459
  %v461 = vrot.slane %v453, %v460
  %v463 = vunpack.c.l.s4 1934713408
  %v464 = vunpack.c.0.s8 %v463
  %v465 = vlaneseq
  %v466 = vshrl.u32 %v465, 7
  %v467 = vsub.s32 %v464, %v466
  %v468 = vrot.slane %v454, %v467
  %v469 = vcombine.low %v445, %v461
  %v470 = vcombine.high %v445, %v461
  %v471 = vcombine.low %v452, %v468
  %v472 = vcombine.high %v452, %v468
  %473 = vrot.lane.b32.xlu0 %v173, 96
  %v474 = vpop.permute.xlu0 %473
  %475 = vrot.lane.b32.xlu0 %v178, 96
  %v476 = vpop.permute.xlu0 %475
  %477 = vrot.lane.b32.xlu0 %v184, 96
  %v478 = vpop.permute.xlu0 %477
  %479 = vrot.lane.b32.xlu0 %v186, 96
  %v480 = vpop.permute.xlu0 %479
  %481 = vrot.lane.b32.xlu0 %v190, 96
  %v482 = vpop.permute.xlu0 %481
  %483 = vrot.lane.b32.xlu0 %v192, 96
  %v484 = vpop.permute.xlu0 %483
  %485 = vrot.lane.b32.xlu0 %v196, 96
  %v486 = vpop.permute.xlu0 %485
  %487 = vrot.lane.b32.xlu0 %v198, 96
  %v488 = vpop.permute.xlu0 %487
  %v497 = vcombine.low %v474, %v482
  %v498 = vcombine.high %v474, %v482
  %v500 = vunpack.c.l.s4 1983009808
  %v501 = vunpack.c.0.s8 %v500
  %v502 = vlaneseq
  %v503 = vshrl.u32 %v502, 7
  %v504 = vsub.s32 %v501, %v503
  %v505 = vrot.slane %v497, %v504
  %v507 = vunpack.c.l.s4 1983009808
  %v508 = vunpack.c.0.s8 %v507
  %v509 = vlaneseq
  %v510 = vshrl.u32 %v509, 7
  %v511 = vsub.s32 %v508, %v510
  %v512 = vrot.slane %v498, %v511
  %v513 = vcombine.low %v478, %v486
  %v514 = vcombine.high %v478, %v486
  %v516 = vunpack.c.l.s4 1983009808
  %v517 = vunpack.c.0.s8 %v516
  %v518 = vlaneseq
  %v519 = vshrl.u32 %v518, 7
  %v520 = vsub.s32 %v517, %v519
  %v521 = vrot.slane %v513, %v520
  %v523 = vunpack.c.l.s4 1983009808
  %v524 = vunpack.c.0.s8 %v523
  %v525 = vlaneseq
  %v526 = vshrl.u32 %v525, 7
  %v527 = vsub.s32 %v524, %v526
  %v528 = vrot.slane %v514, %v527
  %v529 = vcombine.low %v505, %v521
  %v530 = vcombine.high %v505, %v521
  %v532 = vunpack.c.l.s4 1934713408
  %v533 = vunpack.c.0.s8 %v532
  %v534 = vlaneseq
  %v535 = vshrl.u32 %v534, 7
  %v536 = vsub.s32 %v533, %v535
  %v537 = vrot.slane %v529, %v536
  %v539 = vunpack.c.l.s4 1934713408
  %v540 = vunpack.c.0.s8 %v539
  %v541 = vlaneseq
  %v542 = vshrl.u32 %v541, 7
  %v543 = vsub.s32 %v540, %v542
  %v544 = vrot.slane %v530, %v543
  %v545 = vcombine.low %v512, %v528
  %v546 = vcombine.high %v512, %v528
  %v548 = vunpack.c.l.s4 1934713408
  %v549 = vunpack.c.0.s8 %v548
  %v550 = vlaneseq
  %v551 = vshrl.u32 %v550, 7
  %v552 = vsub.s32 %v549, %v551
  %v553 = vrot.slane %v545, %v552
  %v555 = vunpack.c.l.s4 1934713408
  %v556 = vunpack.c.0.s8 %v555
  %v557 = vlaneseq
  %v558 = vshrl.u32 %v557, 7
  %v559 = vsub.s32 %v556, %v558
  %v560 = vrot.slane %v546, %v559
  %v561 = vcombine.high %v537, 0.0
  %v562 = vcombine.high %v544, 0.0
  %v563 = vcombine.high %v553, 0.0
  %v564 = vcombine.high %v560, 0.0
  %v565 = vcombine.low %v476, %v484
  %v566 = vcombine.high %v476, %v484
  %v568 = vunpack.c.l.s4 1983009808
  %v569 = vunpack.c.0.s8 %v568
  %v570 = vlaneseq
  %v571 = vshrl.u32 %v570, 7
  %v572 = vsub.s32 %v569, %v571
  %v573 = vrot.slane %v565, %v572
  %v575 = vunpack.c.l.s4 1983009808
  %v576 = vunpack.c.0.s8 %v575
  %v577 = vlaneseq
  %v578 = vshrl.u32 %v577, 7
  %v579 = vsub.s32 %v576, %v578
  %v580 = vrot.slane %v566, %v579
  %v581 = vcombine.low %v480, %v488
  %v582 = vcombine.high %v480, %v488
  %v584 = vunpack.c.l.s4 1983009808
  %v585 = vunpack.c.0.s8 %v584
  %v586 = vlaneseq
  %v587 = vshrl.u32 %v586, 7
  %v588 = vsub.s32 %v585, %v587
  %v589 = vrot.slane %v581, %v588
  %v591 = vunpack.c.l.s4 1983009808
  %v592 = vunpack.c.0.s8 %v591
  %v593 = vlaneseq
  %v594 = vshrl.u32 %v593, 7
  %v595 = vsub.s32 %v592, %v594
  %v596 = vrot.slane %v582, %v595
  %v597 = vcombine.low %v573, %v589
  %v598 = vcombine.high %v573, %v589
  %v600 = vunpack.c.l.s4 1934713408
  %v601 = vunpack.c.0.s8 %v600
  %v602 = vlaneseq
  %v603 = vshrl.u32 %v602, 7
  %v604 = vsub.s32 %v601, %v603
  %v605 = vrot.slane %v597, %v604
  %v607 = vunpack.c.l.s4 1934713408
  %v608 = vunpack.c.0.s8 %v607
  %v609 = vlaneseq
  %v610 = vshrl.u32 %v609, 7
  %v611 = vsub.s32 %v608, %v610
  %v612 = vrot.slane %v598, %v611
  %v613 = vcombine.low %v580, %v596
  %v614 = vcombine.high %v580, %v596
  %v616 = vunpack.c.l.s4 1934713408
  %v617 = vunpack.c.0.s8 %v616
  %v618 = vlaneseq
  %v619 = vshrl.u32 %v618, 7
  %v620 = vsub.s32 %v617, %v619
  %v621 = vrot.slane %v613, %v620
  %v623 = vunpack.c.l.s4 1934713408
  %v624 = vunpack.c.0.s8 %v623
  %v625 = vlaneseq
  %v626 = vshrl.u32 %v625, 7
  %v627 = vsub.s32 %v624, %v626
  %v628 = vrot.slane %v614, %v627
  %v629 = vcombine.high %v605, 0.0
  %v630 = vcombine.high %v612, 0.0
  %v631 = vcombine.high %v621, 0.0
  %v632 = vcombine.high %v628, 0.0
  %v633 = vcombine.low %v537, %v544
  %v635 = vunpack.c.l.s4 1983009808
  %v636 = vunpack.c.0.s8 %v635
  %v637 = vlaneseq
  %v638 = vshrl.u32 %v637, 7
  %v639 = vsub.s32 %v636, %v638
  %v640 = vrot.slane %v633, %v639
  %v641 = vcombine.low %v561, %v562
  %v643 = vunpack.c.l.s4 1983009808
  %v644 = vunpack.c.0.s8 %v643
  %v645 = vlaneseq
  %v646 = vshrl.u32 %v645, 7
  %v647 = vsub.s32 %v644, %v646
  %v648 = vrot.slane %v641, %v647
  %v649 = vcombine.low %v553, %v560
  %v651 = vunpack.c.l.s4 1983009808
  %v652 = vunpack.c.0.s8 %v651
  %v653 = vlaneseq
  %v654 = vshrl.u32 %v653, 7
  %v655 = vsub.s32 %v652, %v654
  %v656 = vrot.slane %v649, %v655
  %v657 = vcombine.low %v563, %v564
  %v659 = vunpack.c.l.s4 1983009808
  %v660 = vunpack.c.0.s8 %v659
  %v661 = vlaneseq
  %v662 = vshrl.u32 %v661, 7
  %v663 = vsub.s32 %v660, %v662
  %v664 = vrot.slane %v657, %v663
  %v665 = vcombine.low %v640, %v648
  %v666 = vcombine.high %v640, %v648
  %v668 = vunpack.c.l.s4 1934713408
  %v669 = vunpack.c.0.s8 %v668
  %v670 = vlaneseq
  %v671 = vshrl.u32 %v670, 7
  %v672 = vsub.s32 %v669, %v671
  %v673 = vrot.slane %v665, %v672
  %v675 = vunpack.c.l.s4 1934713408
  %v676 = vunpack.c.0.s8 %v675
  %v677 = vlaneseq
  %v678 = vshrl.u32 %v677, 7
  %v679 = vsub.s32 %v676, %v678
  %v680 = vrot.slane %v666, %v679
  %v681 = vcombine.low %v656, %v664
  %v682 = vcombine.high %v656, %v664
  %v684 = vunpack.c.l.s4 1934713408
  %v685 = vunpack.c.0.s8 %v684
  %v686 = vlaneseq
  %v687 = vshrl.u32 %v686, 7
  %v688 = vsub.s32 %v685, %v687
  %v689 = vrot.slane %v681, %v688
  %v691 = vunpack.c.l.s4 1934713408
  %v692 = vunpack.c.0.s8 %v691
  %v693 = vlaneseq
  %v694 = vshrl.u32 %v693, 7
  %v695 = vsub.s32 %v692, %v694
  %v696 = vrot.slane %v682, %v695
  %v697 = vcombine.low %v673, %v689
  %v698 = vcombine.high %v673, %v689
  %v699 = vcombine.low %v680, %v696
  %v700 = vcombine.high %v680, %v696
  %v701 = vcombine.low %v605, %v612
  %v703 = vunpack.c.l.s4 1983009808
  %v704 = vunpack.c.0.s8 %v703
  %v705 = vlaneseq
  %v706 = vshrl.u32 %v705, 7
  %v707 = vsub.s32 %v704, %v706
  %v708 = vrot.slane %v701, %v707
  %v709 = vcombine.low %v629, %v630
  %v711 = vunpack.c.l.s4 1983009808
  %v712 = vunpack.c.0.s8 %v711
  %v713 = vlaneseq
  %v714 = vshrl.u32 %v713, 7
  %v715 = vsub.s32 %v712, %v714
  %v716 = vrot.slane %v709, %v715
  %v717 = vcombine.low %v621, %v628
  %v719 = vunpack.c.l.s4 1983009808
  %v720 = vunpack.c.0.s8 %v719
  %v721 = vlaneseq
  %v722 = vshrl.u32 %v721, 7
  %v723 = vsub.s32 %v720, %v722
  %v724 = vrot.slane %v717, %v723
  %v725 = vcombine.low %v631, %v632
  %v727 = vunpack.c.l.s4 1983009808
  %v728 = vunpack.c.0.s8 %v727
  %v729 = vlaneseq
  %v730 = vshrl.u32 %v729, 7
  %v731 = vsub.s32 %v728, %v730
  %v732 = vrot.slane %v725, %v731
  %v733 = vcombine.low %v708, %v716
  %v734 = vcombine.high %v708, %v716
  %v736 = vunpack.c.l.s4 1934713408
  %v737 = vunpack.c.0.s8 %v736
  %v738 = vlaneseq
  %v739 = vshrl.u32 %v738, 7
  %v740 = vsub.s32 %v737, %v739
  %v741 = vrot.slane %v733, %v740
  %v743 = vunpack.c.l.s4 1934713408
  %v744 = vunpack.c.0.s8 %v743
  %v745 = vlaneseq
  %v746 = vshrl.u32 %v745, 7
  %v747 = vsub.s32 %v744, %v746
  %v748 = vrot.slane %v734, %v747
  %v749 = vcombine.low %v724, %v732
  %v750 = vcombine.high %v724, %v732
  %v752 = vunpack.c.l.s4 1934713408
  %v753 = vunpack.c.0.s8 %v752
  %v754 = vlaneseq
  %v755 = vshrl.u32 %v754, 7
  %v756 = vsub.s32 %v753, %v755
  %v757 = vrot.slane %v749, %v756
  %v759 = vunpack.c.l.s4 1934713408
  %v760 = vunpack.c.0.s8 %v759
  %v761 = vlaneseq
  %v762 = vshrl.u32 %v761, 7
  %v763 = vsub.s32 %v760, %v762
  %v764 = vrot.slane %v750, %v763
  %v765 = vcombine.low %v741, %v757
  %v766 = vcombine.high %v741, %v757
  %v767 = vcombine.low %v748, %v764
  %v768 = vcombine.high %v748, %v764
  %769 = vrot.lane.b32.xlu0 %v173, 64
  %v770 = vpop.permute.xlu0 %769
  %771 = vrot.lane.b32.xlu0 %v178, 64
  %v772 = vpop.permute.xlu0 %771
  %773 = vrot.lane.b32.xlu0 %v184, 64
  %v774 = vpop.permute.xlu0 %773
  %775 = vrot.lane.b32.xlu0 %v186, 64
  %v776 = vpop.permute.xlu0 %775
  %777 = vrot.lane.b32.xlu0 %v190, 64
  %v778 = vpop.permute.xlu0 %777
  %779 = vrot.lane.b32.xlu0 %v192, 64
  %v780 = vpop.permute.xlu0 %779
  %781 = vrot.lane.b32.xlu0 %v196, 64
  %v782 = vpop.permute.xlu0 %781
  %783 = vrot.lane.b32.xlu0 %v198, 64
  %v784 = vpop.permute.xlu0 %783
  %v793 = vcombine.low %v770, %v778
  %v794 = vcombine.high %v770, %v778
  %v796 = vunpack.c.l.s4 1983009808
  %v797 = vunpack.c.0.s8 %v796
  %v798 = vlaneseq
  %v799 = vshrl.u32 %v798, 7
  %v800 = vsub.s32 %v797, %v799
  %v801 = vrot.slane %v793, %v800
  %v803 = vunpack.c.l.s4 1983009808
  %v804 = vunpack.c.0.s8 %v803
  %v805 = vlaneseq
  %v806 = vshrl.u32 %v805, 7
  %v807 = vsub.s32 %v804, %v806
  %v808 = vrot.slane %v794, %v807
  %v809 = vcombine.low %v774, %v782
  %v810 = vcombine.high %v774, %v782
  %v812 = vunpack.c.l.s4 1983009808
  %v813 = vunpack.c.0.s8 %v812
  %v814 = vlaneseq
  %v815 = vshrl.u32 %v814, 7
  %v816 = vsub.s32 %v813, %v815
  %v817 = vrot.slane %v809, %v816
  %v819 = vunpack.c.l.s4 1983009808
  %v820 = vunpack.c.0.s8 %v819
  %v821 = vlaneseq
  %v822 = vshrl.u32 %v821, 7
  %v823 = vsub.s32 %v820, %v822
  %v824 = vrot.slane %v810, %v823
  %v825 = vcombine.low %v801, %v817
  %v826 = vcombine.high %v801, %v817
  %v828 = vunpack.c.l.s4 1934713408
  %v829 = vunpack.c.0.s8 %v828
  %v830 = vlaneseq
  %v831 = vshrl.u32 %v830, 7
  %v832 = vsub.s32 %v829, %v831
  %v833 = vrot.slane %v825, %v832
  %v835 = vunpack.c.l.s4 1934713408
  %v836 = vunpack.c.0.s8 %v835
  %v837 = vlaneseq
  %v838 = vshrl.u32 %v837, 7
  %v839 = vsub.s32 %v836, %v838
  %v840 = vrot.slane %v826, %v839
  %v841 = vcombine.low %v808, %v824
  %v842 = vcombine.high %v808, %v824
  %v844 = vunpack.c.l.s4 1934713408
  %v845 = vunpack.c.0.s8 %v844
  %v846 = vlaneseq
  %v847 = vshrl.u32 %v846, 7
  %v848 = vsub.s32 %v845, %v847
  %v849 = vrot.slane %v841, %v848
  %v851 = vunpack.c.l.s4 1934713408
  %v852 = vunpack.c.0.s8 %v851
  %v853 = vlaneseq
  %v854 = vshrl.u32 %v853, 7
  %v855 = vsub.s32 %v852, %v854
  %v856 = vrot.slane %v842, %v855
  %v857 = vcombine.high %v833, 0.0
  %v858 = vcombine.high %v840, 0.0
  %v859 = vcombine.high %v849, 0.0
  %v860 = vcombine.high %v856, 0.0
  %v861 = vcombine.low %v772, %v780
  %v862 = vcombine.high %v772, %v780
  %v864 = vunpack.c.l.s4 1983009808
  %v865 = vunpack.c.0.s8 %v864
  %v866 = vlaneseq
  %v867 = vshrl.u32 %v866, 7
  %v868 = vsub.s32 %v865, %v867
  %v869 = vrot.slane %v861, %v868
  %v871 = vunpack.c.l.s4 1983009808
  %v872 = vunpack.c.0.s8 %v871
  %v873 = vlaneseq
  %v874 = vshrl.u32 %v873, 7
  %v875 = vsub.s32 %v872, %v874
  %v876 = vrot.slane %v862, %v875
  %v877 = vcombine.low %v776, %v784
  %v878 = vcombine.high %v776, %v784
  %v880 = vunpack.c.l.s4 1983009808
  %v881 = vunpack.c.0.s8 %v880
  %v882 = vlaneseq
  %v883 = vshrl.u32 %v882, 7
  %v884 = vsub.s32 %v881, %v883
  %v885 = vrot.slane %v877, %v884
  %v887 = vunpack.c.l.s4 1983009808
  %v888 = vunpack.c.0.s8 %v887
  %v889 = vlaneseq
  %v890 = vshrl.u32 %v889, 7
  %v891 = vsub.s32 %v888, %v890
  %v892 = vrot.slane %v878, %v891
  %v893 = vcombine.low %v869, %v885
  %v894 = vcombine.high %v869, %v885
  %v896 = vunpack.c.l.s4 1934713408
  %v897 = vunpack.c.0.s8 %v896
  %v898 = vlaneseq
  %v899 = vshrl.u32 %v898, 7
  %v900 = vsub.s32 %v897, %v899
  %v901 = vrot.slane %v893, %v900
  %v903 = vunpack.c.l.s4 1934713408
  %v904 = vunpack.c.0.s8 %v903
  %v905 = vlaneseq
  %v906 = vshrl.u32 %v905, 7
  %v907 = vsub.s32 %v904, %v906
  %v908 = vrot.slane %v894, %v907
  %v909 = vcombine.low %v876, %v892
  %v910 = vcombine.high %v876, %v892
  %v912 = vunpack.c.l.s4 1934713408
  %v913 = vunpack.c.0.s8 %v912
  %v914 = vlaneseq
  %v915 = vshrl.u32 %v914, 7
  %v916 = vsub.s32 %v913, %v915
  %v917 = vrot.slane %v909, %v916
  %v919 = vunpack.c.l.s4 1934713408
  %v920 = vunpack.c.0.s8 %v919
  %v921 = vlaneseq
  %v922 = vshrl.u32 %v921, 7
  %v923 = vsub.s32 %v920, %v922
  %v924 = vrot.slane %v910, %v923
  %v925 = vcombine.high %v901, 0.0
  %v926 = vcombine.high %v908, 0.0
  %v927 = vcombine.high %v917, 0.0
  %v928 = vcombine.high %v924, 0.0
  %v929 = vcombine.low %v833, %v840
  %v931 = vunpack.c.l.s4 1983009808
  %v932 = vunpack.c.0.s8 %v931
  %v933 = vlaneseq
  %v934 = vshrl.u32 %v933, 7
  %v935 = vsub.s32 %v932, %v934
  %v936 = vrot.slane %v929, %v935
  %v937 = vcombine.low %v857, %v858
  %v939 = vunpack.c.l.s4 1983009808
  %v940 = vunpack.c.0.s8 %v939
  %v941 = vlaneseq
  %v942 = vshrl.u32 %v941, 7
  %v943 = vsub.s32 %v940, %v942
  %v944 = vrot.slane %v937, %v943
  %v945 = vcombine.low %v849, %v856
  %v947 = vunpack.c.l.s4 1983009808
  %v948 = vunpack.c.0.s8 %v947
  %v949 = vlaneseq
  %v950 = vshrl.u32 %v949, 7
  %v951 = vsub.s32 %v948, %v950
  %v952 = vrot.slane %v945, %v951
  %v953 = vcombine.low %v859, %v860
  %v955 = vunpack.c.l.s4 1983009808
  %v956 = vunpack.c.0.s8 %v955
  %v957 = vlaneseq
  %v958 = vshrl.u32 %v957, 7
  %v959 = vsub.s32 %v956, %v958
  %v960 = vrot.slane %v953, %v959
  %v961 = vcombine.low %v936, %v944
  %v962 = vcombine.high %v936, %v944
  %v964 = vunpack.c.l.s4 1934713408
  %v965 = vunpack.c.0.s8 %v964
  %v966 = vlaneseq
  %v967 = vshrl.u32 %v966, 7
  %v968 = vsub.s32 %v965, %v967
  %v969 = vrot.slane %v961, %v968
  %v971 = vunpack.c.l.s4 1934713408
  %v972 = vunpack.c.0.s8 %v971
  %v973 = vlaneseq
  %v974 = vshrl.u32 %v973, 7
  %v975 = vsub.s32 %v972, %v974
  %v976 = vrot.slane %v962, %v975
  %v977 = vcombine.low %v952, %v960
  %v978 = vcombine.high %v952, %v960
  %v980 = vunpack.c.l.s4 1934713408
  %v981 = vunpack.c.0.s8 %v980
  %v982 = vlaneseq
  %v983 = vshrl.u32 %v982, 7
  %v984 = vsub.s32 %v981, %v983
  %v985 = vrot.slane %v977, %v984
  %v987 = vunpack.c.l.s4 1934713408
  %v988 = vunpack.c.0.s8 %v987
  %v989 = vlaneseq
  %v990 = vshrl.u32 %v989, 7
  %v991 = vsub.s32 %v988, %v990
  %v992 = vrot.slane %v978, %v991
  %v993 = vcombine.low %v969, %v985
  %v994 = vcombine.high %v969, %v985
  %v995 = vcombine.low %v976, %v992
  %v996 = vcombine.high %v976, %v992
  %v997 = vcombine.low %v901, %v908
  %v999 = vunpack.c.l.s4 1983009808
  %v1000 = vunpack.c.0.s8 %v999
  %v1001 = vlaneseq
  %v1002 = vshrl.u32 %v1001, 7
  %v1003 = vsub.s32 %v1000, %v1002
  %v1004 = vrot.slane %v997, %v1003
  %v1005 = vcombine.low %v925, %v926
  %v1007 = vunpack.c.l.s4 1983009808
  %v1008 = vunpack.c.0.s8 %v1007
  %v1009 = vlaneseq
  %v1010 = vshrl.u32 %v1009, 7
  %v1011 = vsub.s32 %v1008, %v1010
  %v1012 = vrot.slane %v1005, %v1011
  %v1013 = vcombine.low %v917, %v924
  %v1015 = vunpack.c.l.s4 1983009808
  %v1016 = vunpack.c.0.s8 %v1015
  %v1017 = vlaneseq
  %v1018 = vshrl.u32 %v1017, 7
  %v1019 = vsub.s32 %v1016, %v1018
  %v1020 = vrot.slane %v1013, %v1019
  %v1021 = vcombine.low %v927, %v928
  %v1023 = vunpack.c.l.s4 1983009808
  %v1024 = vunpack.c.0.s8 %v1023
  %v1025 = vlaneseq
  %v1026 = vshrl.u32 %v1025, 7
  %v1027 = vsub.s32 %v1024, %v1026
  %v1028 = vrot.slane %v1021, %v1027
  %v1029 = vcombine.low %v1004, %v1012
  %v1030 = vcombine.high %v1004, %v1012
  %v1032 = vunpack.c.l.s4 1934713408
  %v1033 = vunpack.c.0.s8 %v1032
  %v1034 = vlaneseq
  %v1035 = vshrl.u32 %v1034, 7
  %v1036 = vsub.s32 %v1033, %v1035
  %v1037 = vrot.slane %v1029, %v1036
  %v1039 = vunpack.c.l.s4 1934713408
  %v1040 = vunpack.c.0.s8 %v1039
  %v1041 = vlaneseq
  %v1042 = vshrl.u32 %v1041, 7
  %v1043 = vsub.s32 %v1040, %v1042
  %v1044 = vrot.slane %v1030, %v1043
  %v1045 = vcombine.low %v1020, %v1028
  %v1046 = vcombine.high %v1020, %v1028
  %v1048 = vunpack.c.l.s4 1934713408
  %v1049 = vunpack.c.0.s8 %v1048
  %v1050 = vlaneseq
  %v1051 = vshrl.u32 %v1050, 7
  %v1052 = vsub.s32 %v1049, %v1051
  %v1053 = vrot.slane %v1045, %v1052
  %v1055 = vunpack.c.l.s4 1934713408
  %v1056 = vunpack.c.0.s8 %v1055
  %v1057 = vlaneseq
  %v1058 = vshrl.u32 %v1057, 7
  %v1059 = vsub.s32 %v1056, %v1058
  %v1060 = vrot.slane %v1046, %v1059
  %v1061 = vcombine.low %v1037, %v1053
  %v1062 = vcombine.high %v1037, %v1053
  %v1063 = vcombine.low %v1044, %v1060
  %v1064 = vcombine.high %v1044, %v1060
  %vm1065 = vcmask 64512
  %v1067 = vsel %vm1065, %v401, 0
  %v1070 = vsel %vm1065, %v469, 0
  %v1073 = vsel %vm1065, %v697, 0
  %v1076 = vsel %vm1065, %v765, 0
  %1078 = vmatprep.subr.mxu0 0.0
  %1079 = vmatpush1.xpose.msra.mxu0 %v1073
  %1080 = vmatprep.subr.mxu0 0.0
  %1081 = vmatpush1.xpose.msra.mxu0 %v1076
  %1082 = vmatprep.subr.mxu0 0.0
  %1083 = vmatpush1.xpose.msra.mxu0 0.0
  %1084 = vmatprep.subr.mxu0 0.0
  %1085 = vmatpush1.xpose.msra.mxu0 0.0
  %1086 = vmatprep.subr.mxu0 0.0
  %1087 = vmatpush1.xpose.msra.mxu0 0.0
  %1088 = vmatprep.subr.mxu0 0.0
  %1089 = vmatpush1.xpose.msra.mxu0 0.0
  %1090 = vmatprep.subr.mxu0 0.0
  %1091 = vmatpush1.xpose.msra.mxu0 0.0
  %1092 = vmatprep.subr.mxu0 0.0
  %1093 = vmatpush1.xpose.msra.mxu0 0.0
  %1094 = vmatprep.subr.mxu0 0.0
  %1095 = vmatpush1.xpose.msra.mxu0 0.0
  %1096 = vmatprep.subr.mxu0 0.0
  %1097 = vmatpush1.xpose.msra.mxu0 0.0
  %1098 = vmatprep.subr.mxu0 0.0
  %1099 = vmatpush1.xpose.msra.mxu0 0.0
  %1100 = vmatprep.subr.mxu0 0.0
  %1101 = vmatpush1.xpose.msra.mxu0 0.0
  %1102 = vmatprep.subr.mxu0 0.0
  %1103 = vmatpush1.xpose.msra.mxu0 0.0
  %1104 = vmatprep.subr.mxu0 0.0
  %1105 = vmatpush1.xpose.msra.mxu0 0.0
  %1106 = vmatprep.subr.mxu0 0.0
  %1107 = vmatpush1.xpose.msra.mxu0 0.0
  %1108 = vmatprep.subr.mxu0 0.0
  %1109 = vmatpush1.xpose.msra.mxu0 0.0
  %1110 = vmatprep.subr.mxu0 0.0
  %1111 = vmatpush1.xpose.msra.mxu0 0.0
  %1112 = vmatprep.subr.mxu0 0.0
  %1113 = vmatpush1.xpose.msra.mxu0 0.0
  %1114 = vmatprep.subr.mxu0 0.0
  %1115 = vmatpush1.xpose.msra.mxu0 0.0
  %1116 = vmatprep.subr.mxu0 0.0
  %1117 = vmatpush1.xpose.msra.mxu0 0.0
  %1118 = vmatprep.subr.mxu0 0.0
  %1119 = vmatpush1.xpose.msra.mxu0 0.0
  %1120 = vmatprep.subr.mxu0 0.0
  %1121 = vmatpush1.xpose.msra.mxu0 0.0
  %1122 = vmatprep.subr.mxu0 0.0
  %1123 = vmatpush1.xpose.msra.mxu0 0.0
  %1124 = vmatprep.subr.mxu0 0.0
  %1125 = vmatpush1.xpose.msra.mxu0 0.0
  %1126 = vmatprep.subr.mxu0 0.0
  %1127 = vmatpush1.xpose.msra.mxu0 0.0
  %1128 = vmatprep.subr.mxu0 0.0
  %1129 = vmatpush1.xpose.msra.mxu0 0.0
  %1130 = vmatprep.subr.mxu0 0.0
  %1131 = vmatpush1.xpose.msra.mxu0 0.0
  %1132 = vmatprep.subr.mxu0 0.0
  %1133 = vmatpush1.xpose.msra.mxu0 0.0
  %1134 = vmatprep.subr.mxu0 0.0
  %1135 = vmatpush1.xpose.msra.mxu0 0.0
  %1136 = vmatprep.subr.mxu0 0.0
  %1137 = vmatpush1.xpose.msra.mxu0 0.0
  %1138 = vmatprep.subr.mxu0 0.0
  %1139 = vmatpush1.xpose.msra.mxu0 0.0
  %1140 = vmatprep.subr.mxu0 0.0
  %1141 = vmatpush1.xpose.msra.mxu0 0.0
  %1142 = vmatprep.mubr.f32.mxu0 0.0
  %1143 = vmatmul.mubr.f32.gmra.mrb[0].mxu0 %v1067
  %v1144 = vpop.f32.mrb[0].mxu0
  %v1145 = vadd.f32 %v29, %v1144
  %v1146 = vpop.f32.mrb[0].mxu0
  %1147 = vmatprep.mubr.f32.mxu0 0.0
  %1148 = vmatmul.mubr.f32.gmra.mrb[0].mxu0 %v1070
  %v1149 = vpop.f32.mrb[0].mxu0
  %v1150 = vadd.f32 %v30, %v1149
  %v1151 = vpop.f32.mrb[0].mxu0
  %1152 = vdwg.mxu0
  %v1154 = vsel %vm1065, %v402, 0
  %v1157 = vsel %vm1065, %v470, 0
  %v1160 = vsel %vm1065, %v698, 0
  %v1163 = vsel %vm1065, %v766, 0
  %1165 = vmatprep.subr.mxu0 0.0
  %1166 = vmatpush1.xpose.msra.mxu0 %v1160
  %1167 = vmatprep.subr.mxu0 0.0
  %1168 = vmatpush1.xpose.msra.mxu0 %v1163
  %1169 = vmatprep.subr.mxu0 0.0
  %1170 = vmatpush1.xpose.msra.mxu0 0.0
  %1171 = vmatprep.subr.mxu0 0.0
  %1172 = vmatpush1.xpose.msra.mxu0 0.0
  %1173 = vmatprep.subr.mxu0 0.0
  %1174 = vmatpush1.xpose.msra.mxu0 0.0
  %1175 = vmatprep.subr.mxu0 0.0
  %1176 = vmatpush1.xpose.msra.mxu0 0.0
  %1177 = vmatprep.subr.mxu0 0.0
  %1178 = vmatpush1.xpose.msra.mxu0 0.0
  %1179 = vmatprep.subr.mxu0 0.0
  %1180 = vmatpush1.xpose.msra.mxu0 0.0
  %1181 = vmatprep.subr.mxu0 0.0
  %1182 = vmatpush1.xpose.msra.mxu0 0.0
  %1183 = vmatprep.subr.mxu0 0.0
  %1184 = vmatpush1.xpose.msra.mxu0 0.0
  %1185 = vmatprep.subr.mxu0 0.0
  %1186 = vmatpush1.xpose.msra.mxu0 0.0
  %1187 = vmatprep.subr.mxu0 0.0
  %1188 = vmatpush1.xpose.msra.mxu0 0.0
  %1189 = vmatprep.subr.mxu0 0.0
  %1190 = vmatpush1.xpose.msra.mxu0 0.0
  %1191 = vmatprep.subr.mxu0 0.0
  %1192 = vmatpush1.xpose.msra.mxu0 0.0
  %1193 = vmatprep.subr.mxu0 0.0
  %1194 = vmatpush1.xpose.msra.mxu0 0.0
  %1195 = vmatprep.subr.mxu0 0.0
  %1196 = vmatpush1.xpose.msra.mxu0 0.0
  %1197 = vmatprep.subr.mxu0 0.0
  %1198 = vmatpush1.xpose.msra.mxu0 0.0
  %1199 = vmatprep.subr.mxu0 0.0
  %1200 = vmatpush1.xpose.msra.mxu0 0.0
  %1201 = vmatprep.subr.mxu0 0.0
  %1202 = vmatpush1.xpose.msra.mxu0 0.0
  %1203 = vmatprep.subr.mxu0 0.0
  %1204 = vmatpush1.xpose.msra.mxu0 0.0
  %1205 = vmatprep.subr.mxu0 0.0
  %1206 = vmatpush1.xpose.msra.mxu0 0.0
  %1207 = vmatprep.subr.mxu0 0.0
  %1208 = vmatpush1.xpose.msra.mxu0 0.0
  %1209 = vmatprep.subr.mxu0 0.0
  %1210 = vmatpush1.xpose.msra.mxu0 0.0
  %1211 = vmatprep.subr.mxu0 0.0
  %1212 = vmatpush1.xpose.msra.mxu0 0.0
  %1213 = vmatprep.subr.mxu0 0.0
  %1214 = vmatpush1.xpose.msra.mxu0 0.0
  %1215 = vmatprep.subr.mxu0 0.0
  %1216 = vmatpush1.xpose.msra.mxu0 0.0
  %1217 = vmatprep.subr.mxu0 0.0
  %1218 = vmatpush1.xpose.msra.mxu0 0.0
  %1219 = vmatprep.subr.mxu0 0.0
  %1220 = vmatpush1.xpose.msra.mxu0 0.0
  %1221 = vmatprep.subr.mxu0 0.0
  %1222 = vmatpush1.xpose.msra.mxu0 0.0
  %1223 = vmatprep.subr.mxu0 0.0
  %1224 = vmatpush1.xpose.msra.mxu0 0.0
  %1225 = vmatprep.subr.mxu0 0.0
  %1226 = vmatpush1.xpose.msra.mxu0 0.0
  %1227 = vmatprep.subr.mxu0 0.0
  %1228 = vmatpush1.xpose.msra.mxu0 0.0
  %1229 = vmatprep.mubr.f32.mxu0 0.0
  %1230 = vmatmul.mubr.f32.gmra.mrb[0].mxu0 %v1154
  %v1231 = vpop.f32.mrb[0].mxu0
  %v1232 = vadd.f32 %v29, %v1231
  %v1233 = vpop.f32.mrb[0].mxu0
  %1234 = vmatprep.mubr.f32.mxu0 0.0
  %1235 = vmatmul.mubr.f32.gmra.mrb[0].mxu0 %v1157
  %v1236 = vpop.f32.mrb[0].mxu0
  %v1237 = vadd.f32 %v30, %v1236
  %v1238 = vpop.f32.mrb[0].mxu0
  %1239 = vdwg.mxu0
  %v1241 = vsel %vm1065, %v403, 0
  %v1244 = vsel %vm1065, %v471, 0
  %v1247 = vsel %vm1065, %v699, 0
  %v1250 = vsel %vm1065, %v767, 0
  %1252 = vmatprep.subr.mxu0 0.0
  %1253 = vmatpush1.xpose.msra.mxu0 %v1247
  %1254 = vmatprep.subr.mxu0 0.0
  %1255 = vmatpush1.xpose.msra.mxu0 %v1250
  %1256 = vmatprep.subr.mxu0 0.0
  %1257 = vmatpush1.xpose.msra.mxu0 0.0
  %1258 = vmatprep.subr.mxu0 0.0
  %1259 = vmatpush1.xpose.msra.mxu0 0.0
  %1260 = vmatprep.subr.mxu0 0.0
  %1261 = vmatpush1.xpose.msra.mxu0 0.0
  %1262 = vmatprep.subr.mxu0 0.0
  %1263 = vmatpush1.xpose.msra.mxu0 0.0
  %1264 = vmatprep.subr.mxu0 0.0
  %1265 = vmatpush1.xpose.msra.mxu0 0.0
  %1266 = vmatprep.subr.mxu0 0.0
  %1267 = vmatpush1.xpose.msra.mxu0 0.0
  %1268 = vmatprep.subr.mxu0 0.0
  %1269 = vmatpush1.xpose.msra.mxu0 0.0
  %1270 = vmatprep.subr.mxu0 0.0
  %1271 = vmatpush1.xpose.msra.mxu0 0.0
  %1272 = vmatprep.subr.mxu0 0.0
  %1273 = vmatpush1.xpose.msra.mxu0 0.0
  %1274 = vmatprep.subr.mxu0 0.0
  %1275 = vmatpush1.xpose.msra.mxu0 0.0
  %1276 = vmatprep.subr.mxu0 0.0
  %1277 = vmatpush1.xpose.msra.mxu0 0.0
  %1278 = vmatprep.subr.mxu0 0.0
  %1279 = vmatpush1.xpose.msra.mxu0 0.0
  %1280 = vmatprep.subr.mxu0 0.0
  %1281 = vmatpush1.xpose.msra.mxu0 0.0
  %1282 = vmatprep.subr.mxu0 0.0
  %1283 = vmatpush1.xpose.msra.mxu0 0.0
  %1284 = vmatprep.subr.mxu0 0.0
  %1285 = vmatpush1.xpose.msra.mxu0 0.0
  %1286 = vmatprep.subr.mxu0 0.0
  %1287 = vmatpush1.xpose.msra.mxu0 0.0
  %1288 = vmatprep.subr.mxu0 0.0
  %1289 = vmatpush1.xpose.msra.mxu0 0.0
  %1290 = vmatprep.subr.mxu0 0.0
  %1291 = vmatpush1.xpose.msra.mxu0 0.0
  %1292 = vmatprep.subr.mxu0 0.0
  %1293 = vmatpush1.xpose.msra.mxu0 0.0
  %1294 = vmatprep.subr.mxu0 0.0
  %1295 = vmatpush1.xpose.msra.mxu0 0.0
  %1296 = vmatprep.subr.mxu0 0.0
  %1297 = vmatpush1.xpose.msra.mxu0 0.0
  %1298 = vmatprep.subr.mxu0 0.0
  %1299 = vmatpush1.xpose.msra.mxu0 0.0
  %1300 = vmatprep.subr.mxu0 0.0
  %1301 = vmatpush1.xpose.msra.mxu0 0.0
  %1302 = vmatprep.subr.mxu0 0.0
  %1303 = vmatpush1.xpose.msra.mxu0 0.0
  %1304 = vmatprep.subr.mxu0 0.0
  %1305 = vmatpush1.xpose.msra.mxu0 0.0
  %1306 = vmatprep.subr.mxu0 0.0
  %1307 = vmatpush1.xpose.msra.mxu0 0.0
  %1308 = vmatprep.subr.mxu0 0.0
  %1309 = vmatpush1.xpose.msra.mxu0 0.0
  %1310 = vmatprep.subr.mxu0 0.0
  %1311 = vmatpush1.xpose.msra.mxu0 0.0
  %1312 = vmatprep.subr.mxu0 0.0
  %1313 = vmatpush1.xpose.msra.mxu0 0.0
  %1314 = vmatprep.subr.mxu0 0.0
  %1315 = vmatpush1.xpose.msra.mxu0 0.0
  %1316 = vmatprep.mubr.f32.mxu0 0.0
  %1317 = vmatmul.mubr.f32.gmra.mrb[0].mxu0 %v1241
  %v1318 = vpop.f32.mrb[0].mxu0
  %v1319 = vadd.f32 %v29, %v1318
  %v1320 = vpop.f32.mrb[0].mxu0
  %1321 = vmatprep.mubr.f32.mxu0 0.0
  %1322 = vmatmul.mubr.f32.gmra.mrb[0].mxu0 %v1244
  %v1323 = vpop.f32.mrb[0].mxu0
  %v1324 = vadd.f32 %v30, %v1323
  %v1325 = vpop.f32.mrb[0].mxu0
  %1326 = vdwg.mxu0
  %v1328 = vsel %vm1065, %v404, 0
  %v1331 = vsel %vm1065, %v472, 0
  %v1334 = vsel %vm1065, %v700, 0
  %v1337 = vsel %vm1065, %v768, 0
  %1339 = vmatprep.subr.mxu0 0.0
  %1340 = vmatpush1.xpose.msra.mxu0 %v1334
  %1341 = vmatprep.subr.mxu0 0.0
  %1342 = vmatpush1.xpose.msra.mxu0 %v1337
  %1343 = vmatprep.subr.mxu0 0.0
  %1344 = vmatpush1.xpose.msra.mxu0 0.0
  %1345 = vmatprep.subr.mxu0 0.0
  %1346 = vmatpush1.xpose.msra.mxu0 0.0
  %1347 = vmatprep.subr.mxu0 0.0
  %1348 = vmatpush1.xpose.msra.mxu0 0.0
  %1349 = vmatprep.subr.mxu0 0.0
  %1350 = vmatpush1.xpose.msra.mxu0 0.0
  %1351 = vmatprep.subr.mxu0 0.0
  %1352 = vmatpush1.xpose.msra.mxu0 0.0
  %1353 = vmatprep.subr.mxu0 0.0
  %1354 = vmatpush1.xpose.msra.mxu0 0.0
  %1355 = vmatprep.subr.mxu0 0.0
  %1356 = vmatpush1.xpose.msra.mxu0 0.0
  %1357 = vmatprep.subr.mxu0 0.0
  %1358 = vmatpush1.xpose.msra.mxu0 0.0
  %1359 = vmatprep.subr.mxu0 0.0
  %1360 = vmatpush1.xpose.msra.mxu0 0.0
  %1361 = vmatprep.subr.mxu0 0.0
  %1362 = vmatpush1.xpose.msra.mxu0 0.0
  %1363 = vmatprep.subr.mxu0 0.0
  %1364 = vmatpush1.xpose.msra.mxu0 0.0
  %1365 = vmatprep.subr.mxu0 0.0
  %1366 = vmatpush1.xpose.msra.mxu0 0.0
  %1367 = vmatprep.subr.mxu0 0.0
  %1368 = vmatpush1.xpose.msra.mxu0 0.0
  %1369 = vmatprep.subr.mxu0 0.0
  %1370 = vmatpush1.xpose.msra.mxu0 0.0
  %1371 = vmatprep.subr.mxu0 0.0
  %1372 = vmatpush1.xpose.msra.mxu0 0.0
  %1373 = vmatprep.subr.mxu0 0.0
  %1374 = vmatpush1.xpose.msra.mxu0 0.0
  %1375 = vmatprep.subr.mxu0 0.0
  %1376 = vmatpush1.xpose.msra.mxu0 0.0
  %1377 = vmatprep.subr.mxu0 0.0
  %1378 = vmatpush1.xpose.msra.mxu0 0.0
  %1379 = vmatprep.subr.mxu0 0.0
  %1380 = vmatpush1.xpose.msra.mxu0 0.0
  %1381 = vmatprep.subr.mxu0 0.0
  %1382 = vmatpush1.xpose.msra.mxu0 0.0
  %1383 = vmatprep.subr.mxu0 0.0
  %1384 = vmatpush1.xpose.msra.mxu0 0.0
  %1385 = vmatprep.subr.mxu0 0.0
  %1386 = vmatpush1.xpose.msra.mxu0 0.0
  %1387 = vmatprep.subr.mxu0 0.0
  %1388 = vmatpush1.xpose.msra.mxu0 0.0
  %1389 = vmatprep.subr.mxu0 0.0
  %1390 = vmatpush1.xpose.msra.mxu0 0.0
  %1391 = vmatprep.subr.mxu0 0.0
  %1392 = vmatpush1.xpose.msra.mxu0 0.0
  %1393 = vmatprep.subr.mxu0 0.0
  %1394 = vmatpush1.xpose.msra.mxu0 0.0
  %1395 = vmatprep.subr.mxu0 0.0
  %1396 = vmatpush1.xpose.msra.mxu0 0.0
  %1397 = vmatprep.subr.mxu0 0.0
  %1398 = vmatpush1.xpose.msra.mxu0 0.0
  %1399 = vmatprep.subr.mxu0 0.0
  %1400 = vmatpush1.xpose.msra.mxu0 0.0
  %1401 = vmatprep.subr.mxu0 0.0
  %1402 = vmatpush1.xpose.msra.mxu0 0.0
  %1403 = vmatprep.mubr.f32.mxu0 0.0
  %1404 = vmatmul.mubr.f32.gmra.mrb[0].mxu0 %v1328
  %v1405 = vpop.f32.mrb[0].mxu0
  %v1406 = vadd.f32 %v29, %v1405
  %v1407 = vpop.f32.mrb[0].mxu0
  %1408 = vmatprep.mubr.f32.mxu0 0.0
  %1409 = vmatmul.mubr.f32.gmra.mrb[0].mxu0 %v1331
  %v1410 = vpop.f32.mrb[0].mxu0
  %v1411 = vadd.f32 %v30, %v1410
  %v1412 = vpop.f32.mrb[0].mxu0
  %1413 = vdwg.mxu0
  %vm1414 = vcmask 130048
  %v1415 = vsel %vm1414, %v1145, -inf
  %1416 = vmax.xlane.f32.xlu0 %v1415
  %v1417 = vpop.xlane.xlu0 %1416
  %v1418 = vsel %vm1414, %v1150, -inf
  %1419 = vmax.xlane.f32.xlu0 %v1418
  %v1420 = vpop.xlane.xlu0 %1419
  %v1421 = vsel %vm1414, %v1232, -inf
  %1422 = vmax.xlane.f32.xlu0 %v1421
  %v1423 = vpop.xlane.xlu0 %1422
  %v1424 = vsel %vm1414, %v1237, -inf
  %1425 = vmax.xlane.f32.xlu0 %v1424
  %v1426 = vpop.xlane.xlu0 %1425
  %v1427 = vsel %vm1414, %v1319, -inf
  %1428 = vmax.xlane.f32.xlu0 %v1427
  %v1429 = vpop.xlane.xlu0 %1428
  %v1430 = vsel %vm1414, %v1324, -inf
  %1431 = vmax.xlane.f32.xlu0 %v1430
  %v1432 = vpop.xlane.xlu0 %1431
  %v1433 = vsel %vm1414, %v1406, -inf
  %1434 = vmax.xlane.f32.xlu0 %v1433
  %v1435 = vpop.xlane.xlu0 %1434
  %v1436 = vsel %vm1414, %v1411, -inf
  %1437 = vmax.xlane.f32.xlu0 %v1436
  %v1438 = vpop.xlane.xlu0 %1437
  %v1439 = vsub.f32 %v1145, %v1417
  %v1440 = vsub.f32 %v1150, %v1420
  %v1441 = vsub.f32 %v1232, %v1423
  %v1442 = vsub.f32 %v1237, %v1426
  %v1443 = vsub.f32 %v1319, %v1429
  %v1444 = vsub.f32 %v1324, %v1432
  %v1445 = vsub.f32 %v1406, %v1435
  %v1446 = vsub.f32 %v1411, %v1438
  %v1447 = vmul.f32 %v1439, 1.442695
  %v1448 = vpow.pop %v1447
  %v1449 = vmul.f32 %v1440, 1.442695
  %v1450 = vpow.pop %v1449
  %v1451 = vmul.f32 %v1441, 1.442695
  %v1452 = vpow.pop %v1451
  %v1453 = vmul.f32 %v1442, 1.442695
  %v1454 = vpow.pop %v1453
  %v1455 = vmul.f32 %v1443, 1.442695
  %v1456 = vpow.pop %v1455
  %v1457 = vmul.f32 %v1444, 1.442695
  %v1458 = vpow.pop %v1457
  %v1459 = vmul.f32 %v1445, 1.442695
  %v1460 = vpow.pop %v1459
  %v1461 = vmul.f32 %v1446, 1.442695
  %v1462 = vpow.pop %v1461
  %v1463 = vsel %vm1414, %v1448, 0.0
  %1464 = vadd.xlane.f32.xlu0 %v1463
  %v1465 = vpop.xlane.xlu0 %1464
  %v1466 = vsel %vm1414, %v1450, 0.0
  %1467 = vadd.xlane.f32.xlu0 %v1466
  %v1468 = vpop.xlane.xlu0 %1467
  %v1469 = vsel %vm1414, %v1452, 0.0
  %1470 = vadd.xlane.f32.xlu0 %v1469
  %v1471 = vpop.xlane.xlu0 %1470
  %v1472 = vsel %vm1414, %v1454, 0.0
  %1473 = vadd.xlane.f32.xlu0 %v1472
  %v1474 = vpop.xlane.xlu0 %1473
  %v1475 = vsel %vm1414, %v1456, 0.0
  %1476 = vadd.xlane.f32.xlu0 %v1475
  %v1477 = vpop.xlane.xlu0 %1476
  %v1478 = vsel %vm1414, %v1458, 0.0
  %1479 = vadd.xlane.f32.xlu0 %v1478
  %v1480 = vpop.xlane.xlu0 %1479
  %v1481 = vsel %vm1414, %v1460, 0.0
  %1482 = vadd.xlane.f32.xlu0 %v1481
  %v1483 = vpop.xlane.xlu0 %1482
  %v1484 = vsel %vm1414, %v1462, 0.0
  %1485 = vadd.xlane.f32.xlu0 %v1484
  %v1486 = vpop.xlane.xlu0 %1485
  %v1487 = vrcp.pop %v1465
  %v1488 = vmul.f32 1.0, %v1487
  %v1489 = vrcp.pop %v1468
  %v1490 = vmul.f32 1.0, %v1489
  %v1491 = vrcp.pop %v1471
  %v1492 = vmul.f32 1.0, %v1491
  %v1493 = vrcp.pop %v1474
  %v1494 = vmul.f32 1.0, %v1493
  %v1495 = vrcp.pop %v1477
  %v1496 = vmul.f32 1.0, %v1495
  %v1497 = vrcp.pop %v1480
  %v1498 = vmul.f32 1.0, %v1497
  %v1499 = vrcp.pop %v1483
  %v1500 = vmul.f32 1.0, %v1499
  %v1501 = vrcp.pop %v1486
  %v1502 = vmul.f32 1.0, %v1501
  %v1503 = vmul.f32 %v1448, %v1488
  %v1504 = vmul.f32 %v1450, %v1490
  %v1505 = vmul.f32 %v1452, %v1492
  %v1506 = vmul.f32 %v1454, %v1494
  %v1507 = vmul.f32 %v1456, %v1496
  %v1508 = vmul.f32 %v1458, %v1498
  %v1509 = vmul.f32 %v1460, %v1500
  %v1510 = vmul.f32 %v1462, %v1502
  %v1511 = vmul.f32 %v1503, %v25
  %v1512 = vmul.f32 %v1504, %v26
  %v1513 = vmul.f32 %v1505, %v25
  %v1514 = vmul.f32 %v1506, %v26
  %v1515 = vmul.f32 %v1507, %v25
  %v1516 = vmul.f32 %v1508, %v26
  %v1517 = vmul.f32 %v1509, %v25
  %v1518 = vmul.f32 %v1510, %v26
  %v1520 = vsel %vm1414, %v1511, 0
  %v1523 = vsel %vm1414, %v1512, 0
  %1525 = vmatprep.subr.mxu0 0.0
  %1526 = vmatpush1.msra.mxu0 %v993
  %1527 = vmatprep.subr.mxu0 0.0
  %1528 = vmatpush1.msra.mxu0 %v1061
  %1529 = vmatprep.subr.mxu0 0.0
  %1530 = vmatpush1.msra.mxu0 0.0
  %1531 = vmatprep.subr.mxu0 0.0
  %1532 = vmatpush1.msra.mxu0 0.0
  %1533 = vmatprep.subr.mxu0 0.0
  %1534 = vmatpush1.msra.mxu0 0.0
  %1535 = vmatprep.subr.mxu0 0.0
  %1536 = vmatpush1.msra.mxu0 0.0
  %1537 = vmatprep.subr.mxu0 0.0
  %1538 = vmatpush1.msra.mxu0 0.0
  %1539 = vmatprep.subr.mxu0 0.0
  %1540 = vmatpush1.msra.mxu0 0.0
  %1541 = vmatprep.subr.mxu0 0.0
  %1542 = vmatpush1.msra.mxu0 0.0
  %1543 = vmatprep.subr.mxu0 0.0
  %1544 = vmatpush1.msra.mxu0 0.0
  %1545 = vmatprep.subr.mxu0 0.0
  %1546 = vmatpush1.msra.mxu0 0.0
  %1547 = vmatprep.subr.mxu0 0.0
  %1548 = vmatpush1.msra.mxu0 0.0
  %1549 = vmatprep.subr.mxu0 0.0
  %1550 = vmatpush1.msra.mxu0 0.0
  %1551 = vmatprep.subr.mxu0 0.0
  %1552 = vmatpush1.msra.mxu0 0.0
  %1553 = vmatprep.subr.mxu0 0.0
  %1554 = vmatpush1.msra.mxu0 0.0
  %1555 = vmatprep.subr.mxu0 0.0
  %1556 = vmatpush1.msra.mxu0 0.0
  %1557 = vmatprep.subr.mxu0 0.0
  %1558 = vmatpush1.msra.mxu0 0.0
  %1559 = vmatprep.subr.mxu0 0.0
  %1560 = vmatpush1.msra.mxu0 0.0
  %1561 = vmatprep.subr.mxu0 0.0
  %1562 = vmatpush1.msra.mxu0 0.0
  %1563 = vmatprep.subr.mxu0 0.0
  %1564 = vmatpush1.msra.mxu0 0.0
  %1565 = vmatprep.subr.mxu0 0.0
  %1566 = vmatpush1.msra.mxu0 0.0
  %1567 = vmatprep.subr.mxu0 0.0
  %1568 = vmatpush1.msra.mxu0 0.0
  %1569 = vmatprep.subr.mxu0 0.0
  %1570 = vmatpush1.msra.mxu0 0.0
  %1571 = vmatprep.subr.mxu0 0.0
  %1572 = vmatpush1.msra.mxu0 0.0
  %1573 = vmatprep.subr.mxu0 0.0
  %1574 = vmatpush1.msra.mxu0 0.0
  %1575 = vmatprep.subr.mxu0 0.0
  %1576 = vmatpush1.msra.mxu0 0.0
  %1577 = vmatprep.subr.mxu0 0.0
  %1578 = vmatpush1.msra.mxu0 0.0
  %1579 = vmatprep.subr.mxu0 0.0
  %1580 = vmatpush1.msra.mxu0 0.0
  %1581 = vmatprep.subr.mxu0 0.0
  %1582 = vmatpush1.msra.mxu0 0.0
  %1583 = vmatprep.subr.mxu0 0.0
  %1584 = vmatpush1.msra.mxu0 0.0
  %1585 = vmatprep.subr.mxu0 0.0
  %1586 = vmatpush1.msra.mxu0 0.0
  %1587 = vmatprep.subr.mxu0 0.0
  %1588 = vmatpush1.msra.mxu0 0.0
  %1589 = vmatprep.mubr.f32.mxu0 0.0
  %1590 = vmatmul.mubr.f32.gmra.mrb[0].mxu0 %v1520
  %v1591 = vpop.f32.mrb[0].mxu0
  %v1592 = vadd.f32 0.0, %v1591
  %v1593 = vpop.f32.mrb[0].mxu0
  %1594 = vmatprep.mubr.f32.mxu0 0.0
  %1595 = vmatmul.mubr.f32.gmra.mrb[0].mxu0 %v1523
  %v1596 = vpop.f32.mrb[0].mxu0
  %v1597 = vadd.f32 0.0, %v1596
  %v1598 = vpop.f32.mrb[0].mxu0
  %1599 = vdwg.mxu0
  %v1601 = vsel %vm1414, %v1513, 0
  %v1604 = vsel %vm1414, %v1514, 0
  %1606 = vmatprep.subr.mxu0 0.0
  %1607 = vmatpush1.msra.mxu0 %v994
  %1608 = vmatprep.subr.mxu0 0.0
  %1609 = vmatpush1.msra.mxu0 %v1062
  %1610 = vmatprep.subr.mxu0 0.0
  %1611 = vmatpush1.msra.mxu0 0.0
  %1612 = vmatprep.subr.mxu0 0.0
  %1613 = vmatpush1.msra.mxu0 0.0
  %1614 = vmatprep.subr.mxu0 0.0
  %1615 = vmatpush1.msra.mxu0 0.0
  %1616 = vmatprep.subr.mxu0 0.0
  %1617 = vmatpush1.msra.mxu0 0.0
  %1618 = vmatprep.subr.mxu0 0.0
  %1619 = vmatpush1.msra.mxu0 0.0
  %1620 = vmatprep.subr.mxu0 0.0
  %1621 = vmatpush1.msra.mxu0 0.0
  %1622 = vmatprep.subr.mxu0 0.0
  %1623 = vmatpush1.msra.mxu0 0.0
  %1624 = vmatprep.subr.mxu0 0.0
  %1625 = vmatpush1.msra.mxu0 0.0
  %1626 = vmatprep.subr.mxu0 0.0
  %1627 = vmatpush1.msra.mxu0 0.0
  %1628 = vmatprep.subr.mxu0 0.0
  %1629 = vmatpush1.msra.mxu0 0.0
  %1630 = vmatprep.subr.mxu0 0.0
  %1631 = vmatpush1.msra.mxu0 0.0
  %1632 = vmatprep.subr.mxu0 0.0
  %1633 = vmatpush1.msra.mxu0 0.0
  %1634 = vmatprep.subr.mxu0 0.0
  %1635 = vmatpush1.msra.mxu0 0.0
  %1636 = vmatprep.subr.mxu0 0.0
  %1637 = vmatpush1.msra.mxu0 0.0
  %1638 = vmatprep.subr.mxu0 0.0
  %1639 = vmatpush1.msra.mxu0 0.0
  %1640 = vmatprep.subr.mxu0 0.0
  %1641 = vmatpush1.msra.mxu0 0.0
  %1642 = vmatprep.subr.mxu0 0.0
  %1643 = vmatpush1.msra.mxu0 0.0
  %1644 = vmatprep.subr.mxu0 0.0
  %1645 = vmatpush1.msra.mxu0 0.0
  %1646 = vmatprep.subr.mxu0 0.0
  %1647 = vmatpush1.msra.mxu0 0.0
  %1648 = vmatprep.subr.mxu0 0.0
  %1649 = vmatpush1.msra.mxu0 0.0
  %1650 = vmatprep.subr.mxu0 0.0
  %1651 = vmatpush1.msra.mxu0 0.0
  %1652 = vmatprep.subr.mxu0 0.0
  %1653 = vmatpush1.msra.mxu0 0.0
  %1654 = vmatprep.subr.mxu0 0.0
  %1655 = vmatpush1.msra.mxu0 0.0
  %1656 = vmatprep.subr.mxu0 0.0
  %1657 = vmatpush1.msra.mxu0 0.0
  %1658 = vmatprep.subr.mxu0 0.0
  %1659 = vmatpush1.msra.mxu0 0.0
  %1660 = vmatprep.subr.mxu0 0.0
  %1661 = vmatpush1.msra.mxu0 0.0
  %1662 = vmatprep.subr.mxu0 0.0
  %1663 = vmatpush1.msra.mxu0 0.0
  %1664 = vmatprep.subr.mxu0 0.0
  %1665 = vmatpush1.msra.mxu0 0.0
  %1666 = vmatprep.subr.mxu0 0.0
  %1667 = vmatpush1.msra.mxu0 0.0
  %1668 = vmatprep.subr.mxu0 0.0
  %1669 = vmatpush1.msra.mxu0 0.0
  %1670 = vmatprep.mubr.f32.mxu0 0.0
  %1671 = vmatmul.mubr.f32.gmra.mrb[0].mxu0 %v1601
  %v1672 = vpop.f32.mrb[0].mxu0
  %v1673 = vadd.f32 0.0, %v1672
  %v1674 = vpop.f32.mrb[0].mxu0
  %1675 = vmatprep.mubr.f32.mxu0 0.0
  %1676 = vmatmul.mubr.f32.gmra.mrb[0].mxu0 %v1604
  %v1677 = vpop.f32.mrb[0].mxu0
  %v1678 = vadd.f32 0.0, %v1677
  %v1679 = vpop.f32.mrb[0].mxu0
  %1680 = vdwg.mxu0
  %v1682 = vsel %vm1414, %v1515, 0
  %v1685 = vsel %vm1414, %v1516, 0
  %1687 = vmatprep.subr.mxu0 0.0
  %1688 = vmatpush1.msra.mxu0 %v995
  %1689 = vmatprep.subr.mxu0 0.0
  %1690 = vmatpush1.msra.mxu0 %v1063
  %1691 = vmatprep.subr.mxu0 0.0
  %1692 = vmatpush1.msra.mxu0 0.0
  %1693 = vmatprep.subr.mxu0 0.0
  %1694 = vmatpush1.msra.mxu0 0.0
  %1695 = vmatprep.subr.mxu0 0.0
  %1696 = vmatpush1.msra.mxu0 0.0
  %1697 = vmatprep.subr.mxu0 0.0
  %1698 = vmatpush1.msra.mxu0 0.0
  %1699 = vmatprep.subr.mxu0 0.0
  %1700 = vmatpush1.msra.mxu0 0.0
  %1701 = vmatprep.subr.mxu0 0.0
  %1702 = vmatpush1.msra.mxu0 0.0
  %1703 = vmatprep.subr.mxu0 0.0
  %1704 = vmatpush1.msra.mxu0 0.0
  %1705 = vmatprep.subr.mxu0 0.0
  %1706 = vmatpush1.msra.mxu0 0.0
  %1707 = vmatprep.subr.mxu0 0.0
  %1708 = vmatpush1.msra.mxu0 0.0
  %1709 = vmatprep.subr.mxu0 0.0
  %1710 = vmatpush1.msra.mxu0 0.0
  %1711 = vmatprep.subr.mxu0 0.0
  %1712 = vmatpush1.msra.mxu0 0.0
  %1713 = vmatprep.subr.mxu0 0.0
  %1714 = vmatpush1.msra.mxu0 0.0
  %1715 = vmatprep.subr.mxu0 0.0
  %1716 = vmatpush1.msra.mxu0 0.0
  %1717 = vmatprep.subr.mxu0 0.0
  %1718 = vmatpush1.msra.mxu0 0.0
  %1719 = vmatprep.subr.mxu0 0.0
  %1720 = vmatpush1.msra.mxu0 0.0
  %1721 = vmatprep.subr.mxu0 0.0
  %1722 = vmatpush1.msra.mxu0 0.0
  %1723 = vmatprep.subr.mxu0 0.0
  %1724 = vmatpush1.msra.mxu0 0.0
  %1725 = vmatprep.subr.mxu0 0.0
  %1726 = vmatpush1.msra.mxu0 0.0
  %1727 = vmatprep.subr.mxu0 0.0
  %1728 = vmatpush1.msra.mxu0 0.0
  %1729 = vmatprep.subr.mxu0 0.0
  %1730 = vmatpush1.msra.mxu0 0.0
  %1731 = vmatprep.subr.mxu0 0.0
  %1732 = vmatpush1.msra.mxu0 0.0
  %1733 = vmatprep.subr.mxu0 0.0
  %1734 = vmatpush1.msra.mxu0 0.0
  %1735 = vmatprep.subr.mxu0 0.0
  %1736 = vmatpush1.msra.mxu0 0.0
  %1737 = vmatprep.subr.mxu0 0.0
  %1738 = vmatpush1.msra.mxu0 0.0
  %1739 = vmatprep.subr.mxu0 0.0
  %1740 = vmatpush1.msra.mxu0 0.0
  %1741 = vmatprep.subr.mxu0 0.0
  %1742 = vmatpush1.msra.mxu0 0.0
  %1743 = vmatprep.subr.mxu0 0.0
  %1744 = vmatpush1.msra.mxu0 0.0
  %1745 = vmatprep.subr.mxu0 0.0
  %1746 = vmatpush1.msra.mxu0 0.0
  %1747 = vmatprep.subr.mxu0 0.0
  %1748 = vmatpush1.msra.mxu0 0.0
  %1749 = vmatprep.subr.mxu0 0.0
  %1750 = vmatpush1.msra.mxu0 0.0
  %1751 = vmatprep.mubr.f32.mxu0 0.0
  %1752 = vmatmul.mubr.f32.gmra.mrb[0].mxu0 %v1682
  %v1753 = vpop.f32.mrb[0].mxu0
  %v1754 = vadd.f32 0.0, %v1753
  %v1755 = vpop.f32.mrb[0].mxu0
  %1756 = vmatprep.mubr.f32.mxu0 0.0
  %1757 = vmatmul.mubr.f32.gmra.mrb[0].mxu0 %v1685
  %v1758 = vpop.f32.mrb[0].mxu0
  %v1759 = vadd.f32 0.0, %v1758
  %v1760 = vpop.f32.mrb[0].mxu0
  %1761 = vdwg.mxu0
  %v1763 = vsel %vm1414, %v1517, 0
  %v1766 = vsel %vm1414, %v1518, 0
  %1768 = vmatprep.subr.mxu0 0.0
  %1769 = vmatpush1.msra.mxu0 %v996
  %1770 = vmatprep.subr.mxu0 0.0
  %1771 = vmatpush1.msra.mxu0 %v1064
  %1772 = vmatprep.subr.mxu0 0.0
  %1773 = vmatpush1.msra.mxu0 0.0
  %1774 = vmatprep.subr.mxu0 0.0
  %1775 = vmatpush1.msra.mxu0 0.0
  %1776 = vmatprep.subr.mxu0 0.0
  %1777 = vmatpush1.msra.mxu0 0.0
  %1778 = vmatprep.subr.mxu0 0.0
  %1779 = vmatpush1.msra.mxu0 0.0
  %1780 = vmatprep.subr.mxu0 0.0
  %1781 = vmatpush1.msra.mxu0 0.0
  %1782 = vmatprep.subr.mxu0 0.0
  %1783 = vmatpush1.msra.mxu0 0.0
  %1784 = vmatprep.subr.mxu0 0.0
  %1785 = vmatpush1.msra.mxu0 0.0
  %1786 = vmatprep.subr.mxu0 0.0
  %1787 = vmatpush1.msra.mxu0 0.0
  %1788 = vmatprep.subr.mxu0 0.0
  %1789 = vmatpush1.msra.mxu0 0.0
  %1790 = vmatprep.subr.mxu0 0.0
  %1791 = vmatpush1.msra.mxu0 0.0
  %1792 = vmatprep.subr.mxu0 0.0
  %1793 = vmatpush1.msra.mxu0 0.0
  %1794 = vmatprep.subr.mxu0 0.0
  %1795 = vmatpush1.msra.mxu0 0.0
  %1796 = vmatprep.subr.mxu0 0.0
  %1797 = vmatpush1.msra.mxu0 0.0
  %1798 = vmatprep.subr.mxu0 0.0
  %1799 = vmatpush1.msra.mxu0 0.0
  %1800 = vmatprep.subr.mxu0 0.0
  %1801 = vmatpush1.msra.mxu0 0.0
  %1802 = vmatprep.subr.mxu0 0.0
  %1803 = vmatpush1.msra.mxu0 0.0
  %1804 = vmatprep.subr.mxu0 0.0
  %1805 = vmatpush1.msra.mxu0 0.0
  %1806 = vmatprep.subr.mxu0 0.0
  %1807 = vmatpush1.msra.mxu0 0.0
  %1808 = vmatprep.subr.mxu0 0.0
  %1809 = vmatpush1.msra.mxu0 0.0
  %1810 = vmatprep.subr.mxu0 0.0
  %1811 = vmatpush1.msra.mxu0 0.0
  %1812 = vmatprep.subr.mxu0 0.0
  %1813 = vmatpush1.msra.mxu0 0.0
  %1814 = vmatprep.subr.mxu0 0.0
  %1815 = vmatpush1.msra.mxu0 0.0
  %1816 = vmatprep.subr.mxu0 0.0
  %1817 = vmatpush1.msra.mxu0 0.0
  %1818 = vmatprep.subr.mxu0 0.0
  %1819 = vmatpush1.msra.mxu0 0.0
  %1820 = vmatprep.subr.mxu0 0.0
  %1821 = vmatpush1.msra.mxu0 0.0
  %1822 = vmatprep.subr.mxu0 0.0
  %1823 = vmatpush1.msra.mxu0 0.0
  %1824 = vmatprep.subr.mxu0 0.0
  %1825 = vmatpush1.msra.mxu0 0.0
  %1826 = vmatprep.subr.mxu0 0.0
  %1827 = vmatpush1.msra.mxu0 0.0
  %1828 = vmatprep.subr.mxu0 0.0
  %1829 = vmatpush1.msra.mxu0 0.0
  %1830 = vmatprep.subr.mxu0 0.0
  %1831 = vmatpush1.msra.mxu0 0.0
  %1832 = vmatprep.mubr.f32.mxu0 0.0
  %1833 = vmatmul.mubr.f32.gmra.mrb[0].mxu0 %v1763
  %v1834 = vpop.f32.mrb[0].mxu0
  %v1835 = vadd.f32 0.0, %v1834
  %v1836 = vpop.f32.mrb[0].mxu0
  %1837 = vmatprep.mubr.f32.mxu0 0.0
  %1838 = vmatmul.mubr.f32.gmra.mrb[0].mxu0 %v1766
  %v1839 = vpop.f32.mrb[0].mxu0
  %v1840 = vadd.f32 0.0, %v1839
  %v1841 = vpop.f32.mrb[0].mxu0
  %1842 = vdwg.mxu0
  %v1843 = vcombine.low %v1592, %v1754
  %v1844 = vcombine.high %v1592, %v1754
  %v1846 = vunpack.c.l.s4 1983009808
  %v1847 = vunpack.c.0.s8 %v1846
  %v1848 = vlaneseq
  %v1849 = vshrl.u32 %v1848, 7
  %v1850 = vsub.s32 %v1847, %v1849
  %v1851 = vrot.slane %v1843, %v1850
  %v1853 = vunpack.c.l.s4 1983009808
  %v1854 = vunpack.c.0.s8 %v1853
  %v1855 = vlaneseq
  %v1856 = vshrl.u32 %v1855, 7
  %v1857 = vsub.s32 %v1854, %v1856
  %v1858 = vrot.slane %v1844, %v1857
  %v1859 = vcombine.low %v1673, %v1835
  %v1860 = vcombine.high %v1673, %v1835
  %v1862 = vunpack.c.l.s4 1983009808
  %v1863 = vunpack.c.0.s8 %v1862
  %v1864 = vlaneseq
  %v1865 = vshrl.u32 %v1864, 7
  %v1866 = vsub.s32 %v1863, %v1865
  %v1867 = vrot.slane %v1859, %v1866
  %v1869 = vunpack.c.l.s4 1983009808
  %v1870 = vunpack.c.0.s8 %v1869
  %v1871 = vlaneseq
  %v1872 = vshrl.u32 %v1871, 7
  %v1873 = vsub.s32 %v1870, %v1872
  %v1874 = vrot.slane %v1860, %v1873
  %v1875 = vcombine.low %v1851, %v1867
  %v1876 = vcombine.high %v1851, %v1867
  %v1878 = vunpack.c.l.s4 1934713408
  %v1879 = vunpack.c.0.s8 %v1878
  %v1880 = vlaneseq
  %v1881 = vshrl.u32 %v1880, 7
  %v1882 = vsub.s32 %v1879, %v1881
  %v1883 = vrot.slane %v1875, %v1882
  %v1885 = vunpack.c.l.s4 1934713408
  %v1886 = vunpack.c.0.s8 %v1885
  %v1887 = vlaneseq
  %v1888 = vshrl.u32 %v1887, 7
  %v1889 = vsub.s32 %v1886, %v1888
  %v1890 = vrot.slane %v1876, %v1889
  %v1891 = vcombine.low %v1858, %v1874
  %v1892 = vcombine.high %v1858, %v1874
  %v1894 = vunpack.c.l.s4 1934713408
  %v1895 = vunpack.c.0.s8 %v1894
  %v1896 = vlaneseq
  %v1897 = vshrl.u32 %v1896, 7
  %v1898 = vsub.s32 %v1895, %v1897
  %v1899 = vrot.slane %v1891, %v1898
  %v1901 = vunpack.c.l.s4 1934713408
  %v1902 = vunpack.c.0.s8 %v1901
  %v1903 = vlaneseq
  %v1904 = vshrl.u32 %v1903, 7
  %v1905 = vsub.s32 %v1902, %v1904
  %v1906 = vrot.slane %v1892, %v1905
  %v1907 = vcombine.high %v1883, 0.0
  %v1908 = vcombine.high %v1890, 0.0
  %v1909 = vcombine.high %v1899, 0.0
  %v1910 = vcombine.high %v1906, 0.0
  %v1911 = vcombine.low %v1597, %v1759
  %v1912 = vcombine.high %v1597, %v1759
  %v1914 = vunpack.c.l.s4 1983009808
  %v1915 = vunpack.c.0.s8 %v1914
  %v1916 = vlaneseq
  %v1917 = vshrl.u32 %v1916, 7
  %v1918 = vsub.s32 %v1915, %v1917
  %v1919 = vrot.slane %v1911, %v1918
  %v1921 = vunpack.c.l.s4 1983009808
  %v1922 = vunpack.c.0.s8 %v1921
  %v1923 = vlaneseq
  %v1924 = vshrl.u32 %v1923, 7
  %v1925 = vsub.s32 %v1922, %v1924
  %v1926 = vrot.slane %v1912, %v1925
  %v1927 = vcombine.low %v1678, %v1840
  %v1928 = vcombine.high %v1678, %v1840
  %v1930 = vunpack.c.l.s4 1983009808
  %v1931 = vunpack.c.0.s8 %v1930
  %v1932 = vlaneseq
  %v1933 = vshrl.u32 %v1932, 7
  %v1934 = vsub.s32 %v1931, %v1933
  %v1935 = vrot.slane %v1927, %v1934
  %v1937 = vunpack.c.l.s4 1983009808
  %v1938 = vunpack.c.0.s8 %v1937
  %v1939 = vlaneseq
  %v1940 = vshrl.u32 %v1939, 7
  %v1941 = vsub.s32 %v1938, %v1940
  %v1942 = vrot.slane %v1928, %v1941
  %v1943 = vcombine.low %v1919, %v1935
  %v1944 = vcombine.high %v1919, %v1935
  %v1946 = vunpack.c.l.s4 1934713408
  %v1947 = vunpack.c.0.s8 %v1946
  %v1948 = vlaneseq
  %v1949 = vshrl.u32 %v1948, 7
  %v1950 = vsub.s32 %v1947, %v1949
  %v1951 = vrot.slane %v1943, %v1950
  %v1953 = vunpack.c.l.s4 1934713408
  %v1954 = vunpack.c.0.s8 %v1953
  %v1955 = vlaneseq
  %v1956 = vshrl.u32 %v1955, 7
  %v1957 = vsub.s32 %v1954, %v1956
  %v1958 = vrot.slane %v1944, %v1957
  %v1959 = vcombine.low %v1926, %v1942
  %v1960 = vcombine.high %v1926, %v1942
  %v1962 = vunpack.c.l.s4 1934713408
  %v1963 = vunpack.c.0.s8 %v1962
  %v1964 = vlaneseq
  %v1965 = vshrl.u32 %v1964, 7
  %v1966 = vsub.s32 %v1963, %v1965
  %v1967 = vrot.slane %v1959, %v1966
  %v1969 = vunpack.c.l.s4 1934713408
  %v1970 = vunpack.c.0.s8 %v1969
  %v1971 = vlaneseq
  %v1972 = vshrl.u32 %v1971, 7
  %v1973 = vsub.s32 %v1970, %v1972
  %v1974 = vrot.slane %v1960, %v1973
  %v1975 = vcombine.high %v1951, 0.0
  %v1976 = vcombine.high %v1958, 0.0
  %v1977 = vcombine.high %v1967, 0.0
  %v1978 = vcombine.high %v1974, 0.0
  %v1979 = vcombine.low %v1883, %v1890
  %v1981 = vunpack.c.l.s4 1983009808
  %v1982 = vunpack.c.0.s8 %v1981
  %v1983 = vlaneseq
  %v1984 = vshrl.u32 %v1983, 7
  %v1985 = vsub.s32 %v1982, %v1984
  %v1986 = vrot.slane %v1979, %v1985
  %v1987 = vcombine.low %v1907, %v1908
  %v1989 = vunpack.c.l.s4 1983009808
  %v1990 = vunpack.c.0.s8 %v1989
  %v1991 = vlaneseq
  %v1992 = vshrl.u32 %v1991, 7
  %v1993 = vsub.s32 %v1990, %v1992
  %v1994 = vrot.slane %v1987, %v1993
  %v1995 = vcombine.low %v1899, %v1906
  %v1997 = vunpack.c.l.s4 1983009808
  %v1998 = vunpack.c.0.s8 %v1997
  %v1999 = vlaneseq
  %v2000 = vshrl.u32 %v1999, 7
  %v2001 = vsub.s32 %v1998, %v2000
  %v2002 = vrot.slane %v1995, %v2001
  %v2003 = vcombine.low %v1909, %v1910
  %v2005 = vunpack.c.l.s4 1983009808
  %v2006 = vunpack.c.0.s8 %v2005
  %v2007 = vlaneseq
  %v2008 = vshrl.u32 %v2007, 7
  %v2009 = vsub.s32 %v2006, %v2008
  %v2010 = vrot.slane %v2003, %v2009
  %v2011 = vcombine.low %v1986, %v1994
  %v2012 = vcombine.high %v1986, %v1994
  %v2014 = vunpack.c.l.s4 1934713408
  %v2015 = vunpack.c.0.s8 %v2014
  %v2016 = vlaneseq
  %v2017 = vshrl.u32 %v2016, 7
  %v2018 = vsub.s32 %v2015, %v2017
  %v2019 = vrot.slane %v2011, %v2018
  %v2021 = vunpack.c.l.s4 1934713408
  %v2022 = vunpack.c.0.s8 %v2021
  %v2023 = vlaneseq
  %v2024 = vshrl.u32 %v2023, 7
  %v2025 = vsub.s32 %v2022, %v2024
  %v2026 = vrot.slane %v2012, %v2025
  %v2027 = vcombine.low %v2002, %v2010
  %v2028 = vcombine.high %v2002, %v2010
  %v2030 = vunpack.c.l.s4 1934713408
  %v2031 = vunpack.c.0.s8 %v2030
  %v2032 = vlaneseq
  %v2033 = vshrl.u32 %v2032, 7
  %v2034 = vsub.s32 %v2031, %v2033
  %v2035 = vrot.slane %v2027, %v2034
  %v2037 = vunpack.c.l.s4 1934713408
  %v2038 = vunpack.c.0.s8 %v2037
  %v2039 = vlaneseq
  %v2040 = vshrl.u32 %v2039, 7
  %v2041 = vsub.s32 %v2038, %v2040
  %v2042 = vrot.slane %v2028, %v2041
  %v2043 = vcombine.low %v2019, %v2035
  %v2044 = vcombine.high %v2019, %v2035
  %v2045 = vcombine.low %v2026, %v2042
  %v2046 = vcombine.high %v2026, %v2042
  %v2047 = vcombine.low %v1951, %v1958
  %v2049 = vunpack.c.l.s4 1983009808
  %v2050 = vunpack.c.0.s8 %v2049
  %v2051 = vlaneseq
  %v2052 = vshrl.u32 %v2051, 7
  %v2053 = vsub.s32 %v2050, %v2052
  %v2054 = vrot.slane %v2047, %v2053
  %v2055 = vcombine.low %v1975, %v1976
  %v2057 = vunpack.c.l.s4 1983009808
  %v2058 = vunpack.c.0.s8 %v2057
  %v2059 = vlaneseq
  %v2060 = vshrl.u32 %v2059, 7
  %v2061 = vsub.s32 %v2058, %v2060
  %v2062 = vrot.slane %v2055, %v2061
  %v2063 = vcombine.low %v1967, %v1974
  %v2065 = vunpack.c.l.s4 1983009808
  %v2066 = vunpack.c.0.s8 %v2065
  %v2067 = vlaneseq
  %v2068 = vshrl.u32 %v2067, 7
  %v2069 = vsub.s32 %v2066, %v2068
  %v2070 = vrot.slane %v2063, %v2069
  %v2071 = vcombine.low %v1977, %v1978
  %v2073 = vunpack.c.l.s4 1983009808
  %v2074 = vunpack.c.0.s8 %v2073
  %v2075 = vlaneseq
  %v2076 = vshrl.u32 %v2075, 7
  %v2077 = vsub.s32 %v2074, %v2076
  %v2078 = vrot.slane %v2071, %v2077
  %v2079 = vcombine.low %v2054, %v2062
  %v2080 = vcombine.high %v2054, %v2062
  %v2082 = vunpack.c.l.s4 1934713408
  %v2083 = vunpack.c.0.s8 %v2082
  %v2084 = vlaneseq
  %v2085 = vshrl.u32 %v2084, 7
  %v2086 = vsub.s32 %v2083, %v2085
  %v2087 = vrot.slane %v2079, %v2086
  %v2089 = vunpack.c.l.s4 1934713408
  %v2090 = vunpack.c.0.s8 %v2089
  %v2091 = vlaneseq
  %v2092 = vshrl.u32 %v2091, 7
  %v2093 = vsub.s32 %v2090, %v2092
  %v2094 = vrot.slane %v2080, %v2093
  %v2095 = vcombine.low %v2070, %v2078
  %v2096 = vcombine.high %v2070, %v2078
  %v2098 = vunpack.c.l.s4 1934713408
  %v2099 = vunpack.c.0.s8 %v2098
  %v2100 = vlaneseq
  %v2101 = vshrl.u32 %v2100, 7
  %v2102 = vsub.s32 %v2099, %v2101
  %v2103 = vrot.slane %v2095, %v2102
  %v2105 = vunpack.c.l.s4 1934713408
  %v2106 = vunpack.c.0.s8 %v2105
  %v2107 = vlaneseq
  %v2108 = vshrl.u32 %v2107, 7
  %v2109 = vsub.s32 %v2106, %v2108
  %v2110 = vrot.slane %v2096, %v2109
  %v2111 = vcombine.low %v2087, %v2103
  %v2112 = vcombine.high %v2087, %v2103
  %v2113 = vcombine.low %v2094, %v2110
  %v2114 = vcombine.high %v2094, %v2110
  %2117 = vrot.lane.b32.xlu0 %v2044, 8
  %v2118 = vpop.permute.xlu0 %2117
  %2119 = vrot.lane.b32.xlu0 %v2112, 8
  %v2120 = vpop.permute.xlu0 %2119
  %2125 = vrot.lane.b32.xlu0 %v2045, 16
  %v2126 = vpop.permute.xlu0 %2125
  %2127 = vrot.lane.b32.xlu0 %v2113, 16
  %v2128 = vpop.permute.xlu0 %2127
  %2133 = vrot.lane.b32.xlu0 %v2046, 24
  %v2134 = vpop.permute.xlu0 %2133
  %2135 = vrot.lane.b32.xlu0 %v2114, 24
  %v2136 = vpop.permute.xlu0 %2135
  %v2139 = vsel %vm1065, %v2043, %v2118
  %v2140 = vsel %vm1065, %v2111, %v2120
  %v2141 = vsel %vm1414, %v2139, %v2126
  %v2142 = vsel %vm1414, %v2140, %v2128
  %vm2143 = vcmask 195584
  %v2144 = vsel %vm2143, %v2141, %v2134
  %v2145 = vsel %vm2143, %v2142, %v2136
  %v2147 = vsel %vm52, %v2144, 0
  %v2150 = vsel %vm52, %v2145, 0
  %2152 = vmatprep.subr.mxu0 0.0
  %2153 = vmatpush1.msra.mxu0 %v47
  %2154 = vmatprep.subr.mxu0 0.0
  %2155 = vmatpush1.msra.mxu0 %v48
  %2156 = vmatprep.subr.mxu0 0.0
  %2157 = vmatpush1.msra.mxu0 %v49
  %2158 = vmatprep.subr.mxu0 0.0
  %2159 = vmatpush1.msra.mxu0 %v50
  %2160 = vmatprep.subr.mxu0 0.0
  %2161 = vmatpush1.msra.mxu0 0.0
  %2162 = vmatprep.subr.mxu0 0.0
  %2163 = vmatpush1.msra.mxu0 0.0
  %2164 = vmatprep.subr.mxu0 0.0
  %2165 = vmatpush1.msra.mxu0 0.0
  %2166 = vmatprep.subr.mxu0 0.0
  %2167 = vmatpush1.msra.mxu0 0.0
  %2168 = vmatprep.subr.mxu0 0.0
  %2169 = vmatpush1.msra.mxu0 0.0
  %2170 = vmatprep.subr.mxu0 0.0
  %2171 = vmatpush1.msra.mxu0 0.0
  %2172 = vmatprep.subr.mxu0 0.0
  %2173 = vmatpush1.msra.mxu0 0.0
  %2174 = vmatprep.subr.mxu0 0.0
  %2175 = vmatpush1.msra.mxu0 0.0
  %2176 = vmatprep.subr.mxu0 0.0
  %2177 = vmatpush1.msra.mxu0 0.0
  %2178 = vmatprep.subr.mxu0 0.0
  %2179 = vmatpush1.msra.mxu0 0.0
  %2180 = vmatprep.subr.mxu0 0.0
  %2181 = vmatpush1.msra.mxu0 0.0
  %2182 = vmatprep.subr.mxu0 0.0
  %2183 = vmatpush1.msra.mxu0 0.0
  %2184 = vmatprep.subr.mxu0 0.0
  %2185 = vmatpush1.msra.mxu0 0.0
  %2186 = vmatprep.subr.mxu0 0.0
  %2187 = vmatpush1.msra.mxu0 0.0
  %2188 = vmatprep.subr.mxu0 0.0
  %2189 = vmatpush1.msra.mxu0 0.0
  %2190 = vmatprep.subr.mxu0 0.0
  %2191 = vmatpush1.msra.mxu0 0.0
  %2192 = vmatprep.subr.mxu0 0.0
  %2193 = vmatpush1.msra.mxu0 0.0
  %2194 = vmatprep.subr.mxu0 0.0
  %2195 = vmatpush1.msra.mxu0 0.0
  %2196 = vmatprep.subr.mxu0 0.0
  %2197 = vmatpush1.msra.mxu0 0.0
  %2198 = vmatprep.subr.mxu0 0.0
  %2199 = vmatpush1.msra.mxu0 0.0
  %2200 = vmatprep.subr.mxu0 0.0
  %2201 = vmatpush1.msra.mxu0 0.0
  %2202 = vmatprep.subr.mxu0 0.0
  %2203 = vmatpush1.msra.mxu0 0.0
  %2204 = vmatprep.subr.mxu0 0.0
  %2205 = vmatpush1.msra.mxu0 0.0
  %2206 = vmatprep.subr.mxu0 0.0
  %2207 = vmatpush1.msra.mxu0 0.0
  %2208 = vmatprep.subr.mxu0 0.0
  %2209 = vmatpush1.msra.mxu0 0.0
  %2210 = vmatprep.subr.mxu0 0.0
  %2211 = vmatpush1.msra.mxu0 0.0
  %2212 = vmatprep.subr.mxu0 0.0
  %2213 = vmatpush1.msra.mxu0 0.0
  %2214 = vmatprep.subr.mxu0 0.0
  %2215 = vmatpush1.msra.mxu0 0.0
  %2216 = vmatprep.mubr.f32.mxu0 0.0
  %2217 = vmatmul.mubr.f32.gmra.mrb[0].mxu0 %v2147
  %v2218 = vpop.f32.mrb[0].mxu0
  %v2219 = vadd.f32 0.0, %v2218
  %v2220 = vpop.f32.mrb[0].mxu0
  %2221 = vmatprep.mubr.f32.mxu0 0.0
  %2222 = vmatmul.mubr.f32.gmra.mrb[0].mxu0 %v2150
  %v2223 = vpop.f32.mrb[0].mxu0
  %v2224 = vadd.f32 0.0, %v2223
  %v2225 = vpop.f32.mrb[0].mxu0
  %2226 = vdwg.mxu0
  %v2227 = vadd.f32 %v23, %v2219
  %v2228 = vadd.f32 %v24, %v2224
  %v2229 = vlaneseq
  %v2230 = vshrl.u32 %v2229, 7
  %v2231 = vsub.s32 1, %v2230
  %v2232 = vrot.slane %v51, %v2231
  %v2233 = vadd.f32 %v2227, %v2232
  %v2234 = vadd.f32 %v2228, %v2232
  %v2235 = vsel %vm52, %v2233, 0.0
  %2236 = vadd.xlane.f32.xlu0 %v2235
  %v2237 = vpop.xlane.xlu0 %2236
  %v2238 = vsel %vm52, %v2234, 0.0
  %2239 = vadd.xlane.f32.xlu0 %v2238
  %v2240 = vpop.xlane.xlu0 %2239
  %v2241 = vmul.f32 %v2237, %v59
  %v2242 = vmul.f32 %v2240, %v59
  %v2243 = vmul.f32 %v2233, %v2233
  %v2244 = vmul.f32 %v2234, %v2234
  %v2245 = vsel %vm52, %v2243, 0.0
  %2246 = vadd.xlane.f32.xlu0 %v2245
  %v2247 = vpop.xlane.xlu0 %2246
  %v2248 = vsel %vm52, %v2244, 0.0
  %2249 = vadd.xlane.f32.xlu0 %v2248
  %v2250 = vpop.xlane.xlu0 %2249
  %v2251 = vmul.f32 %v2247, %v59
  %v2252 = vmul.f32 %v2250, %v59
  %v2253 = vmul.f32 %v2241, %v2241
  %v2254 = vmul.f32 %v2242, %v2242
  %v2255 = vsub.f32 %v2251, %v2253
  %v2256 = vsub.f32 %v2252, %v2254
  %v2257 = vsub.f32 %v2233, %v2241
  %v2258 = vsub.f32 %v2234, %v2242
  %v2259 = vadd.f32 %v2255, 1e-05
  %v2260 = vadd.f32 %v2256, 1e-05
  %v2261 = vrsqrt.pop %v2259
  %v2262 = vrsqrt.pop %v2260
  %v2263 = vmul.f32 %v2257, %v2261
  %v2264 = vmul.f32 %v2258, %v2262
  %2265 = vrot.lane.b32.xlu0 %v87, 64
  %v2266 = vpop.permute.xlu0 %2265
  %v2268 = vmul.f32 %v2263, %v2266
  %v2269 = vmul.f32 %v2264, %v2266
  %2270 = vrot.lane.b32.xlu0 %v87, 32
  %v2271 = vpop.permute.xlu0 %2270
  %v2273 = vadd.f32 %v2268, %v2271
  %v2274 = vadd.f32 %v2269, %v2271
  %2276 = vrot.lane.b32.xlu0 %v2232, 64
  %v2277 = vpop.permute.xlu0 %2276
  %v2280 = vsel %vm52, %v2273, 0
  %v2283 = vsel %vm52, %v2274, 0
  %2285 = vmatprep.subr.mxu0 0.0
  %2286 = vmatpush1.msra.mxu0 %v32
  %2287 = vmatprep.subr.mxu0 0.0
  %2288 = vmatpush1.msra.mxu0 %v34
  %2289 = vmatprep.subr.mxu0 0.0
  %2290 = vmatpush1.msra.mxu0 %v36
  %2291 = vmatprep.subr.mxu0 0.0
  %2292 = vmatpush1.msra.mxu0 %v38
  %2293 = vmatprep.subr.mxu0 0.0
  %2294 = vmatpush1.msra.mxu0 0.0
  %2295 = vmatprep.subr.mxu0 0.0
  %2296 = vmatpush1.msra.mxu0 0.0
  %2297 = vmatprep.subr.mxu0 0.0
  %2298 = vmatpush1.msra.mxu0 0.0
  %2299 = vmatprep.subr.mxu0 0.0
  %2300 = vmatpush1.msra.mxu0 0.0
  %2301 = vmatprep.subr.mxu0 0.0
  %2302 = vmatpush1.msra.mxu0 0.0
  %2303 = vmatprep.subr.mxu0 0.0
  %2304 = vmatpush1.msra.mxu0 0.0
  %2305 = vmatprep.subr.mxu0 0.0
  %2306 = vmatpush1.msra.mxu0 0.0
  %2307 = vmatprep.subr.mxu0 0.0
  %2308 = vmatpush1.msra.mxu0 0.0
  %2309 = vmatprep.subr.mxu0 0.0
  %2310 = vmatpush1.msra.mxu0 0.0
  %2311 = vmatprep.subr.mxu0 0.0
  %2312 = vmatpush1.msra.mxu0 0.0
  %2313 = vmatprep.subr.mxu0 0.0
  %2314 = vmatpush1.msra.mxu0 0.0
  %2315 = vmatprep.subr.mxu0 0.0
  %2316 = vmatpush1.msra.mxu0 0.0
  %2317 = vmatprep.subr.mxu0 0.0
  %2318 = vmatpush1.msra.mxu0 0.0
  %2319 = vmatprep.subr.mxu0 0.0
  %2320 = vmatpush1.msra.mxu0 0.0
  %2321 = vmatprep.subr.mxu0 0.0
  %2322 = vmatpush1.msra.mxu0 0.0
  %2323 = vmatprep.subr.mxu0 0.0
  %2324 = vmatpush1.msra.mxu0 0.0
  %2325 = vmatprep.subr.mxu0 0.0
  %2326 = vmatpush1.msra.mxu0 0.0
  %2327 = vmatprep.subr.mxu0 0.0
  %2328 = vmatpush1.msra.mxu0 0.0
  %2329 = vmatprep.subr.mxu0 0.0
  %2330 = vmatpush1.msra.mxu0 0.0
  %2331 = vmatprep.subr.mxu0 0.0
  %2332 = vmatpush1.msra.mxu0 0.0
  %2333 = vmatprep.subr.mxu0 0.0
  %2334 = vmatpush1.msra.mxu0 0.0
  %2335 = vmatprep.subr.mxu0 0.0
  %2336 = vmatpush1.msra.mxu0 0.0
  %2337 = vmatprep.subr.mxu0 0.0
  %2338 = vmatpush1.msra.mxu0 0.0
  %2339 = vmatprep.subr.mxu0 0.0
  %2340 = vmatpush1.msra.mxu0 0.0
  %2341 = vmatprep.subr.mxu0 0.0
  %2342 = vmatpush1.msra.mxu0 0.0
  %2343 = vmatprep.subr.mxu0 0.0
  %2344 = vmatpush1.msra.mxu0 0.0
  %2345 = vmatprep.subr.mxu0 0.0
  %2346 = vmatpush1.msra.mxu0 0.0
  %2347 = vmatprep.subr.mxu0 0.0
  %2348 = vmatpush1.msra.mxu0 0.0
  %2349 = vmatprep.mubr.f32.mxu0 0.0
  %2350 = vmatmul.mubr.f32.gmra.mrb[0].mxu0 %v2280
  %v2351 = vpop.f32.mrb[0].mxu0
  %v2352 = vadd.f32 %v2277, %v2351
  %v2353 = vpop.f32.mrb[0].mxu0
  %2354 = vmatprep.mubr.f32.mxu0 0.0
  %2355 = vmatmul.mubr.f32.gmra.mrb[0].mxu0 %v2283
  %v2356 = vpop.f32.mrb[0].mxu0
  %v2357 = vadd.f32 %v2277, %v2356
  %v2358 = vpop.f32.mrb[0].mxu0
  %2359 = vdwg.mxu0
  %v2360 = vmax.f32 %v2352, 0.0
  %v2361 = vmax.f32 %v2357, 0.0
  %vm2362 = vcmask 523264
  %v2364 = vsel %vm2362, %v2360, 0
  %v2367 = vsel %vm2362, %v2361, 0
  %2369 = vmatprep.subr.mxu0 0.0
  %2370 = vmatpush1.msra.mxu0 %v39
  %2371 = vmatprep.subr.mxu0 0.0
  %2372 = vmatpush1.msra.mxu0 %v40
  %2373 = vmatprep.subr.mxu0 0.0
  %2374 = vmatpush1.msra.mxu0 %v41
  %2375 = vmatprep.subr.mxu0 0.0
  %2376 = vmatpush1.msra.mxu0 %v42
  %2377 = vmatprep.subr.mxu0 0.0
  %2378 = vmatpush1.msra.mxu0 %v43
  %2379 = vmatprep.subr.mxu0 0.0
  %2380 = vmatpush1.msra.mxu0 %v44
  %2381 = vmatprep.subr.mxu0 0.0
  %2382 = vmatpush1.msra.mxu0 %v45
  %2383 = vmatprep.subr.mxu0 0.0
  %2384 = vmatpush1.msra.mxu0 %v46
  %2385 = vmatprep.subr.mxu0 0.0
  %2386 = vmatpush1.msra.mxu0 0.0
  %2387 = vmatprep.subr.mxu0 0.0
  %2388 = vmatpush1.msra.mxu0 0.0
  %2389 = vmatprep.subr.mxu0 0.0
  %2390 = vmatpush1.msra.mxu0 0.0
  %2391 = vmatprep.subr.mxu0 0.0
  %2392 = vmatpush1.msra.mxu0 0.0
  %2393 = vmatprep.subr.mxu0 0.0
  %2394 = vmatpush1.msra.mxu0 0.0
  %2395 = vmatprep.subr.mxu0 0.0
  %2396 = vmatpush1.msra.mxu0 0.0
  %2397 = vmatprep.subr.mxu0 0.0
  %2398 = vmatpush1.msra.mxu0 0.0
  %2399 = vmatprep.subr.mxu0 0.0
  %2400 = vmatpush1.msra.mxu0 0.0
  %2401 = vmatprep.subr.mxu0 0.0
  %2402 = vmatpush1.msra.mxu0 0.0
  %2403 = vmatprep.subr.mxu0 0.0
  %2404 = vmatpush1.msra.mxu0 0.0
  %2405 = vmatprep.subr.mxu0 0.0
  %2406 = vmatpush1.msra.mxu0 0.0
  %2407 = vmatprep.subr.mxu0 0.0
  %2408 = vmatpush1.msra.mxu0 0.0
  %2409 = vmatprep.subr.mxu0 0.0
  %2410 = vmatpush1.msra.mxu0 0.0
  %2411 = vmatprep.subr.mxu0 0.0
  %2412 = vmatpush1.msra.mxu0 0.0
  %2413 = vmatprep.subr.mxu0 0.0
  %2414 = vmatpush1.msra.mxu0 0.0
  %2415 = vmatprep.subr.mxu0 0.0
  %2416 = vmatpush1.msra.mxu0 0.0
  %2417 = vmatprep.subr.mxu0 0.0
  %2418 = vmatpush1.msra.mxu0 0.0
  %2419 = vmatprep.subr.mxu0 0.0
  %2420 = vmatpush1.msra.mxu0 0.0
  %2421 = vmatprep.subr.mxu0 0.0
  %2422 = vmatpush1.msra.mxu0 0.0
  %2423 = vmatprep.subr.mxu0 0.0
  %2424 = vmatpush1.msra.mxu0 0.0
  %2425 = vmatprep.subr.mxu0 0.0
  %2426 = vmatpush1.msra.mxu0 0.0
  %2427 = vmatprep.subr.mxu0 0.0
  %2428 = vmatpush1.msra.mxu0 0.0
  %2429 = vmatprep.subr.mxu0 0.0
  %2430 = vmatpush1.msra.mxu0 0.0
  %2431 = vmatprep.subr.mxu0 0.0
  %2432 = vmatpush1.msra.mxu0 0.0
  %2433 = vmatprep.mubr.f32.mxu0 0.0
  %2434 = vmatmul.mubr.f32.gmra.mrb[0].mxu0 %v2364
  %v2435 = vpop.f32.mrb[0].mxu0
  %v2436 = vadd.f32 0.0, %v2435
  %v2437 = vpop.f32.mrb[0].mxu0
  %2438 = vmatprep.mubr.f32.mxu0 0.0
  %2439 = vmatmul.mubr.f32.gmra.mrb[0].mxu0 %v2367
  %v2440 = vpop.f32.mrb[0].mxu0
  %v2441 = vadd.f32 0.0, %v2440
  %v2442 = vpop.f32.mrb[0].mxu0
  %2443 = vdwg.mxu0
  %v2444 = vadd.f32 %v2233, %v2436
  %v2445 = vadd.f32 %v2234, %v2441
  %2446 = vrot.lane.b32.xlu0 %v2232, 96
  %v2447 = vpop.permute.xlu0 %2446
  %v2449 = vadd.f32 %v2444, %v2447
  %v2450 = vadd.f32 %v2445, %v2447
  %s2451 = scalar_lea.vmem %s2, 64
  %v2452 = vld [vmem:[%s2451] sm:$0xff]
  %v2453 = vld [vmem:[%s2451 + $0x8] sm:$0xff]
  %v2454 = vld [vmem:[%s2451 + $0x10] sm:$0xff]
  %v2455 = vld [vmem:[%s2451 + $0x18] sm:$0xff]
  %v2456 = vld [vmem:[%s2451 + $0x20] sm:$0xff]
  %v2457 = vld [vmem:[%s2451 + $0x28] sm:$0xff]
  %v2458 = vld [vmem:[%s2451 + $0x30] sm:$0xff]
  %v2459 = vld [vmem:[%s2451 + $0x38] sm:$0xff]
  %s2460 = scalar_lea.vmem %s3, 96
  %v2461 = vld [vmem:[%s2460] sm:$0xff]
  %v2462 = vld [vmem:[%s2460 + $0x8] sm:$0xff]
  %v2463 = vld [vmem:[%s2460 + $0x10] sm:$0xff]
  %v2464 = vld [vmem:[%s2460 + $0x18] sm:$0xff]
  %v2465 = vld [vmem:[%s2460 + $0x20] sm:$0xff]
  %v2466 = vld [vmem:[%s2460 + $0x28] sm:$0xff]
  %v2467 = vld [vmem:[%s2460 + $0x30] sm:$0xff]
  %v2468 = vld [vmem:[%s2460 + $0x38] sm:$0xff]
  %v2469 = vld [vmem:[%s2460 + $0x40] sm:$0xff]
  %v2470 = vld [vmem:[%s2460 + $0x48] sm:$0xff]
  %v2471 = vld [vmem:[%s2460 + $0x50] sm:$0xff]
  %v2472 = vld [vmem:[%s2460 + $0x58] sm:$0xff]
  %s2473 = scalar_lea.vmem %s4, 4
  %v2474 = vld [vmem:[%s2473] sm:$0x7]
  %v2475 = vsel %vm52, %v2449, 0.0
  %2476 = vadd.xlane.f32.xlu0 %v2475
  %v2477 = vpop.xlane.xlu0 %2476
  %v2478 = vsel %vm52, %v2450, 0.0
  %2479 = vadd.xlane.f32.xlu0 %v2478
  %v2480 = vpop.xlane.xlu0 %2479
  %v2481 = vmul.f32 %v2477, %v59
  %v2482 = vmul.f32 %v2480, %v59
  %v2483 = vmul.f32 %v2449, %v2449
  %v2484 = vmul.f32 %v2450, %v2450
  %v2485 = vsel %vm52, %v2483, 0.0
  %2486 = vadd.xlane.f32.xlu0 %v2485
  %v2487 = vpop.xlane.xlu0 %2486
  %v2488 = vsel %vm52, %v2484, 0.0
  %2489 = vadd.xlane.f32.xlu0 %v2488
  %v2490 = vpop.xlane.xlu0 %2489
  %v2491 = vmul.f32 %v2487, %v59
  %v2492 = vmul.f32 %v2490, %v59
  %v2493 = vmul.f32 %v2481, %v2481
  %v2494 = vmul.f32 %v2482, %v2482
  %v2495 = vsub.f32 %v2491, %v2493
  %v2496 = vsub.f32 %v2492, %v2494
  %v2497 = vsub.f32 %v2449, %v2481
  %v2498 = vsub.f32 %v2450, %v2482
  %v2499 = vadd.f32 %v2495, 1e-05
  %v2500 = vadd.f32 %v2496, 1e-05
  %v2501 = vrsqrt.pop %v2499
  %v2502 = vrsqrt.pop %v2500
  %v2503 = vmul.f32 %v2497, %v2501
  %v2504 = vmul.f32 %v2498, %v2502
  %v2505 = vlaneseq
  %v2506 = vshrl.u32 %v2505, 7
  %v2507 = vsub.s32 0, %v2506
  %v2508 = vrot.slane %v2474, %v2507
  %v2509 = vmul.f32 %v2503, %v2508
  %v2510 = vmul.f32 %v2504, %v2508
  %2512 = vrot.lane.b32.xlu0 %v2508, 96
  %v2513 = vpop.permute.xlu0 %2512
  %v2515 = vadd.f32 %v2509, %v2513
  %v2516 = vadd.f32 %v2510, %v2513
  %v2517 = vlaneseq
  %v2518 = vshrl.u32 %v2517, 7
  %v2519 = vsub.s32 2, %v2518
  %v2520 = vrot.slane %v2474, %v2519
  %v2522 = vsel %vm52, %v2515, 0
  %v2525 = vsel %vm52, %v2516, 0
  %2527 = vmatprep.subr.mxu0 0.0
  %2528 = vmatpush1.msra.mxu0 %v2452
  %2529 = vmatprep.subr.mxu0 0.0
  %2530 = vmatpush1.msra.mxu0 %v2454
  %2531 = vmatprep.subr.mxu0 0.0
  %2532 = vmatpush1.msra.mxu0 %v2456
  %2533 = vmatprep.subr.mxu0 0.0
  %2534 = vmatpush1.msra.mxu0 %v2458
  %2535 = vmatprep.subr.mxu0 0.0
  %2536 = vmatpush1.msra.mxu0 0.0
  %2537 = vmatprep.subr.mxu0 0.0
  %2538 = vmatpush1.msra.mxu0 0.0
  %2539 = vmatprep.subr.mxu0 0.0
  %2540 = vmatpush1.msra.mxu0 0.0
  %2541 = vmatprep.subr.mxu0 0.0
  %2542 = vmatpush1.msra.mxu0 0.0
  %2543 = vmatprep.subr.mxu0 0.0
  %2544 = vmatpush1.msra.mxu0 0.0
  %2545 = vmatprep.subr.mxu0 0.0
  %2546 = vmatpush1.msra.mxu0 0.0
  %2547 = vmatprep.subr.mxu0 0.0
  %2548 = vmatpush1.msra.mxu0 0.0
  %2549 = vmatprep.subr.mxu0 0.0
  %2550 = vmatpush1.msra.mxu0 0.0
  %2551 = vmatprep.subr.mxu0 0.0
  %2552 = vmatpush1.msra.mxu0 0.0
  %2553 = vmatprep.subr.mxu0 0.0
  %2554 = vmatpush1.msra.mxu0 0.0
  %2555 = vmatprep.subr.mxu0 0.0
  %2556 = vmatpush1.msra.mxu0 0.0
  %2557 = vmatprep.subr.mxu0 0.0
  %2558 = vmatpush1.msra.mxu0 0.0
  %2559 = vmatprep.subr.mxu0 0.0
  %2560 = vmatpush1.msra.mxu0 0.0
  %2561 = vmatprep.subr.mxu0 0.0
  %2562 = vmatpush1.msra.mxu0 0.0
  %2563 = vmatprep.subr.mxu0 0.0
  %2564 = vmatpush1.msra.mxu0 0.0
  %2565 = vmatprep.subr.mxu0 0.0
  %2566 = vmatpush1.msra.mxu0 0.0
  %2567 = vmatprep.subr.mxu0 0.0
  %2568 = vmatpush1.msra.mxu0 0.0
  %2569 = vmatprep.subr.mxu0 0.0
  %2570 = vmatpush1.msra.mxu0 0.0
  %2571 = vmatprep.subr.mxu0 0.0
  %2572 = vmatpush1.msra.mxu0 0.0
  %2573 = vmatprep.subr.mxu0 0.0
  %2574 = vmatpush1.msra.mxu0 0.0
  %2575 = vmatprep.subr.mxu0 0.0
  %2576 = vmatpush1.msra.mxu0 0.0
  %2577 = vmatprep.subr.mxu0 0.0
  %2578 = vmatpush1.msra.mxu0 0.0
  %2579 = vmatprep.subr.mxu0 0.0
  %2580 = vmatpush1.msra.mxu0 0.0
  %2581 = vmatprep.subr.mxu0 0.0
  %2582 = vmatpush1.msra.mxu0 0.0
  %2583 = vmatprep.subr.mxu0 0.0
  %2584 = vmatpush1.msra.mxu0 0.0
  %2585 = vmatprep.subr.mxu0 0.0
  %2586 = vmatpush1.msra.mxu0 0.0
  %2587 = vmatprep.subr.mxu0 0.0
  %2588 = vmatpush1.msra.mxu0 0.0
  %2589 = vmatprep.subr.mxu0 0.0
  %2590 = vmatpush1.msra.mxu0 0.0
  %2591 = vmatprep.mubr.f32.mxu0 0.0
  %2592 = vmatmul.mubr.f32.gmra.mrb[0].mxu0 %v2522
  %v2593 = vpop.f32.mrb[0].mxu0
  %v2594 = vadd.f32 %v2520, %v2593
  %v2595 = vpop.f32.mrb[0].mxu0
  %2596 = vmatprep.mubr.f32.mxu0 0.0
  %2597 = vmatmul.mubr.f32.gmra.mrb[0].mxu0 %v2525
  %v2598 = vpop.f32.mrb[0].mxu0
  %v2599 = vadd.f32 %v2520, %v2598
  %v2600 = vpop.f32.mrb[0].mxu0
  %2601 = vdwg.mxu0
  %2604 = vrot.lane.b32.xlu0 %v2594, 120
  %v2605 = vpop.permute.xlu0 %2604
  %2606 = vrot.lane.b32.xlu0 %v2599, 120
  %v2607 = vpop.permute.xlu0 %2606
  %2610 = vrot.lane.b32.xlu0 %v2594, 112
  %v2611 = vpop.permute.xlu0 %2610
  %2612 = vrot.lane.b32.xlu0 %v2599, 112
  %v2613 = vpop.permute.xlu0 %2612
  %2616 = vrot.lane.b32.xlu0 %v2594, 104
  %v2617 = vpop.permute.xlu0 %2616
  %2618 = vrot.lane.b32.xlu0 %v2599, 104
  %v2619 = vpop.permute.xlu0 %2618
  %v2622 = vcombine.low %v2594, %v2611
  %v2623 = vcombine.high %v2594, %v2611
  %v2625 = vunpack.c.l.s4 1983009808
  %v2626 = vunpack.c.0.s8 %v2625
  %v2627 = vlaneseq
  %v2628 = vshrl.u32 %v2627, 7
  %v2629 = vsub.s32 %v2626, %v2628
  %v2630 = vrot.slane %v2622, %v2629
  %v2632 = vunpack.c.l.s4 1983009808
  %v2633 = vunpack.c.0.s8 %v2632
  %v2634 = vlaneseq
  %v2635 = vshrl.u32 %v2634, 7
  %v2636 = vsub.s32 %v2633, %v2635
  %v2637 = vrot.slane %v2623, %v2636
  %v2638 = vcombine.low %v2605, %v2617
  %v2639 = vcombine.high %v2605, %v2617
  %v2641 = vunpack.c.l.s4 1983009808
  %v2642 = vunpack.c.0.s8 %v2641
  %v2643 = vlaneseq
  %v2644 = vshrl.u32 %v2643, 7
  %v2645 = vsub.s32 %v2642, %v2644
  %v2646 = vrot.slane %v2638, %v2645
  %v2648 = vunpack.c.l.s4 1983009808
  %v2649 = vunpack.c.0.s8 %v2648
  %v2650 = vlaneseq
  %v2651 = vshrl.u32 %v2650, 7
  %v2652 = vsub.s32 %v2649, %v2651
  %v2653 = vrot.slane %v2639, %v2652
  %v2654 = vcombine.low %v2630, %v2646
  %v2655 = vcombine.high %v2630, %v2646
  %v2657 = vunpack.c.l.s4 1934713408
  %v2658 = vunpack.c.0.s8 %v2657
  %v2659 = vlaneseq
  %v2660 = vshrl.u32 %v2659, 7
  %v2661 = vsub.s32 %v2658, %v2660
  %v2662 = vrot.slane %v2654, %v2661
  %v2664 = vunpack.c.l.s4 1934713408
  %v2665 = vunpack.c.0.s8 %v2664
  %v2666 = vlaneseq
  %v2667 = vshrl.u32 %v2666, 7
  %v2668 = vsub.s32 %v2665, %v2667
  %v2669 = vrot.slane %v2655, %v2668
  %v2670 = vcombine.low %v2637, %v2653
  %v2671 = vcombine.high %v2637, %v2653
  %v2673 = vunpack.c.l.s4 1934713408
  %v2674 = vunpack.c.0.s8 %v2673
  %v2675 = vlaneseq
  %v2676 = vshrl.u32 %v2675, 7
  %v2677 = vsub.s32 %v2674, %v2676
  %v2678 = vrot.slane %v2670, %v2677
  %v2680 = vunpack.c.l.s4 1934713408
  %v2681 = vunpack.c.0.s8 %v2680
  %v2682 = vlaneseq
  %v2683 = vshrl.u32 %v2682, 7
  %v2684 = vsub.s32 %v2681, %v2683
  %v2685 = vrot.slane %v2671, %v2684
  %v2686 = vcombine.high %v2662, 0.0
  %v2687 = vcombine.high %v2669, 0.0
  %v2688 = vcombine.high %v2678, 0.0
  %v2689 = vcombine.high %v2685, 0.0
  %v2690 = vcombine.low %v2599, %v2613
  %v2691 = vcombine.high %v2599, %v2613
  %v2693 = vunpack.c.l.s4 1983009808
  %v2694 = vunpack.c.0.s8 %v2693
  %v2695 = vlaneseq
  %v2696 = vshrl.u32 %v2695, 7
  %v2697 = vsub.s32 %v2694, %v2696
  %v2698 = vrot.slane %v2690, %v2697
  %v2700 = vunpack.c.l.s4 1983009808
  %v2701 = vunpack.c.0.s8 %v2700
  %v2702 = vlaneseq
  %v2703 = vshrl.u32 %v2702, 7
  %v2704 = vsub.s32 %v2701, %v2703
  %v2705 = vrot.slane %v2691, %v2704
  %v2706 = vcombine.low %v2607, %v2619
  %v2707 = vcombine.high %v2607, %v2619
  %v2709 = vunpack.c.l.s4 1983009808
  %v2710 = vunpack.c.0.s8 %v2709
  %v2711 = vlaneseq
  %v2712 = vshrl.u32 %v2711, 7
  %v2713 = vsub.s32 %v2710, %v2712
  %v2714 = vrot.slane %v2706, %v2713
  %v2716 = vunpack.c.l.s4 1983009808
  %v2717 = vunpack.c.0.s8 %v2716
  %v2718 = vlaneseq
  %v2719 = vshrl.u32 %v2718, 7
  %v2720 = vsub.s32 %v2717, %v2719
  %v2721 = vrot.slane %v2707, %v2720
  %v2722 = vcombine.low %v2698, %v2714
  %v2723 = vcombine.high %v2698, %v2714
  %v2725 = vunpack.c.l.s4 1934713408
  %v2726 = vunpack.c.0.s8 %v2725
  %v2727 = vlaneseq
  %v2728 = vshrl.u32 %v2727, 7
  %v2729 = vsub.s32 %v2726, %v2728
  %v2730 = vrot.slane %v2722, %v2729
  %v2732 = vunpack.c.l.s4 1934713408
  %v2733 = vunpack.c.0.s8 %v2732
  %v2734 = vlaneseq
  %v2735 = vshrl.u32 %v2734, 7
  %v2736 = vsub.s32 %v2733, %v2735
  %v2737 = vrot.slane %v2723, %v2736
  %v2738 = vcombine.low %v2705, %v2721
  %v2739 = vcombine.high %v2705, %v2721
  %v2741 = vunpack.c.l.s4 1934713408
  %v2742 = vunpack.c.0.s8 %v2741
  %v2743 = vlaneseq
  %v2744 = vshrl.u32 %v2743, 7
  %v2745 = vsub.s32 %v2742, %v2744
  %v2746 = vrot.slane %v2738, %v2745
  %v2748 = vunpack.c.l.s4 1934713408
  %v2749 = vunpack.c.0.s8 %v2748
  %v2750 = vlaneseq
  %v2751 = vshrl.u32 %v2750, 7
  %v2752 = vsub.s32 %v2749, %v2751
  %v2753 = vrot.slane %v2739, %v2752
  %v2754 = vcombine.high %v2730, 0.0
  %v2755 = vcombine.high %v2737, 0.0
  %v2756 = vcombine.high %v2746, 0.0
  %v2757 = vcombine.high %v2753, 0.0
  %v2758 = vcombine.low %v2662, %v2669
  %v2760 = vunpack.c.l.s4 1983009808
  %v2761 = vunpack.c.0.s8 %v2760
  %v2762 = vlaneseq
  %v2763 = vshrl.u32 %v2762, 7
  %v2764 = vsub.s32 %v2761, %v2763
  %v2765 = vrot.slane %v2758, %v2764
  %v2766 = vcombine.low %v2686, %v2687
  %v2768 = vunpack.c.l.s4 1983009808
  %v2769 = vunpack.c.0.s8 %v2768
  %v2770 = vlaneseq
  %v2771 = vshrl.u32 %v2770, 7
  %v2772 = vsub.s32 %v2769, %v2771
  %v2773 = vrot.slane %v2766, %v2772
  %v2774 = vcombine.low %v2678, %v2685
  %v2776 = vunpack.c.l.s4 1983009808
  %v2777 = vunpack.c.0.s8 %v2776
  %v2778 = vlaneseq
  %v2779 = vshrl.u32 %v2778, 7
  %v2780 = vsub.s32 %v2777, %v2779
  %v2781 = vrot.slane %v2774, %v2780
  %v2782 = vcombine.low %v2688, %v2689
  %v2784 = vunpack.c.l.s4 1983009808
  %v2785 = vunpack.c.0.s8 %v2784
  %v2786 = vlaneseq
  %v2787 = vshrl.u32 %v2786, 7
  %v2788 = vsub.s32 %v2785, %v2787
  %v2789 = vrot.slane %v2782, %v2788
  %v2790 = vcombine.low %v2765, %v2773
  %v2791 = vcombine.high %v2765, %v2773
  %v2793 = vunpack.c.l.s4 1934713408
  %v2794 = vunpack.c.0.s8 %v2793
  %v2795 = vlaneseq
  %v2796 = vshrl.u32 %v2795, 7
  %v2797 = vsub.s32 %v2794, %v2796
  %v2798 = vrot.slane %v2790, %v2797
  %v2800 = vunpack.c.l.s4 1934713408
  %v2801 = vunpack.c.0.s8 %v2800
  %v2802 = vlaneseq
  %v2803 = vshrl.u32 %v2802, 7
  %v2804 = vsub.s32 %v2801, %v2803
  %v2805 = vrot.slane %v2791, %v2804
  %v2806 = vcombine.low %v2781, %v2789
  %v2807 = vcombine.high %v2781, %v2789
  %v2809 = vunpack.c.l.s4 1934713408
  %v2810 = vunpack.c.0.s8 %v2809
  %v2811 = vlaneseq
  %v2812 = vshrl.u32 %v2811, 7
  %v2813 = vsub.s32 %v2810, %v2812
  %v2814 = vrot.slane %v2806, %v2813
  %v2816 = vunpack.c.l.s4 1934713408
  %v2817 = vunpack.c.0.s8 %v2816
  %v2818 = vlaneseq
  %v2819 = vshrl.u32 %v2818, 7
  %v2820 = vsub.s32 %v2817, %v2819
  %v2821 = vrot.slane %v2807, %v2820
  %v2822 = vcombine.low %v2798, %v2814
  %v2823 = vcombine.high %v2798, %v2814
  %v2824 = vcombine.low %v2805, %v2821
  %v2825 = vcombine.high %v2805, %v2821
  %v2826 = vcombine.low %v2730, %v2737
  %v2828 = vunpack.c.l.s4 1983009808
  %v2829 = vunpack.c.0.s8 %v2828
  %v2830 = vlaneseq
  %v2831 = vshrl.u32 %v2830, 7
  %v2832 = vsub.s32 %v2829, %v2831
  %v2833 = vrot.slane %v2826, %v2832
  %v2834 = vcombine.low %v2754, %v2755
  %v2836 = vunpack.c.l.s4 1983009808
  %v2837 = vunpack.c.0.s8 %v2836
  %v2838 = vlaneseq
  %v2839 = vshrl.u32 %v2838, 7
  %v2840 = vsub.s32 %v2837, %v2839
  %v2841 = vrot.slane %v2834, %v2840
  %v2842 = vcombine.low %v2746, %v2753
  %v2844 = vunpack.c.l.s4 1983009808
  %v2845 = vunpack.c.0.s8 %v2844
  %v2846 = vlaneseq
  %v2847 = vshrl.u32 %v2846, 7
  %v2848 = vsub.s32 %v2845, %v2847
  %v2849 = vrot.slane %v2842, %v2848
  %v2850 = vcombine.low %v2756, %v2757
  %v2852 = vunpack.c.l.s4 1983009808
  %v2853 = vunpack.c.0.s8 %v2852
  %v2854 = vlaneseq
  %v2855 = vshrl.u32 %v2854, 7
  %v2856 = vsub.s32 %v2853, %v2855
  %v2857 = vrot.slane %v2850, %v2856
  %v2858 = vcombine.low %v2833, %v2841
  %v2859 = vcombine.high %v2833, %v2841
  %v2861 = vunpack.c.l.s4 1934713408
  %v2862 = vunpack.c.0.s8 %v2861
  %v2863 = vlaneseq
  %v2864 = vshrl.u32 %v2863, 7
  %v2865 = vsub.s32 %v2862, %v2864
  %v2866 = vrot.slane %v2858, %v2865
  %v2868 = vunpack.c.l.s4 1934713408
  %v2869 = vunpack.c.0.s8 %v2868
  %v2870 = vlaneseq
  %v2871 = vshrl.u32 %v2870, 7
  %v2872 = vsub.s32 %v2869, %v2871
  %v2873 = vrot.slane %v2859, %v2872
  %v2874 = vcombine.low %v2849, %v2857
  %v2875 = vcombine.high %v2849, %v2857
  %v2877 = vunpack.c.l.s4 1934713408
  %v2878 = vunpack.c.0.s8 %v2877
  %v2879 = vlaneseq
  %v2880 = vshrl.u32 %v2879, 7
  %v2881 = vsub.s32 %v2878, %v2880
  %v2882 = vrot.slane %v2874, %v2881
  %v2884 = vunpack.c.l.s4 1934713408
  %v2885 = vunpack.c.0.s8 %v2884
  %v2886 = vlaneseq
  %v2887 = vshrl.u32 %v2886, 7
  %v2888 = vsub.s32 %v2885, %v2887
  %v2889 = vrot.slane %v2875, %v2888
  %v2890 = vcombine.low %v2866, %v2882
  %v2891 = vcombine.high %v2866, %v2882
  %v2892 = vcombine.low %v2873, %v2889
  %v2893 = vcombine.high %v2873, %v2889
  %2894 = vrot.lane.b32.xlu0 %v2594, 96
  %v2895 = vpop.permute.xlu0 %2894
  %2896 = vrot.lane.b32.xlu0 %v2599, 96
  %v2897 = vpop.permute.xlu0 %2896
  %2898 = vrot.lane.b32.xlu0 %v2605, 96
  %v2899 = vpop.permute.xlu0 %2898
  %2900 = vrot.lane.b32.xlu0 %v2607, 96
  %v2901 = vpop.permute.xlu0 %2900
  %2902 = vrot.lane.b32.xlu0 %v2611, 96
  %v2903 = vpop.permute.xlu0 %2902
  %2904 = vrot.lane.b32.xlu0 %v2613, 96
  %v2905 = vpop.permute.xlu0 %2904
  %2906 = vrot.lane.b32.xlu0 %v2617, 96
  %v2907 = vpop.permute.xlu0 %2906
  %2908 = vrot.lane.b32.xlu0 %v2619, 96
  %v2909 = vpop.permute.xlu0 %2908
  %v2918 = vcombine.low %v2895, %v2903
  %v2919 = vcombine.high %v2895, %v2903
  %v2921 = vunpack.c.l.s4 1983009808
  %v2922 = vunpack.c.0.s8 %v2921
  %v2923 = vlaneseq
  %v2924 = vshrl.u32 %v2923, 7
  %v2925 = vsub.s32 %v2922, %v2924
  %v2926 = vrot.slane %v2918, %v2925
  %v2928 = vunpack.c.l.s4 1983009808
  %v2929 = vunpack.c.0.s8 %v2928
  %v2930 = vlaneseq
  %v2931 = vshrl.u32 %v2930, 7
  %v2932 = vsub.s32 %v2929, %v2931
  %v2933 = vrot.slane %v2919, %v2932
  %v2934 = vcombine.low %v2899, %v2907
  %v2935 = vcombine.high %v2899, %v2907
  %v2937 = vunpack.c.l.s4 1983009808
  %v2938 = vunpack.c.0.s8 %v2937
  %v2939 = vlaneseq
  %v2940 = vshrl.u32 %v2939, 7
  %v2941 = vsub.s32 %v2938, %v2940
  %v2942 = vrot.slane %v2934, %v2941
  %v2944 = vunpack.c.l.s4 1983009808
  %v2945 = vunpack.c.0.s8 %v2944
  %v2946 = vlaneseq
  %v2947 = vshrl.u32 %v2946, 7
  %v2948 = vsub.s32 %v2945, %v2947
  %v2949 = vrot.slane %v2935, %v2948
  %v2950 = vcombine.low %v2926, %v2942
  %v2951 = vcombine.high %v2926, %v2942
  %v2953 = vunpack.c.l.s4 1934713408
  %v2954 = vunpack.c.0.s8 %v2953
  %v2955 = vlaneseq
  %v2956 = vshrl.u32 %v2955, 7
  %v2957 = vsub.s32 %v2954, %v2956
  %v2958 = vrot.slane %v2950, %v2957
  %v2960 = vunpack.c.l.s4 1934713408
  %v2961 = vunpack.c.0.s8 %v2960
  %v2962 = vlaneseq
  %v2963 = vshrl.u32 %v2962, 7
  %v2964 = vsub.s32 %v2961, %v2963
  %v2965 = vrot.slane %v2951, %v2964
  %v2966 = vcombine.low %v2933, %v2949
  %v2967 = vcombine.high %v2933, %v2949
  %v2969 = vunpack.c.l.s4 1934713408
  %v2970 = vunpack.c.0.s8 %v2969
  %v2971 = vlaneseq
  %v2972 = vshrl.u32 %v2971, 7
  %v2973 = vsub.s32 %v2970, %v2972
  %v2974 = vrot.slane %v2966, %v2973
  %v2976 = vunpack.c.l.s4 1934713408
  %v2977 = vunpack.c.0.s8 %v2976
  %v2978 = vlaneseq
  %v2979 = vshrl.u32 %v2978, 7
  %v2980 = vsub.s32 %v2977, %v2979
  %v2981 = vrot.slane %v2967, %v2980
  %v2982 = vcombine.high %v2958, 0.0
  %v2983 = vcombine.high %v2965, 0.0
  %v2984 = vcombine.high %v2974, 0.0
  %v2985 = vcombine.high %v2981, 0.0
  %v2986 = vcombine.low %v2897, %v2905
  %v2987 = vcombine.high %v2897, %v2905
  %v2989 = vunpack.c.l.s4 1983009808
  %v2990 = vunpack.c.0.s8 %v2989
  %v2991 = vlaneseq
  %v2992 = vshrl.u32 %v2991, 7
  %v2993 = vsub.s32 %v2990, %v2992
  %v2994 = vrot.slane %v2986, %v2993
  %v2996 = vunpack.c.l.s4 1983009808
  %v2997 = vunpack.c.0.s8 %v2996
  %v2998 = vlaneseq
  %v2999 = vshrl.u32 %v2998, 7
  %v3000 = vsub.s32 %v2997, %v2999
  %v3001 = vrot.slane %v2987, %v3000
  %v3002 = vcombine.low %v2901, %v2909
  %v3003 = vcombine.high %v2901, %v2909
  %v3005 = vunpack.c.l.s4 1983009808
  %v3006 = vunpack.c.0.s8 %v3005
  %v3007 = vlaneseq
  %v3008 = vshrl.u32 %v3007, 7
  %v3009 = vsub.s32 %v3006, %v3008
  %v3010 = vrot.slane %v3002, %v3009
  %v3012 = vunpack.c.l.s4 1983009808
  %v3013 = vunpack.c.0.s8 %v3012
  %v3014 = vlaneseq
  %v3015 = vshrl.u32 %v3014, 7
  %v3016 = vsub.s32 %v3013, %v3015
  %v3017 = vrot.slane %v3003, %v3016
  %v3018 = vcombine.low %v2994, %v3010
  %v3019 = vcombine.high %v2994, %v3010
  %v3021 = vunpack.c.l.s4 1934713408
  %v3022 = vunpack.c.0.s8 %v3021
  %v3023 = vlaneseq
  %v3024 = vshrl.u32 %v3023, 7
  %v3025 = vsub.s32 %v3022, %v3024
  %v3026 = vrot.slane %v3018, %v3025
  %v3028 = vunpack.c.l.s4 1934713408
  %v3029 = vunpack.c.0.s8 %v3028
  %v3030 = vlaneseq
  %v3031 = vshrl.u32 %v3030, 7
  %v3032 = vsub.s32 %v3029, %v3031
  %v3033 = vrot.slane %v3019, %v3032
  %v3034 = vcombine.low %v3001, %v3017
  %v3035 = vcombine.high %v3001, %v3017
  %v3037 = vunpack.c.l.s4 1934713408
  %v3038 = vunpack.c.0.s8 %v3037
  %v3039 = vlaneseq
  %v3040 = vshrl.u32 %v3039, 7
  %v3041 = vsub.s32 %v3038, %v3040
  %v3042 = vrot.slane %v3034, %v3041
  %v3044 = vunpack.c.l.s4 1934713408
  %v3045 = vunpack.c.0.s8 %v3044
  %v3046 = vlaneseq
  %v3047 = vshrl.u32 %v3046, 7
  %v3048 = vsub.s32 %v3045, %v3047
  %v3049 = vrot.slane %v3035, %v3048
  %v3050 = vcombine.high %v3026, 0.0
  %v3051 = vcombine.high %v3033, 0.0
  %v3052 = vcombine.high %v3042, 0.0
  %v3053 = vcombine.high %v3049, 0.0
  %v3054 = vcombine.low %v2958, %v2965
  %v3056 = vunpack.c.l.s4 1983009808
  %v3057 = vunpack.c.0.s8 %v3056
  %v3058 = vlaneseq
  %v3059 = vshrl.u32 %v3058, 7
  %v3060 = vsub.s32 %v3057, %v3059
  %v3061 = vrot.slane %v3054, %v3060
  %v3062 = vcombine.low %v2982, %v2983
  %v3064 = vunpack.c.l.s4 1983009808
  %v3065 = vunpack.c.0.s8 %v3064
  %v3066 = vlaneseq
  %v3067 = vshrl.u32 %v3066, 7
  %v3068 = vsub.s32 %v3065, %v3067
  %v3069 = vrot.slane %v3062, %v3068
  %v3070 = vcombine.low %v2974, %v2981
  %v3072 = vunpack.c.l.s4 1983009808
  %v3073 = vunpack.c.0.s8 %v3072
  %v3074 = vlaneseq
  %v3075 = vshrl.u32 %v3074, 7
  %v3076 = vsub.s32 %v3073, %v3075
  %v3077 = vrot.slane %v3070, %v3076
  %v3078 = vcombine.low %v2984, %v2985
  %v3080 = vunpack.c.l.s4 1983009808
  %v3081 = vunpack.c.0.s8 %v3080
  %v3082 = vlaneseq
  %v3083 = vshrl.u32 %v3082, 7
  %v3084 = vsub.s32 %v3081, %v3083
  %v3085 = vrot.slane %v3078, %v3084
  %v3086 = vcombine.low %v3061, %v3069
  %v3087 = vcombine.high %v3061, %v3069
  %v3089 = vunpack.c.l.s4 1934713408
  %v3090 = vunpack.c.0.s8 %v3089
  %v3091 = vlaneseq
  %v3092 = vshrl.u32 %v3091, 7
  %v3093 = vsub.s32 %v3090, %v3092
  %v3094 = vrot.slane %v3086, %v3093
  %v3096 = vunpack.c.l.s4 1934713408
  %v3097 = vunpack.c.0.s8 %v3096
  %v3098 = vlaneseq
  %v3099 = vshrl.u32 %v3098, 7
  %v3100 = vsub.s32 %v3097, %v3099
  %v3101 = vrot.slane %v3087, %v3100
  %v3102 = vcombine.low %v3077, %v3085
  %v3103 = vcombine.high %v3077, %v3085
  %v3105 = vunpack.c.l.s4 1934713408
  %v3106 = vunpack.c.0.s8 %v3105
  %v3107 = vlaneseq
  %v3108 = vshrl.u32 %v3107, 7
  %v3109 = vsub.s32 %v3106, %v3108
  %v3110 = vrot.slane %v3102, %v3109
  %v3112 = vunpack.c.l.s4 1934713408
  %v3113 = vunpack.c.0.s8 %v3112
  %v3114 = vlaneseq
  %v3115 = vshrl.u32 %v3114, 7
  %v3116 = vsub.s32 %v3113, %v3115
  %v3117 = vrot.slane %v3103, %v3116
  %v3118 = vcombine.low %v3094, %v3110
  %v3119 = vcombine.high %v3094, %v3110
  %v3120 = vcombine.low %v3101, %v3117
  %v3121 = vcombine.high %v3101, %v3117
  %v3122 = vcombine.low %v3026, %v3033
  %v3124 = vunpack.c.l.s4 1983009808
  %v3125 = vunpack.c.0.s8 %v3124
  %v3126 = vlaneseq
  %v3127 = vshrl.u32 %v3126, 7
  %v3128 = vsub.s32 %v3125, %v3127
  %v3129 = vrot.slane %v3122, %v3128
  %v3130 = vcombine.low %v3050, %v3051
  %v3132 = vunpack.c.l.s4 1983009808
  %v3133 = vunpack.c.0.s8 %v3132
  %v3134 = vlaneseq
  %v3135 = vshrl.u32 %v3134, 7
  %v3136 = vsub.s32 %v3133, %v3135
  %v3137 = vrot.slane %v3130, %v3136
  %v3138 = vcombine.low %v3042, %v3049
  %v3140 = vunpack.c.l.s4 1983009808
  %v3141 = vunpack.c.0.s8 %v3140
  %v3142 = vlaneseq
  %v3143 = vshrl.u32 %v3142, 7
  %v3144 = vsub.s32 %v3141, %v3143
  %v3145 = vrot.slane %v3138, %v3144
  %v3146 = vcombine.low %v3052, %v3053
  %v3148 = vunpack.c.l.s4 1983009808
  %v3149 = vunpack.c.0.s8 %v3148
  %v3150 = vlaneseq
  %v3151 = vshrl.u32 %v3150, 7
  %v3152 = vsub.s32 %v3149, %v3151
  %v3153 = vrot.slane %v3146, %v3152
  %v3154 = vcombine.low %v3129, %v3137
  %v3155 = vcombine.high %v3129, %v3137
  %v3157 = vunpack.c.l.s4 1934713408
  %v3158 = vunpack.c.0.s8 %v3157
  %v3159 = vlaneseq
  %v3160 = vshrl.u32 %v3159, 7
  %v3161 = vsub.s32 %v3158, %v3160
  %v3162 = vrot.slane %v3154, %v3161
  %v3164 = vunpack.c.l.s4 1934713408
  %v3165 = vunpack.c.0.s8 %v3164
  %v3166 = vlaneseq
  %v3167 = vshrl.u32 %v3166, 7
  %v3168 = vsub.s32 %v3165, %v3167
  %v3169 = vrot.slane %v3155, %v3168
  %v3170 = vcombine.low %v3145, %v3153
  %v3171 = vcombine.high %v3145, %v3153
  %v3173 = vunpack.c.l.s4 1934713408
  %v3174 = vunpack.c.0.s8 %v3173
  %v3175 = vlaneseq
  %v3176 = vshrl.u32 %v3175, 7
  %v3177 = vsub.s32 %v3174, %v3176
  %v3178 = vrot.slane %v3170, %v3177
  %v3180 = vunpack.c.l.s4 1934713408
  %v3181 = vunpack.c.0.s8 %v3180
  %v3182 = vlaneseq
  %v3183 = vshrl.u32 %v3182, 7
  %v3184 = vsub.s32 %v3181, %v3183
  %v3185 = vrot.slane %v3171, %v3184
  %v3186 = vcombine.low %v3162, %v3178
  %v3187 = vcombine.high %v3162, %v3178
  %v3188 = vcombine.low %v3169, %v3185
  %v3189 = vcombine.high %v3169, %v3185
  %3190 = vrot.lane.b32.xlu0 %v2594, 64
  %v3191 = vpop.permute.xlu0 %3190
  %3192 = vrot.lane.b32.xlu0 %v2599, 64
  %v3193 = vpop.permute.xlu0 %3192
  %3194 = vrot.lane.b32.xlu0 %v2605, 64
  %v3195 = vpop.permute.xlu0 %3194
  %3196 = vrot.lane.b32.xlu0 %v2607, 64
  %v3197 = vpop.permute.xlu0 %3196
  %3198 = vrot.lane.b32.xlu0 %v2611, 64
  %v3199 = vpop.permute.xlu0 %3198
  %3200 = vrot.lane.b32.xlu0 %v2613, 64
  %v3201 = vpop.permute.xlu0 %3200
  %3202 = vrot.lane.b32.xlu0 %v2617, 64
  %v3203 = vpop.permute.xlu0 %3202
  %3204 = vrot.lane.b32.xlu0 %v2619, 64
  %v3205 = vpop.permute.xlu0 %3204
  %v3214 = vcombine.low %v3191, %v3199
  %v3215 = vcombine.high %v3191, %v3199
  %v3217 = vunpack.c.l.s4 1983009808
  %v3218 = vunpack.c.0.s8 %v3217
  %v3219 = vlaneseq
  %v3220 = vshrl.u32 %v3219, 7
  %v3221 = vsub.s32 %v3218, %v3220
  %v3222 = vrot.slane %v3214, %v3221
  %v3224 = vunpack.c.l.s4 1983009808
  %v3225 = vunpack.c.0.s8 %v3224
  %v3226 = vlaneseq
  %v3227 = vshrl.u32 %v3226, 7
  %v3228 = vsub.s32 %v3225, %v3227
  %v3229 = vrot.slane %v3215, %v3228
  %v3230 = vcombine.low %v3195, %v3203
  %v3231 = vcombine.high %v3195, %v3203
  %v3233 = vunpack.c.l.s4 1983009808
  %v3234 = vunpack.c.0.s8 %v3233
  %v3235 = vlaneseq
  %v3236 = vshrl.u32 %v3235, 7
  %v3237 = vsub.s32 %v3234, %v3236
  %v3238 = vrot.slane %v3230, %v3237
  %v3240 = vunpack.c.l.s4 1983009808
  %v3241 = vunpack.c.0.s8 %v3240
  %v3242 = vlaneseq
  %v3243 = vshrl.u32 %v3242, 7
  %v3244 = vsub.s32 %v3241, %v3243
  %v3245 = vrot.slane %v3231, %v3244
  %v3246 = vcombine.low %v3222, %v3238
  %v3247 = vcombine.high %v3222, %v3238
  %v3249 = vunpack.c.l.s4 1934713408
  %v3250 = vunpack.c.0.s8 %v3249
  %v3251 = vlaneseq
  %v3252 = vshrl.u32 %v3251, 7
  %v3253 = vsub.s32 %v3250, %v3252
  %v3254 = vrot.slane %v3246, %v3253
  %v3256 = vunpack.c.l.s4 1934713408
  %v3257 = vunpack.c.0.s8 %v3256
  %v3258 = vlaneseq
  %v3259 = vshrl.u32 %v3258, 7
  %v3260 = vsub.s32 %v3257, %v3259
  %v3261 = vrot.slane %v3247, %v3260
  %v3262 = vcombine.low %v3229, %v3245
  %v3263 = vcombine.high %v3229, %v3245
  %v3265 = vunpack.c.l.s4 1934713408
  %v3266 = vunpack.c.0.s8 %v3265
  %v3267 = vlaneseq
  %v3268 = vshrl.u32 %v3267, 7
  %v3269 = vsub.s32 %v3266, %v3268
  %v3270 = vrot.slane %v3262, %v3269
  %v3272 = vunpack.c.l.s4 1934713408
  %v3273 = vunpack.c.0.s8 %v3272
  %v3274 = vlaneseq
  %v3275 = vshrl.u32 %v3274, 7
  %v3276 = vsub.s32 %v3273, %v3275
  %v3277 = vrot.slane %v3263, %v3276
  %v3278 = vcombine.high %v3254, 0.0
  %v3279 = vcombine.high %v3261, 0.0
  %v3280 = vcombine.high %v3270, 0.0
  %v3281 = vcombine.high %v3277, 0.0
  %v3282 = vcombine.low %v3193, %v3201
  %v3283 = vcombine.high %v3193, %v3201
  %v3285 = vunpack.c.l.s4 1983009808
  %v3286 = vunpack.c.0.s8 %v3285
  %v3287 = vlaneseq
  %v3288 = vshrl.u32 %v3287, 7
  %v3289 = vsub.s32 %v3286, %v3288
  %v3290 = vrot.slane %v3282, %v3289
  %v3292 = vunpack.c.l.s4 1983009808
  %v3293 = vunpack.c.0.s8 %v3292
  %v3294 = vlaneseq
  %v3295 = vshrl.u32 %v3294, 7
  %v3296 = vsub.s32 %v3293, %v3295
  %v3297 = vrot.slane %v3283, %v3296
  %v3298 = vcombine.low %v3197, %v3205
  %v3299 = vcombine.high %v3197, %v3205
  %v3301 = vunpack.c.l.s4 1983009808
  %v3302 = vunpack.c.0.s8 %v3301
  %v3303 = vlaneseq
  %v3304 = vshrl.u32 %v3303, 7
  %v3305 = vsub.s32 %v3302, %v3304
  %v3306 = vrot.slane %v3298, %v3305
  %v3308 = vunpack.c.l.s4 1983009808
  %v3309 = vunpack.c.0.s8 %v3308
  %v3310 = vlaneseq
  %v3311 = vshrl.u32 %v3310, 7
  %v3312 = vsub.s32 %v3309, %v3311
  %v3313 = vrot.slane %v3299, %v3312
  %v3314 = vcombine.low %v3290, %v3306
  %v3315 = vcombine.high %v3290, %v3306
  %v3317 = vunpack.c.l.s4 1934713408
  %v3318 = vunpack.c.0.s8 %v3317
  %v3319 = vlaneseq
  %v3320 = vshrl.u32 %v3319, 7
  %v3321 = vsub.s32 %v3318, %v3320
  %v3322 = vrot.slane %v3314, %v3321
  %v3324 = vunpack.c.l.s4 1934713408
  %v3325 = vunpack.c.0.s8 %v3324
  %v3326 = vlaneseq
  %v3327 = vshrl.u32 %v3326, 7
  %v3328 = vsub.s32 %v3325, %v3327
  %v3329 = vrot.slane %v3315, %v3328
  %v3330 = vcombine.low %v3297, %v3313
  %v3331 = vcombine.high %v3297, %v3313
  %v3333 = vunpack.c.l.s4 1934713408
  %v3334 = vunpack.c.0.s8 %v3333
  %v3335 = vlaneseq
  %v3336 = vshrl.u32 %v3335, 7
  %v3337 = vsub.s32 %v3334, %v3336
  %v3338 = vrot.slane %v3330, %v3337
  %v3340 = vunpack.c.l.s4 1934713408
  %v3341 = vunpack.c.0.s8 %v3340
  %v3342 = vlaneseq
  %v3343 = vshrl.u32 %v3342, 7
  %v3344 = vsub.s32 %v3341, %v3343
  %v3345 = vrot.slane %v3331, %v3344
  %v3346 = vcombine.high %v3322, 0.0
  %v3347 = vcombine.high %v3329, 0.0
  %v3348 = vcombine.high %v3338, 0.0
  %v3349 = vcombine.high %v3345, 0.0
  %v3350 = vcombine.low %v3254, %v3261
  %v3352 = vunpack.c.l.s4 1983009808
  %v3353 = vunpack.c.0.s8 %v3352
  %v3354 = vlaneseq
  %v3355 = vshrl.u32 %v3354, 7
  %v3356 = vsub.s32 %v3353, %v3355
  %v3357 = vrot.slane %v3350, %v3356
  %v3358 = vcombine.low %v3278, %v3279
  %v3360 = vunpack.c.l.s4 1983009808
  %v3361 = vunpack.c.0.s8 %v3360
  %v3362 = vlaneseq
  %v3363 = vshrl.u32 %v3362, 7
  %v3364 = vsub.s32 %v3361, %v3363
  %v3365 = vrot.slane %v3358, %v3364
  %v3366 = vcombine.low %v3270, %v3277
  %v3368 = vunpack.c.l.s4 1983009808
  %v3369 = vunpack.c.0.s8 %v3368
  %v3370 = vlaneseq
  %v3371 = vshrl.u32 %v3370, 7
  %v3372 = vsub.s32 %v3369, %v3371
  %v3373 = vrot.slane %v3366, %v3372
  %v3374 = vcombine.low %v3280, %v3281
  %v3376 = vunpack.c.l.s4 1983009808
  %v3377 = vunpack.c.0.s8 %v3376
  %v3378 = vlaneseq
  %v3379 = vshrl.u32 %v3378, 7
  %v3380 = vsub.s32 %v3377, %v3379
  %v3381 = vrot.slane %v3374, %v3380
  %v3382 = vcombine.low %v3357, %v3365
  %v3383 = vcombine.high %v3357, %v3365
  %v3385 = vunpack.c.l.s4 1934713408
  %v3386 = vunpack.c.0.s8 %v3385
  %v3387 = vlaneseq
  %v3388 = vshrl.u32 %v3387, 7
  %v3389 = vsub.s32 %v3386, %v3388
  %v3390 = vrot.slane %v3382, %v3389
  %v3392 = vunpack.c.l.s4 1934713408
  %v3393 = vunpack.c.0.s8 %v3392
  %v3394 = vlaneseq
  %v3395 = vshrl.u32 %v3394, 7
  %v3396 = vsub.s32 %v3393, %v3395
  %v3397 = vrot.slane %v3383, %v3396
  %v3398 = vcombine.low %v3373, %v3381
  %v3399 = vcombine.high %v3373, %v3381
  %v3401 = vunpack.c.l.s4 1934713408
  %v3402 = vunpack.c.0.s8 %v3401
  %v3403 = vlaneseq
  %v3404 = vshrl.u32 %v3403, 7
  %v3405 = vsub.s32 %v3402, %v3404
  %v3406 = vrot.slane %v3398, %v3405
  %v3408 = vunpack.c.l.s4 1934713408
  %v3409 = vunpack.c.0.s8 %v3408
  %v3410 = vlaneseq
  %v3411 = vshrl.u32 %v3410, 7
  %v3412 = vsub.s32 %v3409, %v3411
  %v3413 = vrot.slane %v3399, %v3412
  %v3414 = vcombine.low %v3390, %v3406
  %v3415 = vcombine.high %v3390, %v3406
  %v3416 = vcombine.low %v3397, %v3413
  %v3417 = vcombine.high %v3397, %v3413
  %v3418 = vcombine.low %v3322, %v3329
  %v3420 = vunpack.c.l.s4 1983009808
  %v3421 = vunpack.c.0.s8 %v3420
  %v3422 = vlaneseq
  %v3423 = vshrl.u32 %v3422, 7
  %v3424 = vsub.s32 %v3421, %v3423
  %v3425 = vrot.slane %v3418, %v3424
  %v3426 = vcombine.low %v3346, %v3347
  %v3428 = vunpack.c.l.s4 1983009808
  %v3429 = vunpack.c.0.s8 %v3428
  %v3430 = vlaneseq
  %v3431 = vshrl.u32 %v3430, 7
  %v3432 = vsub.s32 %v3429, %v3431
  %v3433 = vrot.slane %v3426, %v3432
  %v3434 = vcombine.low %v3338, %v3345
  %v3436 = vunpack.c.l.s4 1983009808
  %v3437 = vunpack.c.0.s8 %v3436
  %v3438 = vlaneseq
  %v3439 = vshrl.u32 %v3438, 7
  %v3440 = vsub.s32 %v3437, %v3439
  %v3441 = vrot.slane %v3434, %v3440
  %v3442 = vcombine.low %v3348, %v3349
  %v3444 = vunpack.c.l.s4 1983009808
  %v3445 = vunpack.c.0.s8 %v3444
  %v3446 = vlaneseq
  %v3447 = vshrl.u32 %v3446, 7
  %v3448 = vsub.s32 %v3445, %v3447
  %v3449 = vrot.slane %v3442, %v3448
  %v3450 = vcombine.low %v3425, %v3433
  %v3451 = vcombine.high %v3425, %v3433
  %v3453 = vunpack.c.l.s4 1934713408
  %v3454 = vunpack.c.0.s8 %v3453
  %v3455 = vlaneseq
  %v3456 = vshrl.u32 %v3455, 7
  %v3457 = vsub.s32 %v3454, %v3456
  %v3458 = vrot.slane %v3450, %v3457
  %v3460 = vunpack.c.l.s4 1934713408
  %v3461 = vunpack.c.0.s8 %v3460
  %v3462 = vlaneseq
  %v3463 = vshrl.u32 %v3462, 7
  %v3464 = vsub.s32 %v3461, %v3463
  %v3465 = vrot.slane %v3451, %v3464
  %v3466 = vcombine.low %v3441, %v3449
  %v3467 = vcombine.high %v3441, %v3449
  %v3469 = vunpack.c.l.s4 1934713408
  %v3470 = vunpack.c.0.s8 %v3469
  %v3471 = vlaneseq
  %v3472 = vshrl.u32 %v3471, 7
  %v3473 = vsub.s32 %v3470, %v3472
  %v3474 = vrot.slane %v3466, %v3473
  %v3476 = vunpack.c.l.s4 1934713408
  %v3477 = vunpack.c.0.s8 %v3476
  %v3478 = vlaneseq
  %v3479 = vshrl.u32 %v3478, 7
  %v3480 = vsub.s32 %v3477, %v3479
  %v3481 = vrot.slane %v3467, %v3480
  %v3482 = vcombine.low %v3458, %v3474
  %v3483 = vcombine.high %v3458, %v3474
  %v3484 = vcombine.low %v3465, %v3481
  %v3485 = vcombine.high %v3465, %v3481
  %v3487 = vsel %vm1065, %v2822, 0
  %v3490 = vsel %vm1065, %v2890, 0
  %v3493 = vsel %vm1065, %v3118, 0
  %v3496 = vsel %vm1065, %v3186, 0
  %3498 = vmatprep.subr.mxu0 0.0
  %3499 = vmatpush1.xpose.msra.mxu0 %v3493
  %3500 = vmatprep.subr.mxu0 0.0
  %3501 = vmatpush1.xpose.msra.mxu0 %v3496
  %3502 = vmatprep.subr.mxu0 0.0
  %3503 = vmatpush1.xpose.msra.mxu0 0.0
  %3504 = vmatprep.subr.mxu0 0.0
  %3505 = vmatpush1.xpose.msra.mxu0 0.0
  %3506 = vmatprep.subr.mxu0 0.0
  %3507 = vmatpush1.xpose.msra.mxu0 0.0
  %3508 = vmatprep.subr.mxu0 0.0
  %3509 = vmatpush1.xpose.msra.mxu0 0.0
  %3510 = vmatprep.subr.mxu0 0.0
  %3511 = vmatpush1.xpose.msra.mxu0 0.0
  %3512 = vmatprep.subr.mxu0 0.0
  %3513 = vmatpush1.xpose.msra.mxu0 0.0
  %3514 = vmatprep.subr.mxu0 0.0
  %3515 = vmatpush1.xpose.msra.mxu0 0.0
  %3516 = vmatprep.subr.mxu0 0.0
  %3517 = vmatpush1.xpose.msra.mxu0 0.0
  %3518 = vmatprep.subr.mxu0 0.0
  %3519 = vmatpush1.xpose.msra.mxu0 0.0
  %3520 = vmatprep.subr.mxu0 0.0
  %3521 = vmatpush1.xpose.msra.mxu0 0.0
  %3522 = vmatprep.subr.mxu0 0.0
  %3523 = vmatpush1.xpose.msra.mxu0 0.0
  %3524 = vmatprep.subr.mxu0 0.0
  %3525 = vmatpush1.xpose.msra.mxu0 0.0
  %3526 = vmatprep.subr.mxu0 0.0
  %3527 = vmatpush1.xpose.msra.mxu0 0.0
  %3528 = vmatprep.subr.mxu0 0.0
  %3529 = vmatpush1.xpose.msra.mxu0 0.0
  %3530 = vmatprep.subr.mxu0 0.0
  %3531 = vmatpush1.xpose.msra.mxu0 0.0
  %3532 = vmatprep.subr.mxu0 0.0
  %3533 = vmatpush1.xpose.msra.mxu0 0.0
  %3534 = vmatprep.subr.mxu0 0.0
  %3535 = vmatpush1.xpose.msra.mxu0 0.0
  %3536 = vmatprep.subr.mxu0 0.0
  %3537 = vmatpush1.xpose.msra.mxu0 0.0
  %3538 = vmatprep.subr.mxu0 0.0
  %3539 = vmatpush1.xpose.msra.mxu0 0.0
  %3540 = vmatprep.subr.mxu0 0.0
  %3541 = vmatpush1.xpose.msra.mxu0 0.0
  %3542 = vmatprep.subr.mxu0 0.0
  %3543 = vmatpush1.xpose.msra.mxu0 0.0
  %3544 = vmatprep.subr.mxu0 0.0
  %3545 = vmatpush1.xpose.msra.mxu0 0.0
  %3546 = vmatprep.subr.mxu0 0.0
  %3547 = vmatpush1.xpose.msra.mxu0 0.0
  %3548 = vmatprep.subr.mxu0 0.0
  %3549 = vmatpush1.xpose.msra.mxu0 0.0
  %3550 = vmatprep.subr.mxu0 0.0
  %3551 = vmatpush1.xpose.msra.mxu0 0.0
  %3552 = vmatprep.subr.mxu0 0.0
  %3553 = vmatpush1.xpose.msra.mxu0 0.0
  %3554 = vmatprep.subr.mxu0 0.0
  %3555 = vmatpush1.xpose.msra.mxu0 0.0
  %3556 = vmatprep.subr.mxu0 0.0
  %3557 = vmatpush1.xpose.msra.mxu0 0.0
  %3558 = vmatprep.subr.mxu0 0.0
  %3559 = vmatpush1.xpose.msra.mxu0 0.0
  %3560 = vmatprep.subr.mxu0 0.0
  %3561 = vmatpush1.xpose.msra.mxu0 0.0
  %3562 = vmatprep.mubr.f32.mxu0 0.0
  %3563 = vmatmul.mubr.f32.gmra.mrb[0].mxu0 %v3487
  %v3564 = vpop.f32.mrb[0].mxu0
  %v3565 = vadd.f32 %v29, %v3564
  %v3566 = vpop.f32.mrb[0].mxu0
  %3567 = vmatprep.mubr.f32.mxu0 0.0
  %3568 = vmatmul.mubr.f32.gmra.mrb[0].mxu0 %v3490
  %v3569 = vpop.f32.mrb[0].mxu0
  %v3570 = vadd.f32 %v30, %v3569
  %v3571 = vpop.f32.mrb[0].mxu0
  %3572 = vdwg.mxu0
  %v3574 = vsel %vm1065, %v2823, 0
  %v3577 = vsel %vm1065, %v2891, 0
  %v3580 = vsel %vm1065, %v3119, 0
  %v3583 = vsel %vm1065, %v3187, 0
  %3585 = vmatprep.subr.mxu0 0.0
  %3586 = vmatpush1.xpose.msra.mxu0 %v3580
  %3587 = vmatprep.subr.mxu0 0.0
  %3588 = vmatpush1.xpose.msra.mxu0 %v3583
  %3589 = vmatprep.subr.mxu0 0.0
  %3590 = vmatpush1.xpose.msra.mxu0 0.0
  %3591 = vmatprep.subr.mxu0 0.0
  %3592 = vmatpush1.xpose.msra.mxu0 0.0
  %3593 = vmatprep.subr.mxu0 0.0
  %3594 = vmatpush1.xpose.msra.mxu0 0.0
  %3595 = vmatprep.subr.mxu0 0.0
  %3596 = vmatpush1.xpose.msra.mxu0 0.0
  %3597 = vmatprep.subr.mxu0 0.0
  %3598 = vmatpush1.xpose.msra.mxu0 0.0
  %3599 = vmatprep.subr.mxu0 0.0
  %3600 = vmatpush1.xpose.msra.mxu0 0.0
  %3601 = vmatprep.subr.mxu0 0.0
  %3602 = vmatpush1.xpose.msra.mxu0 0.0
  %3603 = vmatprep.subr.mxu0 0.0
  %3604 = vmatpush1.xpose.msra.mxu0 0.0
  %3605 = vmatprep.subr.mxu0 0.0
  %3606 = vmatpush1.xpose.msra.mxu0 0.0
  %3607 = vmatprep.subr.mxu0 0.0
  %3608 = vmatpush1.xpose.msra.mxu0 0.0
  %3609 = vmatprep.subr.mxu0 0.0
  %3610 = vmatpush1.xpose.msra.mxu0 0.0
  %3611 = vmatprep.subr.mxu0 0.0
  %3612 = vmatpush1.xpose.msra.mxu0 0.0
  %3613 = vmatprep.subr.mxu0 0.0
  %3614 = vmatpush1.xpose.msra.mxu0 0.0
  %3615 = vmatprep.subr.mxu0 0.0
  %3616 = vmatpush1.xpose.msra.mxu0 0.0
  %3617 = vmatprep.subr.mxu0 0.0
  %3618 = vmatpush1.xpose.msra.mxu0 0.0
  %3619 = vmatprep.subr.mxu0 0.0
  %3620 = vmatpush1.xpose.msra.mxu0 0.0
  %3621 = vmatprep.subr.mxu0 0.0
  %3622 = vmatpush1.xpose.msra.mxu0 0.0
  %3623 = vmatprep.subr.mxu0 0.0
  %3624 = vmatpush1.xpose.msra.mxu0 0.0
  %3625 = vmatprep.subr.mxu0 0.0
  %3626 = vmatpush1.xpose.msra.mxu0 0.0
  %3627 = vmatprep.subr.mxu0 0.0
  %3628 = vmatpush1.xpose.msra.mxu0 0.0
  %3629 = vmatprep.subr.mxu0 0.0
  %3630 = vmatpush1.xpose.msra.mxu0 0.0
  %3631 = vmatprep.subr.mxu0 0.0
  %3632 = vmatpush1.xpose.msra.mxu0 0.0
  %3633 = vmatprep.subr.mxu0 0.0
  %3634 = vmatpush1.xpose.msra.mxu0 0.0
  %3635 = vmatprep.subr.mxu0 0.0
  %3636 = vmatpush1.xpose.msra.mxu0 0.0
  %3637 = vmatprep.subr.mxu0 0.0
  %3638 = vmatpush1.xpose.msra.mxu0 0.0
  %3639 = vmatprep.subr.mxu0 0.0
  %3640 = vmatpush1.xpose.msra.mxu0 0.0
  %3641 = vmatprep.subr.mxu0 0.0
  %3642 = vmatpush1.xpose.msra.mxu0 0.0
  %3643 = vmatprep.subr.mxu0 0.0
  %3644 = vmatpush1.xpose.msra.mxu0 0.0
  %3645 = vmatprep.subr.mxu0 0.0
  %3646 = vmatpush1.xpose.msra.mxu0 0.0
  %3647 = vmatprep.subr.mxu0 0.0
  %3648 = vmatpush1.xpose.msra.mxu0 0.0
  %3649 = vmatprep.mubr.f32.mxu0 0.0
  %3650 = vmatmul.mubr.f32.gmra.mrb[0].mxu0 %v3574
  %v3651 = vpop.f32.mrb[0].mxu0
  %v3652 = vadd.f32 %v29, %v3651
  %v3653 = vpop.f32.mrb[0].mxu0
  %3654 = vmatprep.mubr.f32.mxu0 0.0
  %3655 = vmatmul.mubr.f32.gmra.mrb[0].mxu0 %v3577
  %v3656 = vpop.f32.mrb[0].mxu0
  %v3657 = vadd.f32 %v30, %v3656
  %v3658 = vpop.f32.mrb[0].mxu0
  %3659 = vdwg.mxu0
  %v3661 = vsel %vm1065, %v2824, 0
  %v3664 = vsel %vm1065, %v2892, 0
  %v3667 = vsel %vm1065, %v3120, 0
  %v3670 = vsel %vm1065, %v3188, 0
  %3672 = vmatprep.subr.mxu0 0.0
  %3673 = vmatpush1.xpose.msra.mxu0 %v3667
  %3674 = vmatprep.subr.mxu0 0.0
  %3675 = vmatpush1.xpose.msra.mxu0 %v3670
  %3676 = vmatprep.subr.mxu0 0.0
  %3677 = vmatpush1.xpose.msra.mxu0 0.0
  %3678 = vmatprep.subr.mxu0 0.0
  %3679 = vmatpush1.xpose.msra.mxu0 0.0
  %3680 = vmatprep.subr.mxu0 0.0
  %3681 = vmatpush1.xpose.msra.mxu0 0.0
  %3682 = vmatprep.subr.mxu0 0.0
  %3683 = vmatpush1.xpose.msra.mxu0 0.0
  %3684 = vmatprep.subr.mxu0 0.0
  %3685 = vmatpush1.xpose.msra.mxu0 0.0
  %3686 = vmatprep.subr.mxu0 0.0
  %3687 = vmatpush1.xpose.msra.mxu0 0.0
  %3688 = vmatprep.subr.mxu0 0.0
  %3689 = vmatpush1.xpose.msra.mxu0 0.0
  %3690 = vmatprep.subr.mxu0 0.0
  %3691 = vmatpush1.xpose.msra.mxu0 0.0
  %3692 = vmatprep.subr.mxu0 0.0
  %3693 = vmatpush1.xpose.msra.mxu0 0.0
  %3694 = vmatprep.subr.mxu0 0.0
  %3695 = vmatpush1.xpose.msra.mxu0 0.0
  %3696 = vmatprep.subr.mxu0 0.0
  %3697 = vmatpush1.xpose.msra.mxu0 0.0
  %3698 = vmatprep.subr.mxu0 0.0
  %3699 = vmatpush1.xpose.msra.mxu0 0.0
  %3700 = vmatprep.subr.mxu0 0.0
  %3701 = vmatpush1.xpose.msra.mxu0 0.0
  %3702 = vmatprep.subr.mxu0 0.0
  %3703 = vmatpush1.xpose.msra.mxu0 0.0
  %3704 = vmatprep.subr.mxu0 0.0
  %3705 = vmatpush1.xpose.msra.mxu0 0.0
  %3706 = vmatprep.subr.mxu0 0.0
  %3707 = vmatpush1.xpose.msra.mxu0 0.0
  %3708 = vmatprep.subr.mxu0 0.0
  %3709 = vmatpush1.xpose.msra.mxu0 0.0
  %3710 = vmatprep.subr.mxu0 0.0
  %3711 = vmatpush1.xpose.msra.mxu0 0.0
  %3712 = vmatprep.subr.mxu0 0.0
  %3713 = vmatpush1.xpose.msra.mxu0 0.0
  %3714 = vmatprep.subr.mxu0 0.0
  %3715 = vmatpush1.xpose.msra.mxu0 0.0
  %3716 = vmatprep.subr.mxu0 0.0
  %3717 = vmatpush1.xpose.msra.mxu0 0.0
  %3718 = vmatprep.subr.mxu0 0.0
  %3719 = vmatpush1.xpose.msra.mxu0 0.0
  %3720 = vmatprep.subr.mxu0 0.0
  %3721 = vmatpush1.xpose.msra.mxu0 0.0
  %3722 = vmatprep.subr.mxu0 0.0
  %3723 = vmatpush1.xpose.msra.mxu0 0.0
  %3724 = vmatprep.subr.mxu0 0.0
  %3725 = vmatpush1.xpose.msra.mxu0 0.0
  %3726 = vmatprep.subr.mxu0 0.0
  %3727 = vmatpush1.xpose.msra.mxu0 0.0
  %3728 = vmatprep.subr.mxu0 0.0
  %3729 = vmatpush1.xpose.msra.mxu0 0.0
  %3730 = vmatprep.subr.mxu0 0.0
  %3731 = vmatpush1.xpose.msra.mxu0 0.0
  %3732 = vmatprep.subr.mxu0 0.0
  %3733 = vmatpush1.xpose.msra.mxu0 0.0
  %3734 = vmatprep.subr.mxu0 0.0
  %3735 = vmatpush1.xpose.msra.mxu0 0.0
  %3736 = vmatprep.mubr.f32.mxu0 0.0
  %3737 = vmatmul.mubr.f32.gmra.mrb[0].mxu0 %v3661
  %v3738 = vpop.f32.mrb[0].mxu0
  %v3739 = vadd.f32 %v29, %v3738
  %v3740 = vpop.f32.mrb[0].mxu0
  %3741 = vmatprep.mubr.f32.mxu0 0.0
  %3742 = vmatmul.mubr.f32.gmra.mrb[0].mxu0 %v3664
  %v3743 = vpop.f32.mrb[0].mxu0
  %v3744 = vadd.f32 %v30, %v3743
  %v3745 = vpop.f32.mrb[0].mxu0
  %3746 = vdwg.mxu0
  %v3748 = vsel %vm1065, %v2825, 0
  %v3751 = vsel %vm1065, %v2893, 0
  %v3754 = vsel %vm1065, %v3121, 0
  %v3757 = vsel %vm1065, %v3189, 0
  %3759 = vmatprep.subr.mxu0 0.0
  %3760 = vmatpush1.xpose.msra.mxu0 %v3754
  %3761 = vmatprep.subr.mxu0 0.0
  %3762 = vmatpush1.xpose.msra.mxu0 %v3757
  %3763 = vmatprep.subr.mxu0 0.0
  %3764 = vmatpush1.xpose.msra.mxu0 0.0
  %3765 = vmatprep.subr.mxu0 0.0
  %3766 = vmatpush1.xpose.msra.mxu0 0.0
  %3767 = vmatprep.subr.mxu0 0.0
  %3768 = vmatpush1.xpose.msra.mxu0 0.0
  %3769 = vmatprep.subr.mxu0 0.0
  %3770 = vmatpush1.xpose.msra.mxu0 0.0
  %3771 = vmatprep.subr.mxu0 0.0
  %3772 = vmatpush1.xpose.msra.mxu0 0.0
  %3773 = vmatprep.subr.mxu0 0.0
  %3774 = vmatpush1.xpose.msra.mxu0 0.0
  %3775 = vmatprep.subr.mxu0 0.0
  %3776 = vmatpush1.xpose.msra.mxu0 0.0
  %3777 = vmatprep.subr.mxu0 0.0
  %3778 = vmatpush1.xpose.msra.mxu0 0.0
  %3779 = vmatprep.subr.mxu0 0.0
  %3780 = vmatpush1.xpose.msra.mxu0 0.0
  %3781 = vmatprep.subr.mxu0 0.0
  %3782 = vmatpush1.xpose.msra.mxu0 0.0
  %3783 = vmatprep.subr.mxu0 0.0
  %3784 = vmatpush1.xpose.msra.mxu0 0.0
  %3785 = vmatprep.subr.mxu0 0.0
  %3786 = vmatpush1.xpose.msra.mxu0 0.0
  %3787 = vmatprep.subr.mxu0 0.0
  %3788 = vmatpush1.xpose.msra.mxu0 0.0
  %3789 = vmatprep.subr.mxu0 0.0
  %3790 = vmatpush1.xpose.msra.mxu0 0.0
  %3791 = vmatprep.subr.mxu0 0.0
  %3792 = vmatpush1.xpose.msra.mxu0 0.0
  %3793 = vmatprep.subr.mxu0 0.0
  %3794 = vmatpush1.xpose.msra.mxu0 0.0
  %3795 = vmatprep.subr.mxu0 0.0
  %3796 = vmatpush1.xpose.msra.mxu0 0.0
  %3797 = vmatprep.subr.mxu0 0.0
  %3798 = vmatpush1.xpose.msra.mxu0 0.0
  %3799 = vmatprep.subr.mxu0 0.0
  %3800 = vmatpush1.xpose.msra.mxu0 0.0
  %3801 = vmatprep.subr.mxu0 0.0
  %3802 = vmatpush1.xpose.msra.mxu0 0.0
  %3803 = vmatprep.subr.mxu0 0.0
  %3804 = vmatpush1.xpose.msra.mxu0 0.0
  %3805 = vmatprep.subr.mxu0 0.0
  %3806 = vmatpush1.xpose.msra.mxu0 0.0
  %3807 = vmatprep.subr.mxu0 0.0
  %3808 = vmatpush1.xpose.msra.mxu0 0.0
  %3809 = vmatprep.subr.mxu0 0.0
  %3810 = vmatpush1.xpose.msra.mxu0 0.0
  %3811 = vmatprep.subr.mxu0 0.0
  %3812 = vmatpush1.xpose.msra.mxu0 0.0
  %3813 = vmatprep.subr.mxu0 0.0
  %3814 = vmatpush1.xpose.msra.mxu0 0.0
  %3815 = vmatprep.subr.mxu0 0.0
  %3816 = vmatpush1.xpose.msra.mxu0 0.0
  %3817 = vmatprep.subr.mxu0 0.0
  %3818 = vmatpush1.xpose.msra.mxu0 0.0
  %3819 = vmatprep.subr.mxu0 0.0
  %3820 = vmatpush1.xpose.msra.mxu0 0.0
  %3821 = vmatprep.subr.mxu0 0.0
  %3822 = vmatpush1.xpose.msra.mxu0 0.0
  %3823 = vmatprep.mubr.f32.mxu0 0.0
  %3824 = vmatmul.mubr.f32.gmra.mrb[0].mxu0 %v3748
  %v3825 = vpop.f32.mrb[0].mxu0
  %v3826 = vadd.f32 %v29, %v3825
  %v3827 = vpop.f32.mrb[0].mxu0
  %3828 = vmatprep.mubr.f32.mxu0 0.0
  %3829 = vmatmul.mubr.f32.gmra.mrb[0].mxu0 %v3751
  %v3830 = vpop.f32.mrb[0].mxu0
  %v3831 = vadd.f32 %v30, %v3830
  %v3832 = vpop.f32.mrb[0].mxu0
  %3833 = vdwg.mxu0
  %v3834 = vsel %vm1414, %v3565, -inf
  %3835 = vmax.xlane.f32.xlu0 %v3834
  %v3836 = vpop.xlane.xlu0 %3835
  %v3837 = vsel %vm1414, %v3570, -inf
  %3838 = vmax.xlane.f32.xlu0 %v3837
  %v3839 = vpop.xlane.xlu0 %3838
  %v3840 = vsel %vm1414, %v3652, -inf
  %3841 = vmax.xlane.f32.xlu0 %v3840
  %v3842 = vpop.xlane.xlu0 %3841
  %v3843 = vsel %vm1414, %v3657, -inf
  %3844 = vmax.xlane.f32.xlu0 %v3843
  %v3845 = vpop.xlane.xlu0 %3844
  %v3846 = vsel %vm1414, %v3739, -inf
  %3847 = vmax.xlane.f32.xlu0 %v3846
  %v3848 = vpop.xlane.xlu0 %3847
  %v3849 = vsel %vm1414, %v3744, -inf
  %3850 = vmax.xlane.f32.xlu0 %v3849
  %v3851 = vpop.xlane.xlu0 %3850
  %v3852 = vsel %vm1414, %v3826, -inf
  %3853 = vmax.xlane.f32.xlu0 %v3852
  %v3854 = vpop.xlane.xlu0 %3853
  %v3855 = vsel %vm1414, %v3831, -inf
  %3856 = vmax.xlane.f32.xlu0 %v3855
  %v3857 = vpop.xlane.xlu0 %3856
  %v3858 = vsub.f32 %v3565, %v3836
  %v3859 = vsub.f32 %v3570, %v3839
  %v3860 = vsub.f32 %v3652, %v3842
  %v3861 = vsub.f32 %v3657, %v3845
  %v3862 = vsub.f32 %v3739, %v3848
  %v3863 = vsub.f32 %v3744, %v3851
  %v3864 = vsub.f32 %v3826, %v3854
  %v3865 = vsub.f32 %v3831, %v3857
  %v3866 = vmul.f32 %v3858, 1.442695
  %v3867 = vpow.pop %v3866
  %v3868 = vmul.f32 %v3859, 1.442695
  %v3869 = vpow.pop %v3868
  %v3870 = vmul.f32 %v3860, 1.442695
  %v3871 = vpow.pop %v3870
  %v3872 = vmul.f32 %v3861, 1.442695
  %v3873 = vpow.pop %v3872
  %v3874 = vmul.f32 %v3862, 1.442695
  %v3875 = vpow.pop %v3874
  %v3876 = vmul.f32 %v3863, 1.442695
  %v3877 = vpow.pop %v3876
  %v3878 = vmul.f32 %v3864, 1.442695
  %v3879 = vpow.pop %v3878
  %v3880 = vmul.f32 %v3865, 1.442695
  %v3881 = vpow.pop %v3880
  %v3882 = vsel %vm1414, %v3867, 0.0
  %3883 = vadd.xlane.f32.xlu0 %v3882
  %v3884 = vpop.xlane.xlu0 %3883
  %v3885 = vsel %vm1414, %v3869, 0.0
  %3886 = vadd.xlane.f32.xlu0 %v3885
  %v3887 = vpop.xlane.xlu0 %3886
  %v3888 = vsel %vm1414, %v3871, 0.0
  %3889 = vadd.xlane.f32.xlu0 %v3888
  %v3890 = vpop.xlane.xlu0 %3889
  %v3891 = vsel %vm1414, %v3873, 0.0
  %3892 = vadd.xlane.f32.xlu0 %v3891
  %v3893 = vpop.xlane.xlu0 %3892
  %v3894 = vsel %vm1414, %v3875, 0.0
  %3895 = vadd.xlane.f32.xlu0 %v3894
  %v3896 = vpop.xlane.xlu0 %3895
  %v3897 = vsel %vm1414, %v3877, 0.0
  %3898 = vadd.xlane.f32.xlu0 %v3897
  %v3899 = vpop.xlane.xlu0 %3898
  %v3900 = vsel %vm1414, %v3879, 0.0
  %3901 = vadd.xlane.f32.xlu0 %v3900
  %v3902 = vpop.xlane.xlu0 %3901
  %v3903 = vsel %vm1414, %v3881, 0.0
  %3904 = vadd.xlane.f32.xlu0 %v3903
  %v3905 = vpop.xlane.xlu0 %3904
  %v3906 = vrcp.pop %v3884
  %v3907 = vmul.f32 1.0, %v3906
  %v3908 = vrcp.pop %v3887
  %v3909 = vmul.f32 1.0, %v3908
  %v3910 = vrcp.pop %v3890
  %v3911 = vmul.f32 1.0, %v3910
  %v3912 = vrcp.pop %v3893
  %v3913 = vmul.f32 1.0, %v3912
  %v3914 = vrcp.pop %v3896
  %v3915 = vmul.f32 1.0, %v3914
  %v3916 = vrcp.pop %v3899
  %v3917 = vmul.f32 1.0, %v3916
  %v3918 = vrcp.pop %v3902
  %v3919 = vmul.f32 1.0, %v3918
  %v3920 = vrcp.pop %v3905
  %v3921 = vmul.f32 1.0, %v3920
  %v3922 = vmul.f32 %v3867, %v3907
  %v3923 = vmul.f32 %v3869, %v3909
  %v3924 = vmul.f32 %v3871, %v3911
  %v3925 = vmul.f32 %v3873, %v3913
  %v3926 = vmul.f32 %v3875, %v3915
  %v3927 = vmul.f32 %v3877, %v3917
  %v3928 = vmul.f32 %v3879, %v3919
  %v3929 = vmul.f32 %v3881, %v3921
  %v3930 = vmul.f32 %v3922, %v25
  %v3931 = vmul.f32 %v3923, %v26
  %v3932 = vmul.f32 %v3924, %v25
  %v3933 = vmul.f32 %v3925, %v26
  %v3934 = vmul.f32 %v3926, %v25
  %v3935 = vmul.f32 %v3927, %v26
  %v3936 = vmul.f32 %v3928, %v25
  %v3937 = vmul.f32 %v3929, %v26
  %v3939 = vsel %vm1414, %v3930, 0
  %v3942 = vsel %vm1414, %v3931, 0
  %3944 = vmatprep.subr.mxu0 0.0
  %3945 = vmatpush1.msra.mxu0 %v3414
  %3946 = vmatprep.subr.mxu0 0.0
  %3947 = vmatpush1.msra.mxu0 %v3482
  %3948 = vmatprep.subr.mxu0 0.0
  %3949 = vmatpush1.msra.mxu0 0.0
  %3950 = vmatprep.subr.mxu0 0.0
  %3951 = vmatpush1.msra.mxu0 0.0
  %3952 = vmatprep.subr.mxu0 0.0
  %3953 = vmatpush1.msra.mxu0 0.0
  %3954 = vmatprep.subr.mxu0 0.0
  %3955 = vmatpush1.msra.mxu0 0.0
  %3956 = vmatprep.subr.mxu0 0.0
  %3957 = vmatpush1.msra.mxu0 0.0
  %3958 = vmatprep.subr.mxu0 0.0
  %3959 = vmatpush1.msra.mxu0 0.0
  %3960 = vmatprep.subr.mxu0 0.0
  %3961 = vmatpush1.msra.mxu0 0.0
  %3962 = vmatprep.subr.mxu0 0.0
  %3963 = vmatpush1.msra.mxu0 0.0
  %3964 = vmatprep.subr.mxu0 0.0
  %3965 = vmatpush1.msra.mxu0 0.0
  %3966 = vmatprep.subr.mxu0 0.0
  %3967 = vmatpush1.msra.mxu0 0.0
  %3968 = vmatprep.subr.mxu0 0.0
  %3969 = vmatpush1.msra.mxu0 0.0
  %3970 = vmatprep.subr.mxu0 0.0
  %3971 = vmatpush1.msra.mxu0 0.0
  %3972 = vmatprep.subr.mxu0 0.0
  %3973 = vmatpush1.msra.mxu0 0.0
  %3974 = vmatprep.subr.mxu0 0.0
  %3975 = vmatpush1.msra.mxu0 0.0
  %3976 = vmatprep.subr.mxu0 0.0
  %3977 = vmatpush1.msra.mxu0 0.0
  %3978 = vmatprep.subr.mxu0 0.0
  %3979 = vmatpush1.msra.mxu0 0.0
  %3980 = vmatprep.subr.mxu0 0.0
  %3981 = vmatpush1.msra.mxu0 0.0
  %3982 = vmatprep.subr.mxu0 0.0
  %3983 = vmatpush1.msra.mxu0 0.0
  %3984 = vmatprep.subr.mxu0 0.0
  %3985 = vmatpush1.msra.mxu0 0.0
  %3986 = vmatprep.subr.mxu0 0.0
  %3987 = vmatpush1.msra.mxu0 0.0
  %3988 = vmatprep.subr.mxu0 0.0
  %3989 = vmatpush1.msra.mxu0 0.0
  %3990 = vmatprep.subr.mxu0 0.0
  %3991 = vmatpush1.msra.mxu0 0.0
  %3992 = vmatprep.subr.mxu0 0.0
  %3993 = vmatpush1.msra.mxu0 0.0
  %3994 = vmatprep.subr.mxu0 0.0
  %3995 = vmatpush1.msra.mxu0 0.0
  %3996 = vmatprep.subr.mxu0 0.0
  %3997 = vmatpush1.msra.mxu0 0.0
  %3998 = vmatprep.subr.mxu0 0.0
  %3999 = vmatpush1.msra.mxu0 0.0
  %4000 = vmatprep.subr.mxu0 0.0
  %4001 = vmatpush1.msra.mxu0 0.0
  %4002 = vmatprep.subr.mxu0 0.0
  %4003 = vmatpush1.msra.mxu0 0.0
  %4004 = vmatprep.subr.mxu0 0.0
  %4005 = vmatpush1.msra.mxu0 0.0
  %4006 = vmatprep.subr.mxu0 0.0
  %4007 = vmatpush1.msra.mxu0 0.0
  %4008 = vmatprep.mubr.f32.mxu0 0.0
  %4009 = vmatmul.mubr.f32.gmra.mrb[0].mxu0 %v3939
  %v4010 = vpop.f32.mrb[0].mxu0
  %v4011 = vadd.f32 0.0, %v4010
  %v4012 = vpop.f32.mrb[0].mxu0
  %4013 = vmatprep.mubr.f32.mxu0 0.0
  %4014 = vmatmul.mubr.f32.gmra.mrb[0].mxu0 %v3942
  %v4015 = vpop.f32.mrb[0].mxu0
  %v4016 = vadd.f32 0.0, %v4015
  %v4017 = vpop.f32.mrb[0].mxu0
  %4018 = vdwg.mxu0
  %v4020 = vsel %vm1414, %v3932, 0
  %v4023 = vsel %vm1414, %v3933, 0
  %4025 = vmatprep.subr.mxu0 0.0
  %4026 = vmatpush1.msra.mxu0 %v3415
  %4027 = vmatprep.subr.mxu0 0.0
  %4028 = vmatpush1.msra.mxu0 %v3483
  %4029 = vmatprep.subr.mxu0 0.0
  %4030 = vmatpush1.msra.mxu0 0.0
  %4031 = vmatprep.subr.mxu0 0.0
  %4032 = vmatpush1.msra.mxu0 0.0
  %4033 = vmatprep.subr.mxu0 0.0
  %4034 = vmatpush1.msra.mxu0 0.0
  %4035 = vmatprep.subr.mxu0 0.0
  %4036 = vmatpush1.msra.mxu0 0.0
  %4037 = vmatprep.subr.mxu0 0.0
  %4038 = vmatpush1.msra.mxu0 0.0
  %4039 = vmatprep.subr.mxu0 0.0
  %4040 = vmatpush1.msra.mxu0 0.0
  %4041 = vmatprep.subr.mxu0 0.0
  %4042 = vmatpush1.msra.mxu0 0.0
  %4043 = vmatprep.subr.mxu0 0.0
  %4044 = vmatpush1.msra.mxu0 0.0
  %4045 = vmatprep.subr.mxu0 0.0
  %4046 = vmatpush1.msra.mxu0 0.0
  %4047 = vmatprep.subr.mxu0 0.0
  %4048 = vmatpush1.msra.mxu0 0.0
  %4049 = vmatprep.subr.mxu0 0.0
  %4050 = vmatpush1.msra.mxu0 0.0
  %4051 = vmatprep.subr.mxu0 0.0
  %4052 = vmatpush1.msra.mxu0 0.0
  %4053 = vmatprep.subr.mxu0 0.0
  %4054 = vmatpush1.msra.mxu0 0.0
  %4055 = vmatprep.subr.mxu0 0.0
  %4056 = vmatpush1.msra.mxu0 0.0
  %4057 = vmatprep.subr.mxu0 0.0
  %4058 = vmatpush1.msra.mxu0 0.0
  %4059 = vmatprep.subr.mxu0 0.0
  %4060 = vmatpush1.msra.mxu0 0.0
  %4061 = vmatprep.subr.mxu0 0.0
  %4062 = vmatpush1.msra.mxu0 0.0
  %4063 = vmatprep.subr.mxu0 0.0
  %4064 = vmatpush1.msra.mxu0 0.0
  %4065 = vmatprep.subr.mxu0 0.0
  %4066 = vmatpush1.msra.mxu0 0.0
  %4067 = vmatprep.subr.mxu0 0.0
  %4068 = vmatpush1.msra.mxu0 0.0
  %4069 = vmatprep.subr.mxu0 0.0
  %4070 = vmatpush1.msra.mxu0 0.0
  %4071 = vmatprep.subr.mxu0 0.0
  %4072 = vmatpush1.msra.mxu0 0.0
  %4073 = vmatprep.subr.mxu0 0.0
  %4074 = vmatpush1.msra.mxu0 0.0
  %4075 = vmatprep.subr.mxu0 0.0
  %4076 = vmatpush1.msra.mxu0 0.0
  %4077 = vmatprep.subr.mxu0 0.0
  %4078 = vmatpush1.msra.mxu0 0.0
  %4079 = vmatprep.subr.mxu0 0.0
  %4080 = vmatpush1.msra.mxu0 0.0
  %4081 = vmatprep.subr.mxu0 0.0
  %4082 = vmatpush1.msra.mxu0 0.0
  %4083 = vmatprep.subr.mxu0 0.0
  %4084 = vmatpush1.msra.mxu0 0.0
  %4085 = vmatprep.subr.mxu0 0.0
  %4086 = vmatpush1.msra.mxu0 0.0
  %4087 = vmatprep.subr.mxu0 0.0
  %4088 = vmatpush1.msra.mxu0 0.0
  %4089 = vmatprep.mubr.f32.mxu0 0.0
  %4090 = vmatmul.mubr.f32.gmra.mrb[0].mxu0 %v4020
  %v4091 = vpop.f32.mrb[0].mxu0
  %v4092 = vadd.f32 0.0, %v4091
  %v4093 = vpop.f32.mrb[0].mxu0
  %4094 = vmatprep.mubr.f32.mxu0 0.0
  %4095 = vmatmul.mubr.f32.gmra.mrb[0].mxu0 %v4023
  %v4096 = vpop.f32.mrb[0].mxu0
  %v4097 = vadd.f32 0.0, %v4096
  %v4098 = vpop.f32.mrb[0].mxu0
  %4099 = vdwg.mxu0
  %v4101 = vsel %vm1414, %v3934, 0
  %v4104 = vsel %vm1414, %v3935, 0
  %4106 = vmatprep.subr.mxu0 0.0
  %4107 = vmatpush1.msra.mxu0 %v3416
  %4108 = vmatprep.subr.mxu0 0.0
  %4109 = vmatpush1.msra.mxu0 %v3484
  %4110 = vmatprep.subr.mxu0 0.0
  %4111 = vmatpush1.msra.mxu0 0.0
  %4112 = vmatprep.subr.mxu0 0.0
  %4113 = vmatpush1.msra.mxu0 0.0
  %4114 = vmatprep.subr.mxu0 0.0
  %4115 = vmatpush1.msra.mxu0 0.0
  %4116 = vmatprep.subr.mxu0 0.0
  %4117 = vmatpush1.msra.mxu0 0.0
  %4118 = vmatprep.subr.mxu0 0.0
  %4119 = vmatpush1.msra.mxu0 0.0
  %4120 = vmatprep.subr.mxu0 0.0
  %4121 = vmatpush1.msra.mxu0 0.0
  %4122 = vmatprep.subr.mxu0 0.0
  %4123 = vmatpush1.msra.mxu0 0.0
  %4124 = vmatprep.subr.mxu0 0.0
  %4125 = vmatpush1.msra.mxu0 0.0
  %4126 = vmatprep.subr.mxu0 0.0
  %4127 = vmatpush1.msra.mxu0 0.0
  %4128 = vmatprep.subr.mxu0 0.0
  %4129 = vmatpush1.msra.mxu0 0.0
  %4130 = vmatprep.subr.mxu0 0.0
  %4131 = vmatpush1.msra.mxu0 0.0
  %4132 = vmatprep.subr.mxu0 0.0
  %4133 = vmatpush1.msra.mxu0 0.0
  %4134 = vmatprep.subr.mxu0 0.0
  %4135 = vmatpush1.msra.mxu0 0.0
  %4136 = vmatprep.subr.mxu0 0.0
  %4137 = vmatpush1.msra.mxu0 0.0
  %4138 = vmatprep.subr.mxu0 0.0
  %4139 = vmatpush1.msra.mxu0 0.0
  %4140 = vmatprep.subr.mxu0 0.0
  %4141 = vmatpush1.msra.mxu0 0.0
  %4142 = vmatprep.subr.mxu0 0.0
  %4143 = vmatpush1.msra.mxu0 0.0
  %4144 = vmatprep.subr.mxu0 0.0
  %4145 = vmatpush1.msra.mxu0 0.0
  %4146 = vmatprep.subr.mxu0 0.0
  %4147 = vmatpush1.msra.mxu0 0.0
  %4148 = vmatprep.subr.mxu0 0.0
  %4149 = vmatpush1.msra.mxu0 0.0
  %4150 = vmatprep.subr.mxu0 0.0
  %4151 = vmatpush1.msra.mxu0 0.0
  %4152 = vmatprep.subr.mxu0 0.0
  %4153 = vmatpush1.msra.mxu0 0.0
  %4154 = vmatprep.subr.mxu0 0.0
  %4155 = vmatpush1.msra.mxu0 0.0
  %4156 = vmatprep.subr.mxu0 0.0
  %4157 = vmatpush1.msra.mxu0 0.0
  %4158 = vmatprep.subr.mxu0 0.0
  %4159 = vmatpush1.msra.mxu0 0.0
  %4160 = vmatprep.subr.mxu0 0.0
  %4161 = vmatpush1.msra.mxu0 0.0
  %4162 = vmatprep.subr.mxu0 0.0
  %4163 = vmatpush1.msra.mxu0 0.0
  %4164 = vmatprep.subr.mxu0 0.0
  %4165 = vmatpush1.msra.mxu0 0.0
  %4166 = vmatprep.subr.mxu0 0.0
  %4167 = vmatpush1.msra.mxu0 0.0
  %4168 = vmatprep.subr.mxu0 0.0
  %4169 = vmatpush1.msra.mxu0 0.0
  %4170 = vmatprep.mubr.f32.mxu0 0.0
  %4171 = vmatmul.mubr.f32.gmra.mrb[0].mxu0 %v4101
  %v4172 = vpop.f32.mrb[0].mxu0
  %v4173 = vadd.f32 0.0, %v4172
  %v4174 = vpop.f32.mrb[0].mxu0
  %4175 = vmatprep.mubr.f32.mxu0 0.0
  %4176 = vmatmul.mubr.f32.gmra.mrb[0].mxu0 %v4104
  %v4177 = vpop.f32.mrb[0].mxu0
  %v4178 = vadd.f32 0.0, %v4177
  %v4179 = vpop.f32.mrb[0].mxu0
  %4180 = vdwg.mxu0
  %v4182 = vsel %vm1414, %v3936, 0
  %v4185 = vsel %vm1414, %v3937, 0
  %4187 = vmatprep.subr.mxu0 0.0
  %4188 = vmatpush1.msra.mxu0 %v3417
  %4189 = vmatprep.subr.mxu0 0.0
  %4190 = vmatpush1.msra.mxu0 %v3485
  %4191 = vmatprep.subr.mxu0 0.0
  %4192 = vmatpush1.msra.mxu0 0.0
  %4193 = vmatprep.subr.mxu0 0.0
  %4194 = vmatpush1.msra.mxu0 0.0
  %4195 = vmatprep.subr.mxu0 0.0
  %4196 = vmatpush1.msra.mxu0 0.0
  %4197 = vmatprep.subr.mxu0 0.0
  %4198 = vmatpush1.msra.mxu0 0.0
  %4199 = vmatprep.subr.mxu0 0.0
  %4200 = vmatpush1.msra.mxu0 0.0
  %4201 = vmatprep.subr.mxu0 0.0
  %4202 = vmatpush1.msra.mxu0 0.0
  %4203 = vmatprep.subr.mxu0 0.0
  %4204 = vmatpush1.msra.mxu0 0.0
  %4205 = vmatprep.subr.mxu0 0.0
  %4206 = vmatpush1.msra.mxu0 0.0
  %4207 = vmatprep.subr.mxu0 0.0
  %4208 = vmatpush1.msra.mxu0 0.0
  %4209 = vmatprep.subr.mxu0 0.0
  %4210 = vmatpush1.msra.mxu0 0.0
  %4211 = vmatprep.subr.mxu0 0.0
  %4212 = vmatpush1.msra.mxu0 0.0
  %4213 = vmatprep.subr.mxu0 0.0
  %4214 = vmatpush1.msra.mxu0 0.0
  %4215 = vmatprep.subr.mxu0 0.0
  %4216 = vmatpush1.msra.mxu0 0.0
  %4217 = vmatprep.subr.mxu0 0.0
  %4218 = vmatpush1.msra.mxu0 0.0
  %4219 = vmatprep.subr.mxu0 0.0
  %4220 = vmatpush1.msra.mxu0 0.0
  %4221 = vmatprep.subr.mxu0 0.0
  %4222 = vmatpush1.msra.mxu0 0.0
  %4223 = vmatprep.subr.mxu0 0.0
  %4224 = vmatpush1.msra.mxu0 0.0
  %4225 = vmatprep.subr.mxu0 0.0
  %4226 = vmatpush1.msra.mxu0 0.0
  %4227 = vmatprep.subr.mxu0 0.0
  %4228 = vmatpush1.msra.mxu0 0.0
  %4229 = vmatprep.subr.mxu0 0.0
  %4230 = vmatpush1.msra.mxu0 0.0
  %4231 = vmatprep.subr.mxu0 0.0
  %4232 = vmatpush1.msra.mxu0 0.0
  %4233 = vmatprep.subr.mxu0 0.0
  %4234 = vmatpush1.msra.mxu0 0.0
  %4235 = vmatprep.subr.mxu0 0.0
  %4236 = vmatpush1.msra.mxu0 0.0
  %4237 = vmatprep.subr.mxu0 0.0
  %4238 = vmatpush1.msra.mxu0 0.0
  %4239 = vmatprep.subr.mxu0 0.0
  %4240 = vmatpush1.msra.mxu0 0.0
  %4241 = vmatprep.subr.mxu0 0.0
  %4242 = vmatpush1.msra.mxu0 0.0
  %4243 = vmatprep.subr.mxu0 0.0
  %4244 = vmatpush1.msra.mxu0 0.0
  %4245 = vmatprep.subr.mxu0 0.0
  %4246 = vmatpush1.msra.mxu0 0.0
  %4247 = vmatprep.subr.mxu0 0.0
  %4248 = vmatpush1.msra.mxu0 0.0
  %4249 = vmatprep.subr.mxu0 0.0
  %4250 = vmatpush1.msra.mxu0 0.0
  %4251 = vmatprep.mubr.f32.mxu0 0.0
  %4252 = vmatmul.mubr.f32.gmra.mrb[0].mxu0 %v4182
  %v4253 = vpop.f32.mrb[0].mxu0
  %v4254 = vadd.f32 0.0, %v4253
  %v4255 = vpop.f32.mrb[0].mxu0
  %4256 = vmatprep.mubr.f32.mxu0 0.0
  %4257 = vmatmul.mubr.f32.gmra.mrb[0].mxu0 %v4185
  %v4258 = vpop.f32.mrb[0].mxu0
  %v4259 = vadd.f32 0.0, %v4258
  %v4260 = vpop.f32.mrb[0].mxu0
  %4261 = vdwg.mxu0
  %v4262 = vcombine.low %v4011, %v4173
  %v4263 = vcombine.high %v4011, %v4173
  %v4265 = vunpack.c.l.s4 1983009808
  %v4266 = vunpack.c.0.s8 %v4265
  %v4267 = vlaneseq
  %v4268 = vshrl.u32 %v4267, 7
  %v4269 = vsub.s32 %v4266, %v4268
  %v4270 = vrot.slane %v4262, %v4269
  %v4272 = vunpack.c.l.s4 1983009808
  %v4273 = vunpack.c.0.s8 %v4272
  %v4274 = vlaneseq
  %v4275 = vshrl.u32 %v4274, 7
  %v4276 = vsub.s32 %v4273, %v4275
  %v4277 = vrot.slane %v4263, %v4276
  %v4278 = vcombine.low %v4092, %v4254
  %v4279 = vcombine.high %v4092, %v4254
  %v4281 = vunpack.c.l.s4 1983009808
  %v4282 = vunpack.c.0.s8 %v4281
  %v4283 = vlaneseq
  %v4284 = vshrl.u32 %v4283, 7
  %v4285 = vsub.s32 %v4282, %v4284
  %v4286 = vrot.slane %v4278, %v4285
  %v4288 = vunpack.c.l.s4 1983009808
  %v4289 = vunpack.c.0.s8 %v4288
  %v4290 = vlaneseq
  %v4291 = vshrl.u32 %v4290, 7
  %v4292 = vsub.s32 %v4289, %v4291
  %v4293 = vrot.slane %v4279, %v4292
  %v4294 = vcombine.low %v4270, %v4286
  %v4295 = vcombine.high %v4270, %v4286
  %v4297 = vunpack.c.l.s4 1934713408
  %v4298 = vunpack.c.0.s8 %v4297
  %v4299 = vlaneseq
  %v4300 = vshrl.u32 %v4299, 7
  %v4301 = vsub.s32 %v4298, %v4300
  %v4302 = vrot.slane %v4294, %v4301
  %v4304 = vunpack.c.l.s4 1934713408
  %v4305 = vunpack.c.0.s8 %v4304
  %v4306 = vlaneseq
  %v4307 = vshrl.u32 %v4306, 7
  %v4308 = vsub.s32 %v4305, %v4307
  %v4309 = vrot.slane %v4295, %v4308
  %v4310 = vcombine.low %v4277, %v4293
  %v4311 = vcombine.high %v4277, %v4293
  %v4313 = vunpack.c.l.s4 1934713408
  %v4314 = vunpack.c.0.s8 %v4313
  %v4315 = vlaneseq
  %v4316 = vshrl.u32 %v4315, 7
  %v4317 = vsub.s32 %v4314, %v4316
  %v4318 = vrot.slane %v4310, %v4317
  %v4320 = vunpack.c.l.s4 1934713408
  %v4321 = vunpack.c.0.s8 %v4320
  %v4322 = vlaneseq
  %v4323 = vshrl.u32 %v4322, 7
  %v4324 = vsub.s32 %v4321, %v4323
  %v4325 = vrot.slane %v4311, %v4324
  %v4326 = vcombine.high %v4302, 0.0
  %v4327 = vcombine.high %v4309, 0.0
  %v4328 = vcombine.high %v4318, 0.0
  %v4329 = vcombine.high %v4325, 0.0
  %v4330 = vcombine.low %v4016, %v4178
  %v4331 = vcombine.high %v4016, %v4178
  %v4333 = vunpack.c.l.s4 1983009808
  %v4334 = vunpack.c.0.s8 %v4333
  %v4335 = vlaneseq
  %v4336 = vshrl.u32 %v4335, 7
  %v4337 = vsub.s32 %v4334, %v4336
  %v4338 = vrot.slane %v4330, %v4337
  %v4340 = vunpack.c.l.s4 1983009808
  %v4341 = vunpack.c.0.s8 %v4340
  %v4342 = vlaneseq
  %v4343 = vshrl.u32 %v4342, 7
  %v4344 = vsub.s32 %v4341, %v4343
  %v4345 = vrot.slane %v4331, %v4344
  %v4346 = vcombine.low %v4097, %v4259
  %v4347 = vcombine.high %v4097, %v4259
  %v4349 = vunpack.c.l.s4 1983009808
  %v4350 = vunpack.c.0.s8 %v4349
  %v4351 = vlaneseq
  %v4352 = vshrl.u32 %v4351, 7
  %v4353 = vsub.s32 %v4350, %v4352
  %v4354 = vrot.slane %v4346, %v4353
  %v4356 = vunpack.c.l.s4 1983009808
  %v4357 = vunpack.c.0.s8 %v4356
  %v4358 = vlaneseq
  %v4359 = vshrl.u32 %v4358, 7
  %v4360 = vsub.s32 %v4357, %v4359
  %v4361 = vrot.slane %v4347, %v4360
  %v4362 = vcombine.low %v4338, %v4354
  %v4363 = vcombine.high %v4338, %v4354
  %v4365 = vunpack.c.l.s4 1934713408
  %v4366 = vunpack.c.0.s8 %v4365
  %v4367 = vlaneseq
  %v4368 = vshrl.u32 %v4367, 7
  %v4369 = vsub.s32 %v4366, %v4368
  %v4370 = vrot.slane %v4362, %v4369
  %v4372 = vunpack.c.l.s4 1934713408
  %v4373 = vunpack.c.0.s8 %v4372
  %v4374 = vlaneseq
  %v4375 = vshrl.u32 %v4374, 7
  %v4376 = vsub.s32 %v4373, %v4375
  %v4377 = vrot.slane %v4363, %v4376
  %v4378 = vcombine.low %v4345, %v4361
  %v4379 = vcombine.high %v4345, %v4361
  %v4381 = vunpack.c.l.s4 1934713408
  %v4382 = vunpack.c.0.s8 %v4381
  %v4383 = vlaneseq
  %v4384 = vshrl.u32 %v4383, 7
  %v4385 = vsub.s32 %v4382, %v4384
  %v4386 = vrot.slane %v4378, %v4385
  %v4388 = vunpack.c.l.s4 1934713408
  %v4389 = vunpack.c.0.s8 %v4388
  %v4390 = vlaneseq
  %v4391 = vshrl.u32 %v4390, 7
  %v4392 = vsub.s32 %v4389, %v4391
  %v4393 = vrot.slane %v4379, %v4392
  %v4394 = vcombine.high %v4370, 0.0
  %v4395 = vcombine.high %v4377, 0.0
  %v4396 = vcombine.high %v4386, 0.0
  %v4397 = vcombine.high %v4393, 0.0
  %v4398 = vcombine.low %v4302, %v4309
  %v4400 = vunpack.c.l.s4 1983009808
  %v4401 = vunpack.c.0.s8 %v4400
  %v4402 = vlaneseq
  %v4403 = vshrl.u32 %v4402, 7
  %v4404 = vsub.s32 %v4401, %v4403
  %v4405 = vrot.slane %v4398, %v4404
  %v4406 = vcombine.low %v4326, %v4327
  %v4408 = vunpack.c.l.s4 1983009808
  %v4409 = vunpack.c.0.s8 %v4408
  %v4410 = vlaneseq
  %v4411 = vshrl.u32 %v4410, 7
  %v4412 = vsub.s32 %v4409, %v4411
  %v4413 = vrot.slane %v4406, %v4412
  %v4414 = vcombine.low %v4318, %v4325
  %v4416 = vunpack.c.l.s4 1983009808
  %v4417 = vunpack.c.0.s8 %v4416
  %v4418 = vlaneseq
  %v4419 = vshrl.u32 %v4418, 7
  %v4420 = vsub.s32 %v4417, %v4419
  %v4421 = vrot.slane %v4414, %v4420
  %v4422 = vcombine.low %v4328, %v4329
  %v4424 = vunpack.c.l.s4 1983009808
  %v4425 = vunpack.c.0.s8 %v4424
  %v4426 = vlaneseq
  %v4427 = vshrl.u32 %v4426, 7
  %v4428 = vsub.s32 %v4425, %v4427
  %v4429 = vrot.slane %v4422, %v4428
  %v4430 = vcombine.low %v4405, %v4413
  %v4431 = vcombine.high %v4405, %v4413
  %v4433 = vunpack.c.l.s4 1934713408
  %v4434 = vunpack.c.0.s8 %v4433
  %v4435 = vlaneseq
  %v4436 = vshrl.u32 %v4435, 7
  %v4437 = vsub.s32 %v4434, %v4436
  %v4438 = vrot.slane %v4430, %v4437
  %v4440 = vunpack.c.l.s4 1934713408
  %v4441 = vunpack.c.0.s8 %v4440
  %v4442 = vlaneseq
  %v4443 = vshrl.u32 %v4442, 7
  %v4444 = vsub.s32 %v4441, %v4443
  %v4445 = vrot.slane %v4431, %v4444
  %v4446 = vcombine.low %v4421, %v4429
  %v4447 = vcombine.high %v4421, %v4429
  %v4449 = vunpack.c.l.s4 1934713408
  %v4450 = vunpack.c.0.s8 %v4449
  %v4451 = vlaneseq
  %v4452 = vshrl.u32 %v4451, 7
  %v4453 = vsub.s32 %v4450, %v4452
  %v4454 = vrot.slane %v4446, %v4453
  %v4456 = vunpack.c.l.s4 1934713408
  %v4457 = vunpack.c.0.s8 %v4456
  %v4458 = vlaneseq
  %v4459 = vshrl.u32 %v4458, 7
  %v4460 = vsub.s32 %v4457, %v4459
  %v4461 = vrot.slane %v4447, %v4460
  %v4462 = vcombine.low %v4438, %v4454
  %v4463 = vcombine.high %v4438, %v4454
  %v4464 = vcombine.low %v4445, %v4461
  %v4465 = vcombine.high %v4445, %v4461
  %v4466 = vcombine.low %v4370, %v4377
  %v4468 = vunpack.c.l.s4 1983009808
  %v4469 = vunpack.c.0.s8 %v4468
  %v4470 = vlaneseq
  %v4471 = vshrl.u32 %v4470, 7
  %v4472 = vsub.s32 %v4469, %v4471
  %v4473 = vrot.slane %v4466, %v4472
  %v4474 = vcombine.low %v4394, %v4395
  %v4476 = vunpack.c.l.s4 1983009808
  %v4477 = vunpack.c.0.s8 %v4476
  %v4478 = vlaneseq
  %v4479 = vshrl.u32 %v4478, 7
  %v4480 = vsub.s32 %v4477, %v4479
  %v4481 = vrot.slane %v4474, %v4480
  %v4482 = vcombine.low %v4386, %v4393
  %v4484 = vunpack.c.l.s4 1983009808
  %v4485 = vunpack.c.0.s8 %v4484
  %v4486 = vlaneseq
  %v4487 = vshrl.u32 %v4486, 7
  %v4488 = vsub.s32 %v4485, %v4487
  %v4489 = vrot.slane %v4482, %v4488
  %v4490 = vcombine.low %v4396, %v4397
  %v4492 = vunpack.c.l.s4 1983009808
  %v4493 = vunpack.c.0.s8 %v4492
  %v4494 = vlaneseq
  %v4495 = vshrl.u32 %v4494, 7
  %v4496 = vsub.s32 %v4493, %v4495
  %v4497 = vrot.slane %v4490, %v4496
  %v4498 = vcombine.low %v4473, %v4481
  %v4499 = vcombine.high %v4473, %v4481
  %v4501 = vunpack.c.l.s4 1934713408
  %v4502 = vunpack.c.0.s8 %v4501
  %v4503 = vlaneseq
  %v4504 = vshrl.u32 %v4503, 7
  %v4505 = vsub.s32 %v4502, %v4504
  %v4506 = vrot.slane %v4498, %v4505
  %v4508 = vunpack.c.l.s4 1934713408
  %v4509 = vunpack.c.0.s8 %v4508
  %v4510 = vlaneseq
  %v4511 = vshrl.u32 %v4510, 7
  %v4512 = vsub.s32 %v4509, %v4511
  %v4513 = vrot.slane %v4499, %v4512
  %v4514 = vcombine.low %v4489, %v4497
  %v4515 = vcombine.high %v4489, %v4497
  %v4517 = vunpack.c.l.s4 1934713408
  %v4518 = vunpack.c.0.s8 %v4517
  %v4519 = vlaneseq
  %v4520 = vshrl.u32 %v4519, 7
  %v4521 = vsub.s32 %v4518, %v4520
  %v4522 = vrot.slane %v4514, %v4521
  %v4524 = vunpack.c.l.s4 1934713408
  %v4525 = vunpack.c.0.s8 %v4524
  %v4526 = vlaneseq
  %v4527 = vshrl.u32 %v4526, 7
  %v4528 = vsub.s32 %v4525, %v4527
  %v4529 = vrot.slane %v4515, %v4528
  %v4530 = vcombine.low %v4506, %v4522
  %v4531 = vcombine.high %v4506, %v4522
  %v4532 = vcombine.low %v4513, %v4529
  %v4533 = vcombine.high %v4513, %v4529
  %4536 = vrot.lane.b32.xlu0 %v4463, 8
  %v4537 = vpop.permute.xlu0 %4536
  %4538 = vrot.lane.b32.xlu0 %v4531, 8
  %v4539 = vpop.permute.xlu0 %4538
  %4544 = vrot.lane.b32.xlu0 %v4464, 16
  %v4545 = vpop.permute.xlu0 %4544
  %4546 = vrot.lane.b32.xlu0 %v4532, 16
  %v4547 = vpop.permute.xlu0 %4546
  %4552 = vrot.lane.b32.xlu0 %v4465, 24
  %v4553 = vpop.permute.xlu0 %4552
  %4554 = vrot.lane.b32.xlu0 %v4533, 24
  %v4555 = vpop.permute.xlu0 %4554
  %v4558 = vsel %vm1065, %v4462, %v4537
  %v4559 = vsel %vm1065, %v4530, %v4539
  %v4560 = vsel %vm1414, %v4558, %v4545
  %v4561 = vsel %vm1414, %v4559, %v4547
  %v4562 = vsel %vm2143, %v4560, %v4553
  %v4563 = vsel %vm2143, %v4561, %v4555
  %v4565 = vsel %vm52, %v4562, 0
  %v4568 = vsel %vm52, %v4563, 0
  %4570 = vmatprep.subr.mxu0 0.0
  %4571 = vmatpush1.msra.mxu0 %v2469
  %4572 = vmatprep.subr.mxu0 0.0
  %4573 = vmatpush1.msra.mxu0 %v2470
  %4574 = vmatprep.subr.mxu0 0.0
  %4575 = vmatpush1.msra.mxu0 %v2471
  %4576 = vmatprep.subr.mxu0 0.0
  %4577 = vmatpush1.msra.mxu0 %v2472
  %4578 = vmatprep.subr.mxu0 0.0
  %4579 = vmatpush1.msra.mxu0 0.0
  %4580 = vmatprep.subr.mxu0 0.0
  %4581 = vmatpush1.msra.mxu0 0.0
  %4582 = vmatprep.subr.mxu0 0.0
  %4583 = vmatpush1.msra.mxu0 0.0
  %4584 = vmatprep.subr.mxu0 0.0
  %4585 = vmatpush1.msra.mxu0 0.0
  %4586 = vmatprep.subr.mxu0 0.0
  %4587 = vmatpush1.msra.mxu0 0.0
  %4588 = vmatprep.subr.mxu0 0.0
  %4589 = vmatpush1.msra.mxu0 0.0
  %4590 = vmatprep.subr.mxu0 0.0
  %4591 = vmatpush1.msra.mxu0 0.0
  %4592 = vmatprep.subr.mxu0 0.0
  %4593 = vmatpush1.msra.mxu0 0.0
  %4594 = vmatprep.subr.mxu0 0.0
  %4595 = vmatpush1.msra.mxu0 0.0
  %4596 = vmatprep.subr.mxu0 0.0
  %4597 = vmatpush1.msra.mxu0 0.0
  %4598 = vmatprep.subr.mxu0 0.0
  %4599 = vmatpush1.msra.mxu0 0.0
  %4600 = vmatprep.subr.mxu0 0.0
  %4601 = vmatpush1.msra.mxu0 0.0
  %4602 = vmatprep.subr.mxu0 0.0
  %4603 = vmatpush1.msra.mxu0 0.0
  %4604 = vmatprep.subr.mxu0 0.0
  %4605 = vmatpush1.msra.mxu0 0.0
  %4606 = vmatprep.subr.mxu0 0.0
  %4607 = vmatpush1.msra.mxu0 0.0
  %4608 = vmatprep.subr.mxu0 0.0
  %4609 = vmatpush1.msra.mxu0 0.0
  %4610 = vmatprep.subr.mxu0 0.0
  %4611 = vmatpush1.msra.mxu0 0.0
  %4612 = vmatprep.subr.mxu0 0.0
  %4613 = vmatpush1.msra.mxu0 0.0
  %4614 = vmatprep.subr.mxu0 0.0
  %4615 = vmatpush1.msra.mxu0 0.0
  %4616 = vmatprep.subr.mxu0 0.0
  %4617 = vmatpush1.msra.mxu0 0.0
  %4618 = vmatprep.subr.mxu0 0.0
  %4619 = vmatpush1.msra.mxu0 0.0
  %4620 = vmatprep.subr.mxu0 0.0
  %4621 = vmatpush1.msra.mxu0 0.0
  %4622 = vmatprep.subr.mxu0 0.0
  %4623 = vmatpush1.msra.mxu0 0.0
  %4624 = vmatprep.subr.mxu0 0.0
  %4625 = vmatpush1.msra.mxu0 0.0
  %4626 = vmatprep.subr.mxu0 0.0
  %4627 = vmatpush1.msra.mxu0 0.0
  %4628 = vmatprep.subr.mxu0 0.0
  %4629 = vmatpush1.msra.mxu0 0.0
  %4630 = vmatprep.subr.mxu0 0.0
  %4631 = vmatpush1.msra.mxu0 0.0
  %4632 = vmatprep.subr.mxu0 0.0
  %4633 = vmatpush1.msra.mxu0 0.0
  %4634 = vmatprep.mubr.f32.mxu0 0.0
  %4635 = vmatmul.mubr.f32.gmra.mrb[0].mxu0 %v4565
  %v4636 = vpop.f32.mrb[0].mxu0
  %v4637 = vadd.f32 0.0, %v4636
  %v4638 = vpop.f32.mrb[0].mxu0
  %4639 = vmatprep.mubr.f32.mxu0 0.0
  %4640 = vmatmul.mubr.f32.gmra.mrb[0].mxu0 %v4568
  %v4641 = vpop.f32.mrb[0].mxu0
  %v4642 = vadd.f32 0.0, %v4641
  %v4643 = vpop.f32.mrb[0].mxu0
  %4644 = vdwg.mxu0
  %v4645 = vadd.f32 %v2449, %v4637
  %v4646 = vadd.f32 %v2450, %v4642
  %v4647 = vlaneseq
  %v4648 = vshrl.u32 %v4647, 7
  %v4649 = vsub.s32 1, %v4648
  %v4650 = vrot.slane %v2474, %v4649
  %v4651 = vadd.f32 %v4645, %v4650
  %v4652 = vadd.f32 %v4646, %v4650
  %v4653 = vsel %vm52, %v4651, 0.0
  %4654 = vadd.xlane.f32.xlu0 %v4653
  %v4655 = vpop.xlane.xlu0 %4654
  %v4656 = vsel %vm52, %v4652, 0.0
  %4657 = vadd.xlane.f32.xlu0 %v4656
  %v4658 = vpop.xlane.xlu0 %4657
  %v4659 = vmul.f32 %v4655, %v59
  %v4660 = vmul.f32 %v4658, %v59
  %v4661 = vmul.f32 %v4651, %v4651
  %v4662 = vmul.f32 %v4652, %v4652
  %v4663 = vsel %vm52, %v4661, 0.0
  %4664 = vadd.xlane.f32.xlu0 %v4663
  %v4665 = vpop.xlane.xlu0 %4664
  %v4666 = vsel %vm52, %v4662, 0.0
  %4667 = vadd.xlane.f32.xlu0 %v4666
  %v4668 = vpop.xlane.xlu0 %4667
  %v4669 = vmul.f32 %v4665, %v59
  %v4670 = vmul.f32 %v4668, %v59
  %v4671 = vmul.f32 %v4659, %v4659
  %v4672 = vmul.f32 %v4660, %v4660
  %v4673 = vsub.f32 %v4669, %v4671
  %v4674 = vsub.f32 %v4670, %v4672
  %v4675 = vsub.f32 %v4651, %v4659
  %v4676 = vsub.f32 %v4652, %v4660
  %v4677 = vadd.f32 %v4673, 1e-05
  %v4678 = vadd.f32 %v4674, 1e-05
  %v4679 = vrsqrt.pop %v4677
  %v4680 = vrsqrt.pop %v4678
  %v4681 = vmul.f32 %v4675, %v4679
  %v4682 = vmul.f32 %v4676, %v4680
  %4683 = vrot.lane.b32.xlu0 %v2508, 64
  %v4684 = vpop.permute.xlu0 %4683
  %v4686 = vmul.f32 %v4681, %v4684
  %v4687 = vmul.f32 %v4682, %v4684
  %4688 = vrot.lane.b32.xlu0 %v2508, 32
  %v4689 = vpop.permute.xlu0 %4688
  %v4691 = vadd.f32 %v4686, %v4689
  %v4692 = vadd.f32 %v4687, %v4689
  %4694 = vrot.lane.b32.xlu0 %v4650, 64
  %v4695 = vpop.permute.xlu0 %4694
  %v4698 = vsel %vm52, %v4691, 0
  %v4701 = vsel %vm52, %v4692, 0
  %4703 = vmatprep.subr.mxu0 0.0
  %4704 = vmatpush1.msra.mxu0 %v2453
  %4705 = vmatprep.subr.mxu0 0.0
  %4706 = vmatpush1.msra.mxu0 %v2455
  %4707 = vmatprep.subr.mxu0 0.0
  %4708 = vmatpush1.msra.mxu0 %v2457
  %4709 = vmatprep.subr.mxu0 0.0
  %4710 = vmatpush1.msra.mxu0 %v2459
  %4711 = vmatprep.subr.mxu0 0.0
  %4712 = vmatpush1.msra.mxu0 0.0
  %4713 = vmatprep.subr.mxu0 0.0
  %4714 = vmatpush1.msra.mxu0 0.0
  %4715 = vmatprep.subr.mxu0 0.0
  %4716 = vmatpush1.msra.mxu0 0.0
  %4717 = vmatprep.subr.mxu0 0.0
  %4718 = vmatpush1.msra.mxu0 0.0
  %4719 = vmatprep.subr.mxu0 0.0
  %4720 = vmatpush1.msra.mxu0 0.0
  %4721 = vmatprep.subr.mxu0 0.0
  %4722 = vmatpush1.msra.mxu0 0.0
  %4723 = vmatprep.subr.mxu0 0.0
  %4724 = vmatpush1.msra.mxu0 0.0
  %4725 = vmatprep.subr.mxu0 0.0
  %4726 = vmatpush1.msra.mxu0 0.0
  %4727 = vmatprep.subr.mxu0 0.0
  %4728 = vmatpush1.msra.mxu0 0.0
  %4729 = vmatprep.subr.mxu0 0.0
  %4730 = vmatpush1.msra.mxu0 0.0
  %4731 = vmatprep.subr.mxu0 0.0
  %4732 = vmatpush1.msra.mxu0 0.0
  %4733 = vmatprep.subr.mxu0 0.0
  %4734 = vmatpush1.msra.mxu0 0.0
  %4735 = vmatprep.subr.mxu0 0.0
  %4736 = vmatpush1.msra.mxu0 0.0
  %4737 = vmatprep.subr.mxu0 0.0
  %4738 = vmatpush1.msra.mxu0 0.0
  %4739 = vmatprep.subr.mxu0 0.0
  %4740 = vmatpush1.msra.mxu0 0.0
  %4741 = vmatprep.subr.mxu0 0.0
  %4742 = vmatpush1.msra.mxu0 0.0
  %4743 = vmatprep.subr.mxu0 0.0
  %4744 = vmatpush1.msra.mxu0 0.0
  %4745 = vmatprep.subr.mxu0 0.0
  %4746 = vmatpush1.msra.mxu0 0.0
  %4747 = vmatprep.subr.mxu0 0.0
  %4748 = vmatpush1.msra.mxu0 0.0
  %4749 = vmatprep.subr.mxu0 0.0
  %4750 = vmatpush1.msra.mxu0 0.0
  %4751 = vmatprep.subr.mxu0 0.0
  %4752 = vmatpush1.msra.mxu0 0.0
  %4753 = vmatprep.subr.mxu0 0.0
  %4754 = vmatpush1.msra.mxu0 0.0
  %4755 = vmatprep.subr.mxu0 0.0
  %4756 = vmatpush1.msra.mxu0 0.0
  %4757 = vmatprep.subr.mxu0 0.0
  %4758 = vmatpush1.msra.mxu0 0.0
  %4759 = vmatprep.subr.mxu0 0.0
  %4760 = vmatpush1.msra.mxu0 0.0
  %4761 = vmatprep.subr.mxu0 0.0
  %4762 = vmatpush1.msra.mxu0 0.0
  %4763 = vmatprep.subr.mxu0 0.0
  %4764 = vmatpush1.msra.mxu0 0.0
  %4765 = vmatprep.subr.mxu0 0.0
  %4766 = vmatpush1.msra.mxu0 0.0
  %4767 = vmatprep.mubr.f32.mxu0 0.0
  %4768 = vmatmul.mubr.f32.gmra.mrb[0].mxu0 %v4698
  %v4769 = vpop.f32.mrb[0].mxu0
  %v4770 = vadd.f32 %v4695, %v4769
  %v4771 = vpop.f32.mrb[0].mxu0
  %4772 = vmatprep.mubr.f32.mxu0 0.0
  %4773 = vmatmul.mubr.f32.gmra.mrb[0].mxu0 %v4701
  %v4774 = vpop.f32.mrb[0].mxu0
  %v4775 = vadd.f32 %v4695, %v4774
  %v4776 = vpop.f32.mrb[0].mxu0
  %4777 = vdwg.mxu0
  %v4778 = vmax.f32 %v4770, 0.0
  %v4779 = vmax.f32 %v4775, 0.0
  %v4781 = vsel %vm2362, %v4778, 0
  %v4784 = vsel %vm2362, %v4779, 0
  %4786 = vmatprep.subr.mxu0 0.0
  %4787 = vmatpush1.msra.mxu0 %v2461
  %4788 = vmatprep.subr.mxu0 0.0
  %4789 = vmatpush1.msra.mxu0 %v2462
  %4790 = vmatprep.subr.mxu0 0.0
  %4791 = vmatpush1.msra.mxu0 %v2463
  %4792 = vmatprep.subr.mxu0 0.0
  %4793 = vmatpush1.msra.mxu0 %v2464
  %4794 = vmatprep.subr.mxu0 0.0
  %4795 = vmatpush1.msra.mxu0 %v2465
  %4796 = vmatprep.subr.mxu0 0.0
  %4797 = vmatpush1.msra.mxu0 %v2466
  %4798 = vmatprep.subr.mxu0 0.0
  %4799 = vmatpush1.msra.mxu0 %v2467
  %4800 = vmatprep.subr.mxu0 0.0
  %4801 = vmatpush1.msra.mxu0 %v2468
  %4802 = vmatprep.subr.mxu0 0.0
  %4803 = vmatpush1.msra.mxu0 0.0
  %4804 = vmatprep.subr.mxu0 0.0
  %4805 = vmatpush1.msra.mxu0 0.0
  %4806 = vmatprep.subr.mxu0 0.0
  %4807 = vmatpush1.msra.mxu0 0.0
  %4808 = vmatprep.subr.mxu0 0.0
  %4809 = vmatpush1.msra.mxu0 0.0
  %4810 = vmatprep.subr.mxu0 0.0
  %4811 = vmatpush1.msra.mxu0 0.0
  %4812 = vmatprep.subr.mxu0 0.0
  %4813 = vmatpush1.msra.mxu0 0.0
  %4814 = vmatprep.subr.mxu0 0.0
  %4815 = vmatpush1.msra.mxu0 0.0
  %4816 = vmatprep.subr.mxu0 0.0
  %4817 = vmatpush1.msra.mxu0 0.0
  %4818 = vmatprep.subr.mxu0 0.0
  %4819 = vmatpush1.msra.mxu0 0.0
  %4820 = vmatprep.subr.mxu0 0.0
  %4821 = vmatpush1.msra.mxu0 0.0
  %4822 = vmatprep.subr.mxu0 0.0
  %4823 = vmatpush1.msra.mxu0 0.0
  %4824 = vmatprep.subr.mxu0 0.0
  %4825 = vmatpush1.msra.mxu0 0.0
  %4826 = vmatprep.subr.mxu0 0.0
  %4827 = vmatpush1.msra.mxu0 0.0
  %4828 = vmatprep.subr.mxu0 0.0
  %4829 = vmatpush1.msra.mxu0 0.0
  %4830 = vmatprep.subr.mxu0 0.0
  %4831 = vmatpush1.msra.mxu0 0.0
  %4832 = vmatprep.subr.mxu0 0.0
  %4833 = vmatpush1.msra.mxu0 0.0
  %4834 = vmatprep.subr.mxu0 0.0
  %4835 = vmatpush1.msra.mxu0 0.0
  %4836 = vmatprep.subr.mxu0 0.0
  %4837 = vmatpush1.msra.mxu0 0.0
  %4838 = vmatprep.subr.mxu0 0.0
  %4839 = vmatpush1.msra.mxu0 0.0
  %4840 = vmatprep.subr.mxu0 0.0
  %4841 = vmatpush1.msra.mxu0 0.0
  %4842 = vmatprep.subr.mxu0 0.0
  %4843 = vmatpush1.msra.mxu0 0.0
  %4844 = vmatprep.subr.mxu0 0.0
  %4845 = vmatpush1.msra.mxu0 0.0
  %4846 = vmatprep.subr.mxu0 0.0
  %4847 = vmatpush1.msra.mxu0 0.0
  %4848 = vmatprep.subr.mxu0 0.0
  %4849 = vmatpush1.msra.mxu0 0.0
  %4850 = vmatprep.mubr.f32.mxu0 0.0
  %4851 = vmatmul.mubr.f32.gmra.mrb[0].mxu0 %v4781
  %v4852 = vpop.f32.mrb[0].mxu0
  %v4853 = vadd.f32 0.0, %v4852
  %v4854 = vpop.f32.mrb[0].mxu0
  %4855 = vmatprep.mubr.f32.mxu0 0.0
  %4856 = vmatmul.mubr.f32.gmra.mrb[0].mxu0 %v4784
  %v4857 = vpop.f32.mrb[0].mxu0
  %v4858 = vadd.f32 0.0, %v4857
  %v4859 = vpop.f32.mrb[0].mxu0
  %4860 = vdwg.mxu0
  %v4861 = vadd.f32 %v4651, %v4853
  %v4862 = vadd.f32 %v4652, %v4858
  %4863 = vrot.lane.b32.xlu0 %v4650, 96
  %v4864 = vpop.permute.xlu0 %4863
  %v4866 = vadd.f32 %v4861, %v4864
  %v4867 = vadd.f32 %v4862, %v4864
  %v4868 = vld [vmem:[%s5] sm:$0xff]
  %v4869 = vld [vmem:[%s5 + $0x8] sm:$0xff]
  %v4870 = vld [vmem:[%s5 + $0x10] sm:$0xff]
  %v4871 = vld [vmem:[%s5 + $0x18] sm:$0xff]
  %v4872 = vld [vmem:[%s5 + $0x20] sm:$0x3]
  %v4873 = vsel %vm52, %v4866, 0.0
  %4874 = vadd.xlane.f32.xlu0 %v4873
  %v4875 = vpop.xlane.xlu0 %4874
  %v4876 = vsel %vm52, %v4867, 0.0
  %4877 = vadd.xlane.f32.xlu0 %v4876
  %v4878 = vpop.xlane.xlu0 %4877
  %v4879 = vmul.f32 %v4875, %v59
  %v4880 = vmul.f32 %v4878, %v59
  %v4881 = vmul.f32 %v4866, %v4866
  %v4882 = vmul.f32 %v4867, %v4867
  %v4883 = vsel %vm52, %v4881, 0.0
  %4884 = vadd.xlane.f32.xlu0 %v4883
  %v4885 = vpop.xlane.xlu0 %4884
  %v4886 = vsel %vm52, %v4882, 0.0
  %4887 = vadd.xlane.f32.xlu0 %v4886
  %v4888 = vpop.xlane.xlu0 %4887
  %v4889 = vmul.f32 %v4885, %v59
  %v4890 = vmul.f32 %v4888, %v59
  %v4891 = vmul.f32 %v4879, %v4879
  %v4892 = vmul.f32 %v4880, %v4880
  %v4893 = vsub.f32 %v4889, %v4891
  %v4894 = vsub.f32 %v4890, %v4892
  %v4895 = vsub.f32 %v4866, %v4879
  %v4896 = vsub.f32 %v4867, %v4880
  %v4897 = vadd.f32 %v4893, 1e-05
  %v4898 = vadd.f32 %v4894, 1e-05
  %v4899 = vrsqrt.pop %v4897
  %v4900 = vrsqrt.pop %v4898
  %v4901 = vmul.f32 %v4895, %v4899
  %v4902 = vmul.f32 %v4896, %v4900
  %v4903 = vlaneseq
  %v4904 = vshrl.u32 %v4903, 7
  %v4905 = vsub.s32 0, %v4904
  %v4906 = vrot.slane %v4868, %v4905
  %v4907 = vmul.f32 %v4901, %v4906
  %v4908 = vmul.f32 %v4902, %v4906
  %v4909 = vlaneseq
  %v4910 = vshrl.u32 %v4909, 7
  %v4911 = vsub.s32 1, %v4910
  %v4912 = vrot.slane %v4868, %v4911
  %v4913 = vadd.f32 %v4907, %v4912
  %v4914 = vadd.f32 %v4908, %v4912
  %vm4920 = vcmask 1045504
  %v4921 = vrot.slane %v4868, 2
  %v4922 = vrot.slane %v4869, 2
  %v4923 = vsel %vm4920, %v4921, %v4922
  %v4924 = vrot.slane %v4870, 2
  %v4925 = vsel %vm4920, %v4922, %v4924
  %v4926 = vrot.slane %v4871, 2
  %v4927 = vsel %vm4920, %v4924, %v4926
  %v4928 = vrot.slane %v4872, 2
  %v4929 = vsel %vm4920, %v4926, %v4928
  %v4935 = vsel %vm52, %v4913, 0
  %v4938 = vsel %vm52, %v4914, 0
  %4940 = vmatprep.subr.mxu0 0.0
  %4941 = vmatpush1.msra.mxu0 %v4923
  %4942 = vmatprep.subr.mxu0 0.0
  %4943 = vmatpush1.msra.mxu0 %v4925
  %4944 = vmatprep.subr.mxu0 0.0
  %4945 = vmatpush1.msra.mxu0 %v4927
  %4946 = vmatprep.subr.mxu0 0.0
  %4947 = vmatpush1.msra.mxu0 %v4929
  %4948 = vmatprep.subr.mxu0 0.0
  %4949 = vmatpush1.msra.mxu0 0.0
  %4950 = vmatprep.subr.mxu0 0.0
  %4951 = vmatpush1.msra.mxu0 0.0
  %4952 = vmatprep.subr.mxu0 0.0
  %4953 = vmatpush1.msra.mxu0 0.0
  %4954 = vmatprep.subr.mxu0 0.0
  %4955 = vmatpush1.msra.mxu0 0.0
  %4956 = vmatprep.subr.mxu0 0.0
  %4957 = vmatpush1.msra.mxu0 0.0
  %4958 = vmatprep.subr.mxu0 0.0
  %4959 = vmatpush1.msra.mxu0 0.0
  %4960 = vmatprep.subr.mxu0 0.0
  %4961 = vmatpush1.msra.mxu0 0.0
  %4962 = vmatprep.subr.mxu0 0.0
  %4963 = vmatpush1.msra.mxu0 0.0
  %4964 = vmatprep.subr.mxu0 0.0
  %4965 = vmatpush1.msra.mxu0 0.0
  %4966 = vmatprep.subr.mxu0 0.0
  %4967 = vmatpush1.msra.mxu0 0.0
  %4968 = vmatprep.subr.mxu0 0.0
  %4969 = vmatpush1.msra.mxu0 0.0
  %4970 = vmatprep.subr.mxu0 0.0
  %4971 = vmatpush1.msra.mxu0 0.0
  %4972 = vmatprep.subr.mxu0 0.0
  %4973 = vmatpush1.msra.mxu0 0.0
  %4974 = vmatprep.subr.mxu0 0.0
  %4975 = vmatpush1.msra.mxu0 0.0
  %4976 = vmatprep.subr.mxu0 0.0
  %4977 = vmatpush1.msra.mxu0 0.0
  %4978 = vmatprep.subr.mxu0 0.0
  %4979 = vmatpush1.msra.mxu0 0.0
  %4980 = vmatprep.subr.mxu0 0.0
  %4981 = vmatpush1.msra.mxu0 0.0
  %4982 = vmatprep.subr.mxu0 0.0
  %4983 = vmatpush1.msra.mxu0 0.0
  %4984 = vmatprep.subr.mxu0 0.0
  %4985 = vmatpush1.msra.mxu0 0.0
  %4986 = vmatprep.subr.mxu0 0.0
  %4987 = vmatpush1.msra.mxu0 0.0
  %4988 = vmatprep.subr.mxu0 0.0
  %4989 = vmatpush1.msra.mxu0 0.0
  %4990 = vmatprep.subr.mxu0 0.0
  %4991 = vmatpush1.msra.mxu0 0.0
  %4992 = vmatprep.subr.mxu0 0.0
  %4993 = vmatpush1.msra.mxu0 0.0
  %4994 = vmatprep.subr.mxu0 0.0
  %4995 = vmatpush1.msra.mxu0 0.0
  %4996 = vmatprep.subr.mxu0 0.0
  %4997 = vmatpush1.msra.mxu0 0.0
  %4998 = vmatprep.subr.mxu0 0.0
  %4999 = vmatpush1.msra.mxu0 0.0
  %5000 = vmatprep.subr.mxu0 0.0
  %5001 = vmatpush1.msra.mxu0 0.0
  %5002 = vmatprep.subr.mxu0 0.0
  %5003 = vmatpush1.msra.mxu0 0.0
  %5004 = vmatprep.mubr.f32.mxu0 0.0
  %5005 = vmatmul.mubr.f32.gmra.mrb[0].mxu0 %v4935
  %v5006 = vpop.f32.mrb[0].mxu0
  %v5007 = vadd.f32 0.0, %v5006
  %v5008 = vpop.f32.mrb[0].mxu0
  %5009 = vmatprep.mubr.f32.mxu0 0.0
  %5010 = vmatmul.mubr.f32.gmra.mrb[0].mxu0 %v4938
  %v5011 = vpop.f32.mrb[0].mxu0
  %v5012 = vadd.f32 0.0, %v5011
  %v5013 = vpop.f32.mrb[0].mxu0
  %5014 = vdwg.mxu0
  %5015 = vst [vmem:[%s6] sm:$0xff] %v5007
  %5016 = vst [vmem:[%s6 + $0x8] sm:$0xff] %v5012
  // Predicated region
  $region26: #{gpt_forward_pallas.1} parent=0 // pred_check
    _
  $region27: #{gpt_forward_pallas.1} parent=0 // pred_check_branch
    %5018 = sbr.rel (0) target = $region29
  $region28: #{gpt_forward_pallas.1} parent=0 // pred_region
    _
  $region29: #{gpt_forward_pallas.1} parent=0 // pred_fallthru
    _
  // Predicated region
  $region30: #{gpt_forward_pallas.1} parent=0 // pred_check
    _
  $region31: #{gpt_forward_pallas.1} parent=0 // pred_check_branch
    %5020 = sbr.rel (0) target = $region33
  $region32: #{gpt_forward_pallas.1} parent=0 // pred_region
    _
  $region33: #{gpt_forward_pallas.1} parent=0 // pred_fallthru
    _

</llo_original>
